<compile_context>
chip_gen: v7x
topology: tpu7x:2x2x1
jax: 0.10.0
libtpu: 0.0.40
codegen_flags: <defaults>
</compile_context>

<pallas_src>
import jax
import jax.numpy as jnp
from jax.experimental import pallas as pl
from jax.experimental.pallas import tpu as pltpu

# ----------------------------- model dimensions -----------------------------
B, T = 8, 8          # batch, sequence length
D_OBS = 8            # observation dim == target_dim
LOD = 16             # latent observation dim (lod)
LSD = 2 * LOD        # latent state dim (lsd), must be even
H_ENC = 32           # encoder hidden width
H_DEC = 32           # decoder hidden width
K_BASES = 8          # number of transition basis blocks

N_FIELDS = 16        # 14 used fields + 2 pad fields -> 256-lane per-step rows
                     # fields: po_u, po_l, po_cu, po_cl, po_cs,
                     #         pr_u, pr_l, pr_cu, pr_cl, pr_cs,
                     #         kg_u, kg_l, y, y_var, pad, pad
PRM_LANES = 128      # single lane-padded parameter slab

# ------------------- parameter-slab row offsets (static) --------------------
R_ENC_W1 = 0                          # (D_OBS, H_ENC)
R_ENC_WH = R_ENC_W1 + D_OBS           # (H_ENC, 2*LOD)   fused mean/log-var heads
R_WC     = R_ENC_WH + H_ENC           # (2*LOD, K_BASES) coefficient net
R_TM     = R_WC + 2 * LOD             # (K_BASES, 4*LOD) [tm11|tm12|tm21|tm22]
R_DEC_W1 = R_TM + K_BASES             # (5*LOD, 2*H_DEC) block-diag decoder L1
R_DEC_W2 = R_DEC_W1 + 5 * LOD         # (2*H_DEC, 2*D_OBS) block-diag decoder L2
R_ENC_B1 = R_DEC_W2 + 2 * H_DEC       # (1, H_ENC)
R_ENC_BH = R_ENC_B1 + 1               # (1, 2*LOD)
R_BC     = R_ENC_BH + 1               # (1, K_BASES)
R_DEC_B1 = R_BC + 1                   # (1, 2*H_DEC)
R_DEC_B2 = R_DEC_B1 + 1               # (1, 2*D_OBS)
R_INIT   = R_DEC_B2 + 1               # (1, 5*LOD)  initial posterior pack
R_LQ     = R_INIT + 1                 # (1, 2*LOD)  [log_q_upper | log_q_lower]
N_PROWS  = 232                        # padded to a multiple of 8 sublanes


# ------------------------------ fused kernel --------------------------------
def _cru_fused_kernel(obs_dv_ref, prm_ref, slab_ref, dec_ref, heads_ref):
    lod = LOD
    nb = B
    nt = T

    # ---------------- loop-invariant parameter slices ----------------
    enc_w1 = prm_ref[R_ENC_W1:R_ENC_W1 + D_OBS, 0:H_ENC]
    enc_b1 = prm_ref[R_ENC_B1:R_ENC_B1 + 1, 0:H_ENC]
    enc_wh = prm_ref[R_ENC_WH:R_ENC_WH + H_ENC, 0:2 * lod]
    enc_bh = prm_ref[R_ENC_BH:R_ENC_BH + 1, 0:2 * lod]
    wc = prm_ref[R_WC:R_WC + 2 * lod, 0:K_BASES]
    bc = prm_ref[R_BC:R_BC + 1, 0:K_BASES]
    tm = prm_ref[R_TM:R_TM + K_BASES, 0:4 * lod]

    # ---------------- Encoder: all T*B rows in two matmuls ----------------
    x = obs_dv_ref[:, 0:D_OBS]                                       # (T*B, D_OBS)
    h = jnp.maximum(
        jnp.dot(x, enc_w1, preferred_element_type=jnp.float32) + enc_b1, 0.0)
    # output_normalization == 'pre': L2-normalize last hidden layer
    nrm = jnp.sqrt(jnp.sum(h * h, axis=-1, keepdims=True))
    h = h * pl.reciprocal(jnp.maximum(nrm, 1e-12))
    # park heads in VMEM scratch; per-step (8, 2*LOD) reloads instead of keeping
    # the whole (T*B, 2*LOD) value live across the fully-unrolled recursion
    heads_ref[...] = (jnp.dot(h, enc_wh, preferred_element_type=jnp.float32)
                      + enc_bh)                                      # (T*B, 2*LOD)

    # ---------------- loop-invariant per-dim parameters ----------------
    # initial posterior pack [m0_u | m0_l | ic_u | ic_l | ic_s]
    post_pack = jnp.broadcast_to(prm_ref[R_INIT:R_INIT + 1, 0:5 * lod],
                                 (nb, 5 * lod))
    lq = jnp.broadcast_to(prm_ref[R_LQ:R_LQ + 1, 0:2 * lod], (nb, 2 * lod))
    q_base = jnp.where(lq < 0.0, jnp.exp(lq), lq + 1.0)   # elup1, hoisted
    q_base_u = q_base[:, 0:lod]
    q_base_l = q_base[:, lod:2 * lod]
    zero_pad = jnp.zeros((nb, 2 * lod), jnp.float32)

    # ---------------- fully unrolled time recursion (T static & tiny) -----------
    for t in range(nt):
        r0 = t * nb
        hd = heads_ref[r0:r0 + nb, :]
        y = hd[:, 0:lod]
        lv = hd[:, lod:2 * lod]
        yv = lv * lv                                                 # 'square' var act.

        dtv = obs_dv_ref[r0:r0 + nb, D_OBS:D_OBS + 2]                # (B, 2)
        dt = dtv[:, 0:1]
        valid = dtv[:, 1:2] > 0.5

        post_u = post_pack[:, 0:lod]
        post_l = post_pack[:, lod:2 * lod]
        cu = post_pack[:, 2 * lod:3 * lod]
        cl = post_pack[:, 3 * lod:4 * lod]
        cs = post_pack[:, 4 * lod:5 * lod]

        # ---- locally-linear transition coefficients (one matmul + softmax) ----
        logits = (jnp.dot(post_pack[:, 0:2 * lod], wc,
                          preferred_element_type=jnp.float32) + bc)  # (B, K)
        mx = jnp.max(logits, axis=-1, keepdims=True)
        ex = jnp.exp(logits - mx)
        alpha = ex * pl.reciprocal(jnp.sum(ex, axis=-1, keepdims=True))

        # ---- fused (dt*alpha) @ [tm11|tm12|tm21|tm22], lane-sliced ----
        m_all = jnp.dot(alpha * dt, tm, preferred_element_type=jnp.float32)
        m11 = m_all[:, 0:lod]
        m12 = m_all[:, lod:2 * lod]
        m21 = m_all[:, 2 * lod:3 * lod]
        m22 = m_all[:, 3 * lod:4 * lod]

        # ---- closed-form 2x2 matrix exponential exp(dt*A) per latent dim ----
        # basis constrained so m12*m21 >= 0  =>  delta >= 0 (hyperbolic branch)
        tr2 = 0.5 * (m11 + m22)
        dd = 0.5 * (m11 - m22)
        delta = dd * dd + m12 * m21
        s = jnp.sqrt(jnp.maximum(delta, 0.0))
        es = jnp.exp(s)
        ens = jnp.exp(-s)                                            # exact (EUP slack)
        f = 0.5 * (es + ens)                                         # cosh(s)
        g = jnp.where(s > 1e-3,
                      0.5 * (es - ens) * pl.reciprocal(jnp.maximum(s, 1e-12)),
                      1.0 + delta / 6.0)                             # sinh(s)/s
        ee = jnp.exp(tr2)
        eef = ee * f
        eeg = ee * g
        t11 = eef + eeg * dd
        t22 = eef - eeg * dd
        t12 = eeg * m12
        t21 = eeg * m21

        # ---- prediction step (prior mean / factorized prior covariance) ----
        pr_u = t11 * post_u + t12 * post_l
        pr_l = t21 * post_u + t22 * post_l
        pr_cu = (t11 * t11 * cu + 2.0 * t11 * t12 * cs + t12 * t12 * cl
                 + q_base_u * dt)
        pr_cl = (t21 * t21 * cu + 2.0 * t21 * t22 * cs + t22 * t22 * cl
                 + q_base_l * dt)
        pr_cs = t11 * t21 * cu + (t11 * t22 + t12 * t21) * cs + t12 * t22 * cl
        prior_pack = jnp.concatenate([pr_u, pr_l, pr_cu, pr_cl, pr_cs], axis=-1)

        # ---- factorized Kalman update ----
        inv_denom = pl.reciprocal(pr_cu + yv)
        kg_u = pr_cu * inv_denom
        kg_l = pr_cs * inv_denom
        resid = y - pr_u
        omk = 1.0 - kg_u
        upd_pack = jnp.concatenate(
            [pr_u + kg_u * resid,           # up_u
             pr_l + kg_l * resid,           # up_l
             omk * pr_cu,                   # up_cu
             pr_cl - kg_l * pr_cs,          # up_cl
             omk * pr_cs], axis=-1)         # up_cs

        # ---- obs_valid masking on the PACKED slabs (2 selects total) ----
        post_pack = jnp.where(valid, upd_pack, prior_pack)
        kg_pack = jnp.where(valid, jnp.concatenate([kg_u, kg_l], axis=-1), 0.0)

        # ---- one lane-dense 256-wide row store (two unmasked vreg stores) ----
        slab_ref[r0:r0 + nb, :] = jnp.concatenate(
            [post_pack, prior_pack, kg_pack, y, yv, zero_pad], axis=-1)

    # ---------------- Decoder: both paths via block-diagonal weights ----------------
    # decoder input = [post_mean | cat(post_cov)] = first 5*LOD lanes of the slab
    dec_in = slab_ref[:, 0:5 * lod]                                   # (T*B, 80)
    dec_w1 = prm_ref[R_DEC_W1:R_DEC_W1 + 5 * lod, 0:2 * H_DEC]
    dec_b1 = prm_ref[R_DEC_B1:R_DEC_B1 + 1, 0:2 * H_DEC]
    dec_w2 = prm_ref[R_DEC_W2:R_DEC_W2 + 2 * H_DEC, 0:2 * D_OBS]
    dec_b2 = prm_ref[R_DEC_B2:R_DEC_B2 + 1, 0:2 * D_OBS]
    h1 = jnp.maximum(
        jnp.dot(dec_in, dec_w1, preferred_element_type=jnp.float32) + dec_b1, 0.0)
    o2 = jnp.dot(h1, dec_w2, preferred_element_type=jnp.float32) + dec_b2
    mean = o2[:, 0:D_OBS]
    var = jnp.exp(o2[:, D_OBS:2 * D_OBS])                             # 'exp' var act.
    dec_ref[...] = jnp.concatenate([mean, var], axis=-1)


# ------------------------------ parameter init -------------------------------
def init_params(key):
    ks = jax.random.split(key, 16)

    def w(k, shape, scale=0.2):
        return scale * jax.random.normal(k, shape, dtype=jnp.float32)

    # Encoder (hidden ReLU layer + fused mean/log-var heads)
    enc_w1 = w(ks[0], (D_OBS, H_ENC))
    enc_wh = jnp.concatenate([w(ks[1], (H_ENC, LOD)),
                              w(ks[2], (H_ENC, LOD))], axis=1)        # (H_ENC, 2*LOD)

    # coefficient net (softmax over K basis blocks), stacked for one matmul
    wc = jnp.concatenate([w(ks[3], (LOD, K_BASES)),
                          w(ks[4], (LOD, K_BASES))], axis=0)          # (2*LOD, K)

    # locally-linear continuous transition basis (stable: negative diagonal,
    # non-negative cross terms so delta >= 0 in the matrix exponential),
    # packed along lanes: [tm11 | tm12 | tm21 | tm22]
    tm11 = -(0.2 + 0.1 * jnp.abs(jax.random.normal(ks[5], (K_BASES, LOD), jnp.float32)))
    tm22 = -(0.2 + 0.1 * jnp.abs(jax.random.normal(ks[6], (K_BASES, LOD), jnp.float32)))
    tm12 = 0.1 * jnp.abs(jax.random.normal(ks[7], (K_BASES, LOD), jnp.float32))
    tm21 = 0.1 * jnp.abs(jax.random.normal(ks[8], (K_BASES, LOD), jnp.float32))
    tm = jnp.concatenate([tm11, tm12, tm21, tm22], axis=1)            # (K, 4*LOD)

    # SplitDiagGaussianDecoder: block-diagonal packing so the mean path (input
    # post_mean, width LSD) and var path (input cat(post_cov), width 3*LOD)
    # run in a single matmul per layer (zero off-blocks keep results exact).
    dec_wm1 = w(ks[9], (LSD, H_DEC))
    dec_wm2 = w(ks[10], (H_DEC, D_OBS))
    dec_wv1 = w(ks[11], (3 * LOD, H_DEC))
    dec_wv2 = w(ks[12], (H_DEC, D_OBS))
    z = lambda r, c: jnp.zeros((r, c), jnp.float32)
    dec_w1 = jnp.concatenate([
        jnp.concatenate([dec_wm1, z(LSD, H_DEC)], axis=1),
        jnp.concatenate([z(3 * LOD, H_DEC), dec_wv1], axis=1)], axis=0)   # (80, 64)
    dec_w2 = jnp.concatenate([
        jnp.concatenate([dec_wm2, z(H_DEC, D_OBS)], axis=1),
        jnp.concatenate([z(H_DEC, D_OBS), dec_wv2], axis=1)], axis=0)     # (64, 16)

    # initial posterior pack (mean 0, var_activation(log_ic)=10.0, ics=0) and
    # process-noise log params (CRU.__init__ semantics)
    init_state = jnp.concatenate([
        jnp.zeros((1, LSD), jnp.float32),
        jnp.full((1, 2 * LOD), 10.0, jnp.float32),
        jnp.zeros((1, LOD), jnp.float32)], axis=1)                    # (1, 5*LOD)
    log_q = jnp.full((1, 2 * LOD), -3.0, jnp.float32)                 # (1, 2*LOD)

    # single lane-padded parameter slab (all biases zero-init => zero rows)
    prm = jnp.zeros((N_PROWS, PRM_LANES), jnp.float32)

    def put(p, r, arr):
        return p.at[r:r + arr.shape[0], 0:arr.shape[1]].set(arr)

    prm = put(prm, R_ENC_W1, enc_w1)
    prm = put(prm, R_ENC_WH, enc_wh)
    prm = put(prm, R_WC, wc)
    prm = put(prm, R_TM, tm)
    prm = put(prm, R_DEC_W1, dec_w1)
    prm = put(prm, R_DEC_W2, dec_w2)
    prm = put(prm, R_INIT, init_state)
    prm = put(prm, R_LQ, log_q)
    return {"prm": prm}


# --------------------------------- forward ----------------------------------
@jax.jit
def cru_forward(params, obs_batch, time_points, obs_valid):
    bb, tt, dd = obs_batch.shape
    assert (bb, tt, dd) == (B, T, D_OBS)
    # time-major flatten so the per-step rows are contiguous inside the kernel
    obs_tb = jnp.transpose(obs_batch, (1, 0, 2)).reshape(tt * bb, dd)
    # dt[t] = time_points[t] - time_points[t-1], dt[0] = time_points[0]
    # TODO(synk): some CRU impls use dt[0] = 0; confirm against the reference pipeline.
    dt = jnp.diff(time_points, axis=1,
                  prepend=jnp.zeros((bb, 1), time_points.dtype))
    dv = jnp.stack([dt, obs_valid.astype(jnp.float32)], axis=-1)      # (B, T, 2)
    dv_tb = jnp.transpose(dv, (1, 0, 2)).reshape(tt * bb, 2)
    obs_dv = jnp.concatenate([obs_tb, dv_tb], axis=-1)                # (T*B, D_OBS+2)

    slab, dec_out = pl.pallas_call(
        _cru_fused_kernel,
        out_shape=(jax.ShapeDtypeStruct((tt * bb, N_FIELDS * LOD), jnp.float32),
                   jax.ShapeDtypeStruct((tt * bb, 2 * D_OBS), jnp.float32)),
        scratch_shapes=[pltpu.VMEM((tt * bb, 2 * LOD), jnp.float32)],
        compiler_params=pltpu.CompilerParams(
            vmem_limit_bytes=8 * 1024 * 1024),   # total residency < 1 MiB
    )(obs_dv, params["prm"])

    slab_b = jnp.transpose(slab.reshape(tt, bb, N_FIELDS * LOD), (1, 0, 2))
    field = lambda i: slab_b[..., i * LOD:(i + 1) * LOD]
    post_mean = jnp.concatenate([field(0), field(1)], axis=-1)
    post_cov = [field(2), field(3), field(4)]
    prior_mean = jnp.concatenate([field(5), field(6)], axis=-1)
    prior_cov = [field(7), field(8), field(9)]
    kalman_gain = [field(10), field(11)]
    y = field(12)
    y_var = field(13)

    dec_btf = jnp.transpose(dec_out.reshape(tt, bb, 2 * D_OBS), (1, 0, 2))
    out_mean = dec_btf[..., :D_OBS]
    out_var = dec_btf[..., D_OBS:]

    intermediates = {
        "post_mean": post_mean, "post_cov": post_cov,
        "prior_mean": prior_mean, "prior_cov": prior_cov,
        "kalman_gain": kalman_gain, "y": y, "y_var": y_var,
    }
    return out_mean, out_var, intermediates


if __name__ == "__main__":
    key = jax.random.PRNGKey(0)
    kp, ko, kt, kv = jax.random.split(key, 4)
    params = init_params(kp)
    obs = jax.random.normal(ko, (B, T, D_OBS), dtype=jnp.float32)
    # irregular timestamps: cumulative sum of small positive deltas
    deltas = 0.05 + 0.1 * jax.random.uniform(kt, (B, T), dtype=jnp.float32)
    time_points = jnp.cumsum(deltas, axis=1)
    obs_valid = jax.random.uniform(kv, (B, T)) > 0.3

    out_mean, out_var, inter = cru_forward(params, obs, time_points, obs_valid)
    jax.block_until_ready((out_mean, out_var))

    assert out_mean.shape == (B, T, D_OBS)
    assert out_var.shape == (B, T, D_OBS)
    assert inter["post_mean"].shape == (B, T, LSD)
    assert inter["prior_mean"].shape == (B, T, LSD)
    assert inter["post_cov"][0].shape == (B, T, LOD)
    assert inter["kalman_gain"][0].shape == (B, T, LOD)
    assert bool(jnp.all(jnp.isfinite(out_mean)))
    assert bool(jnp.all(jnp.isfinite(out_var)))
    assert bool(jnp.all(jnp.isfinite(inter["post_mean"])))
    assert bool(jnp.all(out_var > 0.0))
    print("KERNEL_OK")
</pallas_src>

<mosaic_0001>
module attributes {stable_mosaic.version = 11 : i64} {
  func.func @_cru_fused_kernel(%arg0: memref<64x10xf32, #tpu.memory_space<vmem>>, %arg1: memref<232x128xf32, #tpu.memory_space<vmem>>, %arg2: memref<64x256xf32, #tpu.memory_space<vmem>>, %arg3: memref<64x16xf32, #tpu.memory_space<vmem>>, %arg4: memref<64x32xf32, #tpu.memory_space<vmem>>) attributes {dimension_semantics = [], scalar_prefetch = 0 : i64, scratch_operands = 1 : i64, tpu.core_type = #tpu.core_type<tc>} {
    %c0 = arith.constant 0 : index
    %c0_0 = arith.constant 0 : index
    %0 = vector.load %arg1[%c0, %c0_0] : memref<232x128xf32, #tpu.memory_space<vmem>>, vector<8x32xf32>
    %c224 = arith.constant 224 : index
    %c0_1 = arith.constant 0 : index
    %1 = vector.load %arg1[%c224, %c0_1] : memref<232x128xf32, #tpu.memory_space<vmem>>, vector<1x32xf32>
    %c8 = arith.constant 8 : index
    %c0_2 = arith.constant 0 : index
    %2 = vector.load %arg1[%c8, %c0_2] : memref<232x128xf32, #tpu.memory_space<vmem>>, vector<32x32xf32>
    %c225 = arith.constant 225 : index
    %c0_3 = arith.constant 0 : index
    %3 = vector.load %arg1[%c225, %c0_3] : memref<232x128xf32, #tpu.memory_space<vmem>>, vector<1x32xf32>
    %c40 = arith.constant 40 : index
    %c0_4 = arith.constant 0 : index
    %4 = vector.load %arg1[%c40, %c0_4] : memref<232x128xf32, #tpu.memory_space<vmem>>, vector<32x8xf32>
    %c226 = arith.constant 226 : index
    %c0_5 = arith.constant 0 : index
    %5 = vector.load %arg1[%c226, %c0_5] : memref<232x128xf32, #tpu.memory_space<vmem>>, vector<1x8xf32>
    %c72 = arith.constant 72 : index
    %c0_6 = arith.constant 0 : index
    %6 = vector.load %arg1[%c72, %c0_6] : memref<232x128xf32, #tpu.memory_space<vmem>>, vector<8x64xf32>
    %c0_7 = arith.constant 0 : index
    %c0_8 = arith.constant 0 : index
    %7 = vector.load %arg0[%c0_7, %c0_8] : memref<64x10xf32, #tpu.memory_space<vmem>>, vector<64x8xf32>
    %cst = arith.constant dense<0.000000e+00> : vector<64x32xf32>
    %8 = tpu.matmul %7, %0, %cst {dimension_numbers = #tpu.dot_dimension_numbers<[1], [0], [0], [1], [0, 0, 1, 1], [], []>} : vector<64x8xf32>, vector<8x32xf32>, vector<64x32xf32> -> vector<64x32xf32>
    %9 = vector.broadcast %1 : vector<1x32xf32> to vector<64x32xf32>
    %10 = arith.addf %8, %9 : vector<64x32xf32>
    %cst_9 = arith.constant 0.000000e+00 : f32
    %11 = vector.broadcast %cst_9 : f32 to vector<64x32xf32>
    %12 = arith.maximumf %10, %11 : vector<64x32xf32>
    %13 = arith.mulf %12, %12 : vector<64x32xf32>
    %cst_10 = arith.constant dense<0.000000e+00> : vector<64xf32>
    %14 = vector.multi_reduction <add>, %13, %cst_10 [1] : vector<64x32xf32> to vector<64xf32>
    %15 = vector.shape_cast %14 : vector<64xf32> to vector<64x1xf32>
    %16 = math.sqrt %15 : vector<64x1xf32>
    %cst_11 = arith.constant 9.99999996E-13 : f32
    %17 = vector.broadcast %cst_11 : f32 to vector<64x1xf32>
    %18 = arith.maximumf %16, %17 : vector<64x1xf32>
    %19 = tpu.reciprocal %18 : vector<64x1xf32> -> vector<64x1xf32>
    %20 = vector.broadcast %19 : vector<64x1xf32> to vector<64x32xf32>
    %21 = arith.mulf %12, %20 : vector<64x32xf32>
    %cst_12 = arith.constant dense<0.000000e+00> : vector<64x32xf32>
    %22 = tpu.matmul %21, %2, %cst_12 {dimension_numbers = #tpu.dot_dimension_numbers<[1], [0], [0], [1], [0, 0, 1, 1], [], []>} : vector<64x32xf32>, vector<32x32xf32>, vector<64x32xf32> -> vector<64x32xf32>
    %23 = vector.broadcast %3 : vector<1x32xf32> to vector<64x32xf32>
    %24 = arith.addf %22, %23 : vector<64x32xf32>
    %c0_13 = arith.constant 0 : index
    %c0_14 = arith.constant 0 : index
    %25 = vector.load %arg4[%c0_13, %c0_14] : memref<64x32xf32, #tpu.memory_space<vmem>>, vector<64x32xf32>
    tpu.vector_store %arg4[%c0_13, %c0_14], %24 {strides = array<i32>} : memref<64x32xf32, #tpu.memory_space<vmem>>, vector<64x32xf32>,
    %c229 = arith.constant 229 : index
    %c0_15 = arith.constant 0 : index
    %26 = vector.load %arg1[%c229, %c0_15] : memref<232x128xf32, #tpu.memory_space<vmem>>, vector<1x80xf32>
    %27 = vector.shape_cast %26 : vector<1x80xf32> to vector<1x80xf32>
    %28 = vector.broadcast %27 : vector<1x80xf32> to vector<8x80xf32>
    %c230 = arith.constant 230 : index
    %c0_16 = arith.constant 0 : index
    %29 = vector.load %arg1[%c230, %c0_16] : memref<232x128xf32, #tpu.memory_space<vmem>>, vector<1x32xf32>
    %30 = vector.shape_cast %29 : vector<1x32xf32> to vector<1x32xf32>
    %31 = vector.broadcast %30 : vector<1x32xf32> to vector<8x32xf32>
    %cst_17 = arith.constant 0.000000e+00 : f32
    %32 = vector.broadcast %cst_17 : f32 to vector<8x32xf32>
    %33 = arith.cmpf olt, %31, %32 : vector<8x32xf32>
    %34 = math.exp %31 : vector<8x32xf32>
    %cst_18 = arith.constant 1.000000e+00 : f32
    %35 = vector.broadcast %cst_18 : f32 to vector<8x32xf32>
    %36 = arith.addf %31, %35 : vector<8x32xf32>
    %37 = arith.select %33, %34, %36 : vector<8x32xi1>, vector<8x32xf32>
    %38 = vector.extract_strided_slice %37 {offsets = [0, 0], sizes = [8, 16], strides = [1, 1]} : vector<8x32xf32> to vector<8x16xf32>
    %39 = vector.extract_strided_slice %37 {offsets = [0, 16], sizes = [8, 16], strides = [1, 1]} : vector<8x32xf32> to vector<8x16xf32>
    %cst_19 = arith.constant 0.000000e+00 : f32
    %40 = vector.broadcast %cst_19 : f32 to vector<8x32xf32>
    %c0_20 = arith.constant 0 : index
    %c0_21 = arith.constant 0 : index
    %41 = vector.load %arg4[%c0_20, %c0_21] : memref<64x32xf32, #tpu.memory_space<vmem>>, vector<8x32xf32>
    %42 = vector.extract_strided_slice %41 {offsets = [0, 0], sizes = [8, 16], strides = [1, 1]} : vector<8x32xf32> to vector<8x16xf32>
    %43 = vector.extract_strided_slice %41 {offsets = [0, 16], sizes = [8, 16], strides = [1, 1]} : vector<8x32xf32> to vector<8x16xf32>
    %44 = arith.mulf %43, %43 : vector<8x16xf32>
    %c0_22 = arith.constant 0 : index
    %c8_23 = arith.constant 8 : index
    %45 = vector.load %arg0[%c0_22, %c8_23] : memref<64x10xf32, #tpu.memory_space<vmem>>, vector<8x2xf32>
    %46 = vector.extract_strided_slice %45 {offsets = [0, 0], sizes = [8, 1], strides = [1, 1]} : vector<8x2xf32> to vector<8x1xf32>
    %47 = vector.extract_strided_slice %45 {offsets = [0, 1], sizes = [8, 1], strides = [1, 1]} : vector<8x2xf32> to vector<8x1xf32>
    %cst_24 = arith.constant 5.000000e-01 : f32
    %48 = vector.broadcast %cst_24 : f32 to vector<8x1xf32>
    %49 = arith.cmpf ogt, %47, %48 : vector<8x1xf32>
    %50 = vector.extract_strided_slice %28 {offsets = [0, 0], sizes = [8, 16], strides = [1, 1]} : vector<8x80xf32> to vector<8x16xf32>
    %51 = vector.extract_strided_slice %28 {offsets = [0, 16], sizes = [8, 16], strides = [1, 1]} : vector<8x80xf32> to vector<8x16xf32>
    %52 = vector.extract_strided_slice %28 {offsets = [0, 32], sizes = [8, 16], strides = [1, 1]} : vector<8x80xf32> to vector<8x16xf32>
    %53 = vector.extract_strided_slice %28 {offsets = [0, 48], sizes = [8, 16], strides = [1, 1]} : vector<8x80xf32> to vector<8x16xf32>
    %54 = vector.extract_strided_slice %28 {offsets = [0, 64], sizes = [8, 16], strides = [1, 1]} : vector<8x80xf32> to vector<8x16xf32>
    %55 = vector.extract_strided_slice %28 {offsets = [0, 0], sizes = [8, 32], strides = [1, 1]} : vector<8x80xf32> to vector<8x32xf32>
    %cst_25 = arith.constant dense<0.000000e+00> : vector<8x8xf32>
    %56 = tpu.matmul %55, %4, %cst_25 {dimension_numbers = #tpu.dot_dimension_numbers<[1], [0], [0], [1], [0, 0, 1, 1], [], []>} : vector<8x32xf32>, vector<32x8xf32>, vector<8x8xf32> -> vector<8x8xf32>
    %57 = vector.broadcast %5 : vector<1x8xf32> to vector<8x8xf32>
    %58 = arith.addf %56, %57 : vector<8x8xf32>
    %cst_26 = arith.constant dense<0xFF800000> : vector<8xf32>
    %59 = vector.multi_reduction <maximumf>, %58, %cst_26 [1] : vector<8x8xf32> to vector<8xf32>
    %60 = vector.shape_cast %59 : vector<8xf32> to vector<8x1xf32>
    %61 = vector.broadcast %60 : vector<8x1xf32> to vector<8x8xf32>
    %62 = arith.subf %58, %61 : vector<8x8xf32>
    %63 = math.exp %62 : vector<8x8xf32>
    %cst_27 = arith.constant dense<0.000000e+00> : vector<8xf32>
    %64 = vector.multi_reduction <add>, %63, %cst_27 [1] : vector<8x8xf32> to vector<8xf32>
    %65 = vector.shape_cast %64 : vector<8xf32> to vector<8x1xf32>
    %66 = tpu.reciprocal %65 : vector<8x1xf32> -> vector<8x1xf32>
    %67 = vector.broadcast %66 : vector<8x1xf32> to vector<8x8xf32>
    %68 = arith.mulf %63, %67 : vector<8x8xf32>
    %69 = vector.broadcast %46 : vector<8x1xf32> to vector<8x8xf32>
    %70 = arith.mulf %68, %69 : vector<8x8xf32>
    %cst_28 = arith.constant dense<0.000000e+00> : vector<8x64xf32>
    %71 = tpu.matmul %70, %6, %cst_28 {dimension_numbers = #tpu.dot_dimension_numbers<[1], [0], [0], [1], [0, 0, 1, 1], [], []>} : vector<8x8xf32>, vector<8x64xf32>, vector<8x64xf32> -> vector<8x64xf32>
    %72 = vector.extract_strided_slice %71 {offsets = [0, 0], sizes = [8, 16], strides = [1, 1]} : vector<8x64xf32> to vector<8x16xf32>
    %73 = vector.extract_strided_slice %71 {offsets = [0, 16], sizes = [8, 16], strides = [1, 1]} : vector<8x64xf32> to vector<8x16xf32>
    %74 = vector.extract_strided_slice %71 {offsets = [0, 32], sizes = [8, 16], strides = [1, 1]} : vector<8x64xf32> to vector<8x16xf32>
    %75 = vector.extract_strided_slice %71 {offsets = [0, 48], sizes = [8, 16], strides = [1, 1]} : vector<8x64xf32> to vector<8x16xf32>
    %76 = arith.addf %72, %75 : vector<8x16xf32>
    %cst_29 = arith.constant 5.000000e-01 : f32
    %77 = vector.broadcast %cst_29 : f32 to vector<8x16xf32>
    %78 = arith.mulf %77, %76 : vector<8x16xf32>
    %79 = arith.subf %72, %75 : vector<8x16xf32>
    %cst_30 = arith.constant 5.000000e-01 : f32
    %80 = vector.broadcast %cst_30 : f32 to vector<8x16xf32>
    %81 = arith.mulf %80, %79 : vector<8x16xf32>
    %82 = arith.mulf %81, %81 : vector<8x16xf32>
    %83 = arith.mulf %73, %74 : vector<8x16xf32>
    %84 = arith.addf %82, %83 : vector<8x16xf32>
    %cst_31 = arith.constant 0.000000e+00 : f32
    %85 = vector.broadcast %cst_31 : f32 to vector<8x16xf32>
    %86 = arith.maximumf %84, %85 : vector<8x16xf32>
    %87 = math.sqrt %86 : vector<8x16xf32>
    %88 = math.exp %87 : vector<8x16xf32>
    %cst_32 = arith.constant 0.000000e+00 : f32
    %89 = vector.broadcast %cst_32 : f32 to vector<8x16xf32>
    %90 = arith.subf %89, %87 : vector<8x16xf32>
    %91 = math.exp %90 : vector<8x16xf32>
    %92 = arith.addf %88, %91 : vector<8x16xf32>
    %cst_33 = arith.constant 5.000000e-01 : f32
    %93 = vector.broadcast %cst_33 : f32 to vector<8x16xf32>
    %94 = arith.mulf %93, %92 : vector<8x16xf32>
    %cst_34 = arith.constant 1.000000e-03 : f32
    %95 = vector.broadcast %cst_34 : f32 to vector<8x16xf32>
    %96 = arith.cmpf ogt, %87, %95 : vector<8x16xf32>
    %97 = arith.subf %88, %91 : vector<8x16xf32>
    %cst_35 = arith.constant 5.000000e-01 : f32
    %98 = vector.broadcast %cst_35 : f32 to vector<8x16xf32>
    %99 = arith.mulf %98, %97 : vector<8x16xf32>
    %cst_36 = arith.constant 9.99999996E-13 : f32
    %100 = vector.broadcast %cst_36 : f32 to vector<8x16xf32>
    %101 = arith.maximumf %87, %100 : vector<8x16xf32>
    %102 = tpu.reciprocal %101 : vector<8x16xf32> -> vector<8x16xf32>
    %103 = arith.mulf %99, %102 : vector<8x16xf32>
    %cst_37 = arith.constant 6.000000e+00 : f32
    %104 = vector.broadcast %cst_37 : f32 to vector<8x16xf32>
    %105 = arith.divf %84, %104 : vector<8x16xf32>
    %cst_38 = arith.constant 1.000000e+00 : f32
    %106 = vector.broadcast %cst_38 : f32 to vector<8x16xf32>
    %107 = arith.addf %106, %105 : vector<8x16xf32>
    %108 = arith.select %96, %103, %107 : vector<8x16xi1>, vector<8x16xf32>
    %109 = math.exp %78 : vector<8x16xf32>
    %110 = arith.mulf %109, %94 : vector<8x16xf32>
    %111 = arith.mulf %109, %108 : vector<8x16xf32>
    %112 = arith.mulf %111, %81 : vector<8x16xf32>
    %113 = arith.addf %110, %112 : vector<8x16xf32>
    %114 = arith.mulf %111, %81 : vector<8x16xf32>
    %115 = arith.subf %110, %114 : vector<8x16xf32>
    %116 = arith.mulf %111, %73 : vector<8x16xf32>
    %117 = arith.mulf %111, %74 : vector<8x16xf32>
    %118 = arith.mulf %113, %50 : vector<8x16xf32>
    %119 = arith.mulf %116, %51 : vector<8x16xf32>
    %120 = arith.addf %118, %119 : vector<8x16xf32>
    %121 = arith.mulf %117, %50 : vector<8x16xf32>
    %122 = arith.mulf %115, %51 : vector<8x16xf32>
    %123 = arith.addf %121, %122 : vector<8x16xf32>
    %124 = arith.mulf %113, %113 : vector<8x16xf32>
    %125 = arith.mulf %124, %52 : vector<8x16xf32>
    %cst_39 = arith.constant 2.000000e+00 : f32
    %126 = vector.broadcast %cst_39 : f32 to vector<8x16xf32>
    %127 = arith.mulf %126, %113 : vector<8x16xf32>
    %128 = arith.mulf %127, %116 : vector<8x16xf32>
    %129 = arith.mulf %128, %54 : vector<8x16xf32>
    %130 = arith.addf %125, %129 : vector<8x16xf32>
    %131 = arith.mulf %116, %116 : vector<8x16xf32>
    %132 = arith.mulf %131, %53 : vector<8x16xf32>
    %133 = arith.addf %130, %132 : vector<8x16xf32>
    %134 = vector.broadcast %46 : vector<8x1xf32> to vector<8x16xf32>
    %135 = arith.mulf %38, %134 : vector<8x16xf32>
    %136 = arith.addf %133, %135 : vector<8x16xf32>
    %137 = arith.mulf %117, %117 : vector<8x16xf32>
    %138 = arith.mulf %137, %52 : vector<8x16xf32>
    %cst_40 = arith.constant 2.000000e+00 : f32
    %139 = vector.broadcast %cst_40 : f32 to vector<8x16xf32>
    %140 = arith.mulf %139, %117 : vector<8x16xf32>
    %141 = arith.mulf %140, %115 : vector<8x16xf32>
    %142 = arith.mulf %141, %54 : vector<8x16xf32>
    %143 = arith.addf %138, %142 : vector<8x16xf32>
    %144 = arith.mulf %115, %115 : vector<8x16xf32>
    %145 = arith.mulf %144, %53 : vector<8x16xf32>
    %146 = arith.addf %143, %145 : vector<8x16xf32>
    %147 = vector.broadcast %46 : vector<8x1xf32> to vector<8x16xf32>
    %148 = arith.mulf %39, %147 : vector<8x16xf32>
    %149 = arith.addf %146, %148 : vector<8x16xf32>
    %150 = arith.mulf %113, %117 : vector<8x16xf32>
    %151 = arith.mulf %150, %52 : vector<8x16xf32>
    %152 = arith.mulf %113, %115 : vector<8x16xf32>
    %153 = arith.mulf %116, %117 : vector<8x16xf32>
    %154 = arith.addf %152, %153 : vector<8x16xf32>
    %155 = arith.mulf %154, %54 : vector<8x16xf32>
    %156 = arith.addf %151, %155 : vector<8x16xf32>
    %157 = arith.mulf %116, %115 : vector<8x16xf32>
    %158 = arith.mulf %157, %53 : vector<8x16xf32>
    %159 = arith.addf %156, %158 : vector<8x16xf32>
    %160 = tpu.concatenate %120, %123, %136, %149, %159 in 1 : vector<8x16xf32>, vector<8x16xf32>, vector<8x16xf32>, vector<8x16xf32>, vector<8x16xf32> -> vector<8x80xf32>
    %161 = arith.addf %136, %44 : vector<8x16xf32>
    %162 = tpu.reciprocal %161 : vector<8x16xf32> -> vector<8x16xf32>
    %163 = arith.mulf %136, %162 : vector<8x16xf32>
    %164 = arith.mulf %159, %162 : vector<8x16xf32>
    %165 = arith.subf %42, %120 : vector<8x16xf32>
    %cst_41 = arith.constant 1.000000e+00 : f32
    %166 = vector.broadcast %cst_41 : f32 to vector<8x16xf32>
    %167 = arith.subf %166, %163 : vector<8x16xf32>
    %168 = arith.mulf %163, %165 : vector<8x16xf32>
    %169 = arith.addf %120, %168 : vector<8x16xf32>
    %170 = arith.mulf %164, %165 : vector<8x16xf32>
    %171 = arith.addf %123, %170 : vector<8x16xf32>
    %172 = arith.mulf %167, %136 : vector<8x16xf32>
    %173 = arith.mulf %164, %159 : vector<8x16xf32>
    %174 = arith.subf %149, %173 : vector<8x16xf32>
    %175 = arith.mulf %167, %159 : vector<8x16xf32>
    %176 = tpu.concatenate %169, %171, %172, %174, %175 in 1 : vector<8x16xf32>, vector<8x16xf32>, vector<8x16xf32>, vector<8x16xf32>, vector<8x16xf32> -> vector<8x80xf32>
    %177 = vector.shape_cast %49 : vector<8x1xi1> to vector<8x1xi1>
    %178 = vector.broadcast %177 : vector<8x1xi1> to vector<8x80xi1>
    %179 = arith.select %178, %176, %160 : vector<8x80xi1>, vector<8x80xf32>
    %180 = tpu.concatenate %163, %164 in 1 : vector<8x16xf32>, vector<8x16xf32> -> vector<8x32xf32>
    %cst_42 = arith.constant 0.000000e+00 : f32
    %181 = vector.shape_cast %49 : vector<8x1xi1> to vector<8x1xi1>
    %182 = vector.broadcast %181 : vector<8x1xi1> to vector<8x32xi1>
    %183 = vector.broadcast %cst_42 : f32 to vector<8x32xf32>
    %184 = arith.select %182, %180, %183 : vector<8x32xi1>, vector<8x32xf32>
    %185 = tpu.concatenate %179, %160, %184, %42, %44, %40 in 1 : vector<8x80xf32>, vector<8x80xf32>, vector<8x32xf32>, vector<8x16xf32>, vector<8x16xf32>, vector<8x32xf32> -> vector<8x256xf32>
    %c0_43 = arith.constant 0 : index
    %c0_44 = arith.constant 0 : index
    %186 = vector.load %arg2[%c0_43, %c0_44] : memref<64x256xf32, #tpu.memory_space<vmem>>, vector<8x256xf32>
    tpu.vector_store %arg2[%c0_43, %c0_44], %185 {strides = array<i32>} : memref<64x256xf32, #tpu.memory_space<vmem>>, vector<8x256xf32>,
    %c8_45 = arith.constant 8 : index
    %c0_46 = arith.constant 0 : index
    %187 = vector.load %arg4[%c8_45, %c0_46] : memref<64x32xf32, #tpu.memory_space<vmem>>, vector<8x32xf32>
    %188 = vector.extract_strided_slice %187 {offsets = [0, 0], sizes = [8, 16], strides = [1, 1]} : vector<8x32xf32> to vector<8x16xf32>
    %189 = vector.extract_strided_slice %187 {offsets = [0, 16], sizes = [8, 16], strides = [1, 1]} : vector<8x32xf32> to vector<8x16xf32>
    %190 = arith.mulf %189, %189 : vector<8x16xf32>
    %c8_47 = arith.constant 8 : index
    %c8_48 = arith.constant 8 : index
    %191 = vector.load %arg0[%c8_47, %c8_48] : memref<64x10xf32, #tpu.memory_space<vmem>>, vector<8x2xf32>
    %192 = vector.extract_strided_slice %191 {offsets = [0, 0], sizes = [8, 1], strides = [1, 1]} : vector<8x2xf32> to vector<8x1xf32>
    %193 = vector.extract_strided_slice %191 {offsets = [0, 1], sizes = [8, 1], strides = [1, 1]} : vector<8x2xf32> to vector<8x1xf32>
    %cst_49 = arith.constant 5.000000e-01 : f32
    %194 = vector.broadcast %cst_49 : f32 to vector<8x1xf32>
    %195 = arith.cmpf ogt, %193, %194 : vector<8x1xf32>
    %196 = vector.extract_strided_slice %179 {offsets = [0, 0], sizes = [8, 16], strides = [1, 1]} : vector<8x80xf32> to vector<8x16xf32>
    %197 = vector.extract_strided_slice %179 {offsets = [0, 16], sizes = [8, 16], strides = [1, 1]} : vector<8x80xf32> to vector<8x16xf32>
    %198 = vector.extract_strided_slice %179 {offsets = [0, 32], sizes = [8, 16], strides = [1, 1]} : vector<8x80xf32> to vector<8x16xf32>
    %199 = vector.extract_strided_slice %179 {offsets = [0, 48], sizes = [8, 16], strides = [1, 1]} : vector<8x80xf32> to vector<8x16xf32>
    %200 = vector.extract_strided_slice %179 {offsets = [0, 64], sizes = [8, 16], strides = [1, 1]} : vector<8x80xf32> to vector<8x16xf32>
    %201 = vector.extract_strided_slice %179 {offsets = [0, 0], sizes = [8, 32], strides = [1, 1]} : vector<8x80xf32> to vector<8x32xf32>
    %cst_50 = arith.constant dense<0.000000e+00> : vector<8x8xf32>
    %202 = tpu.matmul %201, %4, %cst_50 {dimension_numbers = #tpu.dot_dimension_numbers<[1], [0], [0], [1], [0, 0, 1, 1], [], []>} : vector<8x32xf32>, vector<32x8xf32>, vector<8x8xf32> -> vector<8x8xf32>
    %203 = vector.broadcast %5 : vector<1x8xf32> to vector<8x8xf32>
    %204 = arith.addf %202, %203 : vector<8x8xf32>
    %cst_51 = arith.constant dense<0xFF800000> : vector<8xf32>
    %205 = vector.multi_reduction <maximumf>, %204, %cst_51 [1] : vector<8x8xf32> to vector<8xf32>
    %206 = vector.shape_cast %205 : vector<8xf32> to vector<8x1xf32>
    %207 = vector.broadcast %206 : vector<8x1xf32> to vector<8x8xf32>
    %208 = arith.subf %204, %207 : vector<8x8xf32>
    %209 = math.exp %208 : vector<8x8xf32>
    %cst_52 = arith.constant dense<0.000000e+00> : vector<8xf32>
    %210 = vector.multi_reduction <add>, %209, %cst_52 [1] : vector<8x8xf32> to vector<8xf32>
    %211 = vector.shape_cast %210 : vector<8xf32> to vector<8x1xf32>
    %212 = tpu.reciprocal %211 : vector<8x1xf32> -> vector<8x1xf32>
    %213 = vector.broadcast %212 : vector<8x1xf32> to vector<8x8xf32>
    %214 = arith.mulf %209, %213 : vector<8x8xf32>
    %215 = vector.broadcast %192 : vector<8x1xf32> to vector<8x8xf32>
    %216 = arith.mulf %214, %215 : vector<8x8xf32>
    %cst_53 = arith.constant dense<0.000000e+00> : vector<8x64xf32>
    %217 = tpu.matmul %216, %6, %cst_53 {dimension_numbers = #tpu.dot_dimension_numbers<[1], [0], [0], [1], [0, 0, 1, 1], [], []>} : vector<8x8xf32>, vector<8x64xf32>, vector<8x64xf32> -> vector<8x64xf32>
    %218 = vector.extract_strided_slice %217 {offsets = [0, 0], sizes = [8, 16], strides = [1, 1]} : vector<8x64xf32> to vector<8x16xf32>
    %219 = vector.extract_strided_slice %217 {offsets = [0, 16], sizes = [8, 16], strides = [1, 1]} : vector<8x64xf32> to vector<8x16xf32>
    %220 = vector.extract_strided_slice %217 {offsets = [0, 32], sizes = [8, 16], strides = [1, 1]} : vector<8x64xf32> to vector<8x16xf32>
    %221 = vector.extract_strided_slice %217 {offsets = [0, 48], sizes = [8, 16], strides = [1, 1]} : vector<8x64xf32> to vector<8x16xf32>
    %222 = arith.addf %218, %221 : vector<8x16xf32>
    %cst_54 = arith.constant 5.000000e-01 : f32
    %223 = vector.broadcast %cst_54 : f32 to vector<8x16xf32>
    %224 = arith.mulf %223, %222 : vector<8x16xf32>
    %225 = arith.subf %218, %221 : vector<8x16xf32>
    %cst_55 = arith.constant 5.000000e-01 : f32
    %226 = vector.broadcast %cst_55 : f32 to vector<8x16xf32>
    %227 = arith.mulf %226, %225 : vector<8x16xf32>
    %228 = arith.mulf %227, %227 : vector<8x16xf32>
    %229 = arith.mulf %219, %220 : vector<8x16xf32>
    %230 = arith.addf %228, %229 : vector<8x16xf32>
    %cst_56 = arith.constant 0.000000e+00 : f32
    %231 = vector.broadcast %cst_56 : f32 to vector<8x16xf32>
    %232 = arith.maximumf %230, %231 : vector<8x16xf32>
    %233 = math.sqrt %232 : vector<8x16xf32>
    %234 = math.exp %233 : vector<8x16xf32>
    %cst_57 = arith.constant 0.000000e+00 : f32
    %235 = vector.broadcast %cst_57 : f32 to vector<8x16xf32>
    %236 = arith.subf %235, %233 : vector<8x16xf32>
    %237 = math.exp %236 : vector<8x16xf32>
    %238 = arith.addf %234, %237 : vector<8x16xf32>
    %cst_58 = arith.constant 5.000000e-01 : f32
    %239 = vector.broadcast %cst_58 : f32 to vector<8x16xf32>
    %240 = arith.mulf %239, %238 : vector<8x16xf32>
    %cst_59 = arith.constant 1.000000e-03 : f32
    %241 = vector.broadcast %cst_59 : f32 to vector<8x16xf32>
    %242 = arith.cmpf ogt, %233, %241 : vector<8x16xf32>
    %243 = arith.subf %234, %237 : vector<8x16xf32>
    %cst_60 = arith.constant 5.000000e-01 : f32
    %244 = vector.broadcast %cst_60 : f32 to vector<8x16xf32>
    %245 = arith.mulf %244, %243 : vector<8x16xf32>
    %cst_61 = arith.constant 9.99999996E-13 : f32
    %246 = vector.broadcast %cst_61 : f32 to vector<8x16xf32>
    %247 = arith.maximumf %233, %246 : vector<8x16xf32>
    %248 = tpu.reciprocal %247 : vector<8x16xf32> -> vector<8x16xf32>
    %249 = arith.mulf %245, %248 : vector<8x16xf32>
    %cst_62 = arith.constant 6.000000e+00 : f32
    %250 = vector.broadcast %cst_62 : f32 to vector<8x16xf32>
    %251 = arith.divf %230, %250 : vector<8x16xf32>
    %cst_63 = arith.constant 1.000000e+00 : f32
    %252 = vector.broadcast %cst_63 : f32 to vector<8x16xf32>
    %253 = arith.addf %252, %251 : vector<8x16xf32>
    %254 = arith.select %242, %249, %253 : vector<8x16xi1>, vector<8x16xf32>
    %255 = math.exp %224 : vector<8x16xf32>
    %256 = arith.mulf %255, %240 : vector<8x16xf32>
    %257 = arith.mulf %255, %254 : vector<8x16xf32>
    %258 = arith.mulf %257, %227 : vector<8x16xf32>
    %259 = arith.addf %256, %258 : vector<8x16xf32>
    %260 = arith.mulf %257, %227 : vector<8x16xf32>
    %261 = arith.subf %256, %260 : vector<8x16xf32>
    %262 = arith.mulf %257, %219 : vector<8x16xf32>
    %263 = arith.mulf %257, %220 : vector<8x16xf32>
    %264 = arith.mulf %259, %196 : vector<8x16xf32>
    %265 = arith.mulf %262, %197 : vector<8x16xf32>
    %266 = arith.addf %264, %265 : vector<8x16xf32>
    %267 = arith.mulf %263, %196 : vector<8x16xf32>
    %268 = arith.mulf %261, %197 : vector<8x16xf32>
    %269 = arith.addf %267, %268 : vector<8x16xf32>
    %270 = arith.mulf %259, %259 : vector<8x16xf32>
    %271 = arith.mulf %270, %198 : vector<8x16xf32>
    %cst_64 = arith.constant 2.000000e+00 : f32
    %272 = vector.broadcast %cst_64 : f32 to vector<8x16xf32>
    %273 = arith.mulf %272, %259 : vector<8x16xf32>
    %274 = arith.mulf %273, %262 : vector<8x16xf32>
    %275 = arith.mulf %274, %200 : vector<8x16xf32>
    %276 = arith.addf %271, %275 : vector<8x16xf32>
    %277 = arith.mulf %262, %262 : vector<8x16xf32>
    %278 = arith.mulf %277, %199 : vector<8x16xf32>
    %279 = arith.addf %276, %278 : vector<8x16xf32>
    %280 = vector.broadcast %192 : vector<8x1xf32> to vector<8x16xf32>
    %281 = arith.mulf %38, %280 : vector<8x16xf32>
    %282 = arith.addf %279, %281 : vector<8x16xf32>
    %283 = arith.mulf %263, %263 : vector<8x16xf32>
    %284 = arith.mulf %283, %198 : vector<8x16xf32>
    %cst_65 = arith.constant 2.000000e+00 : f32
    %285 = vector.broadcast %cst_65 : f32 to vector<8x16xf32>
    %286 = arith.mulf %285, %263 : vector<8x16xf32>
    %287 = arith.mulf %286, %261 : vector<8x16xf32>
    %288 = arith.mulf %287, %200 : vector<8x16xf32>
    %289 = arith.addf %284, %288 : vector<8x16xf32>
    %290 = arith.mulf %261, %261 : vector<8x16xf32>
    %291 = arith.mulf %290, %199 : vector<8x16xf32>
    %292 = arith.addf %289, %291 : vector<8x16xf32>
    %293 = vector.broadcast %192 : vector<8x1xf32> to vector<8x16xf32>
    %294 = arith.mulf %39, %293 : vector<8x16xf32>
    %295 = arith.addf %292, %294 : vector<8x16xf32>
    %296 = arith.mulf %259, %263 : vector<8x16xf32>
    %297 = arith.mulf %296, %198 : vector<8x16xf32>
    %298 = arith.mulf %259, %261 : vector<8x16xf32>
    %299 = arith.mulf %262, %263 : vector<8x16xf32>
    %300 = arith.addf %298, %299 : vector<8x16xf32>
    %301 = arith.mulf %300, %200 : vector<8x16xf32>
    %302 = arith.addf %297, %301 : vector<8x16xf32>
    %303 = arith.mulf %262, %261 : vector<8x16xf32>
    %304 = arith.mulf %303, %199 : vector<8x16xf32>
    %305 = arith.addf %302, %304 : vector<8x16xf32>
    %306 = tpu.concatenate %266, %269, %282, %295, %305 in 1 : vector<8x16xf32>, vector<8x16xf32>, vector<8x16xf32>, vector<8x16xf32>, vector<8x16xf32> -> vector<8x80xf32>
    %307 = arith.addf %282, %190 : vector<8x16xf32>
    %308 = tpu.reciprocal %307 : vector<8x16xf32> -> vector<8x16xf32>
    %309 = arith.mulf %282, %308 : vector<8x16xf32>
    %310 = arith.mulf %305, %308 : vector<8x16xf32>
    %311 = arith.subf %188, %266 : vector<8x16xf32>
    %cst_66 = arith.constant 1.000000e+00 : f32
    %312 = vector.broadcast %cst_66 : f32 to vector<8x16xf32>
    %313 = arith.subf %312, %309 : vector<8x16xf32>
    %314 = arith.mulf %309, %311 : vector<8x16xf32>
    %315 = arith.addf %266, %314 : vector<8x16xf32>
    %316 = arith.mulf %310, %311 : vector<8x16xf32>
    %317 = arith.addf %269, %316 : vector<8x16xf32>
    %318 = arith.mulf %313, %282 : vector<8x16xf32>
    %319 = arith.mulf %310, %305 : vector<8x16xf32>
    %320 = arith.subf %295, %319 : vector<8x16xf32>
    %321 = arith.mulf %313, %305 : vector<8x16xf32>
    %322 = tpu.concatenate %315, %317, %318, %320, %321 in 1 : vector<8x16xf32>, vector<8x16xf32>, vector<8x16xf32>, vector<8x16xf32>, vector<8x16xf32> -> vector<8x80xf32>
    %323 = vector.shape_cast %195 : vector<8x1xi1> to vector<8x1xi1>
    %324 = vector.broadcast %323 : vector<8x1xi1> to vector<8x80xi1>
    %325 = arith.select %324, %322, %306 : vector<8x80xi1>, vector<8x80xf32>
    %326 = tpu.concatenate %309, %310 in 1 : vector<8x16xf32>, vector<8x16xf32> -> vector<8x32xf32>
    %cst_67 = arith.constant 0.000000e+00 : f32
    %327 = vector.shape_cast %195 : vector<8x1xi1> to vector<8x1xi1>
    %328 = vector.broadcast %327 : vector<8x1xi1> to vector<8x32xi1>
    %329 = vector.broadcast %cst_67 : f32 to vector<8x32xf32>
    %330 = arith.select %328, %326, %329 : vector<8x32xi1>, vector<8x32xf32>
    %331 = tpu.concatenate %325, %306, %330, %188, %190, %40 in 1 : vector<8x80xf32>, vector<8x80xf32>, vector<8x32xf32>, vector<8x16xf32>, vector<8x16xf32>, vector<8x32xf32> -> vector<8x256xf32>
    %c8_68 = arith.constant 8 : index
    %c0_69 = arith.constant 0 : index
    %332 = vector.load %arg2[%c8_68, %c0_69] : memref<64x256xf32, #tpu.memory_space<vmem>>, vector<8x256xf32>
    tpu.vector_store %arg2[%c8_68, %c0_69], %331 {strides = array<i32>} : memref<64x256xf32, #tpu.memory_space<vmem>>, vector<8x256xf32>,
    %c16 = arith.constant 16 : index
    %c0_70 = arith.constant 0 : index
    %333 = vector.load %arg4[%c16, %c0_70] : memref<64x32xf32, #tpu.memory_space<vmem>>, vector<8x32xf32>
    %334 = vector.extract_strided_slice %333 {offsets = [0, 0], sizes = [8, 16], strides = [1, 1]} : vector<8x32xf32> to vector<8x16xf32>
    %335 = vector.extract_strided_slice %333 {offsets = [0, 16], sizes = [8, 16], strides = [1, 1]} : vector<8x32xf32> to vector<8x16xf32>
    %336 = arith.mulf %335, %335 : vector<8x16xf32>
    %c16_71 = arith.constant 16 : index
    %c8_72 = arith.constant 8 : index
    %337 = vector.load %arg0[%c16_71, %c8_72] : memref<64x10xf32, #tpu.memory_space<vmem>>, vector<8x2xf32>
    %338 = vector.extract_strided_slice %337 {offsets = [0, 0], sizes = [8, 1], strides = [1, 1]} : vector<8x2xf32> to vector<8x1xf32>
    %339 = vector.extract_strided_slice %337 {offsets = [0, 1], sizes = [8, 1], strides = [1, 1]} : vector<8x2xf32> to vector<8x1xf32>
    %cst_73 = arith.constant 5.000000e-01 : f32
    %340 = vector.broadcast %cst_73 : f32 to vector<8x1xf32>
    %341 = arith.cmpf ogt, %339, %340 : vector<8x1xf32>
    %342 = vector.extract_strided_slice %325 {offsets = [0, 0], sizes = [8, 16], strides = [1, 1]} : vector<8x80xf32> to vector<8x16xf32>
    %343 = vector.extract_strided_slice %325 {offsets = [0, 16], sizes = [8, 16], strides = [1, 1]} : vector<8x80xf32> to vector<8x16xf32>
    %344 = vector.extract_strided_slice %325 {offsets = [0, 32], sizes = [8, 16], strides = [1, 1]} : vector<8x80xf32> to vector<8x16xf32>
    %345 = vector.extract_strided_slice %325 {offsets = [0, 48], sizes = [8, 16], strides = [1, 1]} : vector<8x80xf32> to vector<8x16xf32>
    %346 = vector.extract_strided_slice %325 {offsets = [0, 64], sizes = [8, 16], strides = [1, 1]} : vector<8x80xf32> to vector<8x16xf32>
    %347 = vector.extract_strided_slice %325 {offsets = [0, 0], sizes = [8, 32], strides = [1, 1]} : vector<8x80xf32> to vector<8x32xf32>
    %cst_74 = arith.constant dense<0.000000e+00> : vector<8x8xf32>
    %348 = tpu.matmul %347, %4, %cst_74 {dimension_numbers = #tpu.dot_dimension_numbers<[1], [0], [0], [1], [0, 0, 1, 1], [], []>} : vector<8x32xf32>, vector<32x8xf32>, vector<8x8xf32> -> vector<8x8xf32>
    %349 = vector.broadcast %5 : vector<1x8xf32> to vector<8x8xf32>
    %350 = arith.addf %348, %349 : vector<8x8xf32>
    %cst_75 = arith.constant dense<0xFF800000> : vector<8xf32>
    %351 = vector.multi_reduction <maximumf>, %350, %cst_75 [1] : vector<8x8xf32> to vector<8xf32>
    %352 = vector.shape_cast %351 : vector<8xf32> to vector<8x1xf32>
    %353 = vector.broadcast %352 : vector<8x1xf32> to vector<8x8xf32>
    %354 = arith.subf %350, %353 : vector<8x8xf32>
    %355 = math.exp %354 : vector<8x8xf32>
    %cst_76 = arith.constant dense<0.000000e+00> : vector<8xf32>
    %356 = vector.multi_reduction <add>, %355, %cst_76 [1] : vector<8x8xf32> to vector<8xf32>
    %357 = vector.shape_cast %356 : vector<8xf32> to vector<8x1xf32>
    %358 = tpu.reciprocal %357 : vector<8x1xf32> -> vector<8x1xf32>
    %359 = vector.broadcast %358 : vector<8x1xf32> to vector<8x8xf32>
    %360 = arith.mulf %355, %359 : vector<8x8xf32>
    %361 = vector.broadcast %338 : vector<8x1xf32> to vector<8x8xf32>
    %362 = arith.mulf %360, %361 : vector<8x8xf32>
    %cst_77 = arith.constant dense<0.000000e+00> : vector<8x64xf32>
    %363 = tpu.matmul %362, %6, %cst_77 {dimension_numbers = #tpu.dot_dimension_numbers<[1], [0], [0], [1], [0, 0, 1, 1], [], []>} : vector<8x8xf32>, vector<8x64xf32>, vector<8x64xf32> -> vector<8x64xf32>
    %364 = vector.extract_strided_slice %363 {offsets = [0, 0], sizes = [8, 16], strides = [1, 1]} : vector<8x64xf32> to vector<8x16xf32>
    %365 = vector.extract_strided_slice %363 {offsets = [0, 16], sizes = [8, 16], strides = [1, 1]} : vector<8x64xf32> to vector<8x16xf32>
    %366 = vector.extract_strided_slice %363 {offsets = [0, 32], sizes = [8, 16], strides = [1, 1]} : vector<8x64xf32> to vector<8x16xf32>
    %367 = vector.extract_strided_slice %363 {offsets = [0, 48], sizes = [8, 16], strides = [1, 1]} : vector<8x64xf32> to vector<8x16xf32>
    %368 = arith.addf %364, %367 : vector<8x16xf32>
    %cst_78 = arith.constant 5.000000e-01 : f32
    %369 = vector.broadcast %cst_78 : f32 to vector<8x16xf32>
    %370 = arith.mulf %369, %368 : vector<8x16xf32>
    %371 = arith.subf %364, %367 : vector<8x16xf32>
    %cst_79 = arith.constant 5.000000e-01 : f32
    %372 = vector.broadcast %cst_79 : f32 to vector<8x16xf32>
    %373 = arith.mulf %372, %371 : vector<8x16xf32>
    %374 = arith.mulf %373, %373 : vector<8x16xf32>
    %375 = arith.mulf %365, %366 : vector<8x16xf32>
    %376 = arith.addf %374, %375 : vector<8x16xf32>
    %cst_80 = arith.constant 0.000000e+00 : f32
    %377 = vector.broadcast %cst_80 : f32 to vector<8x16xf32>
    %378 = arith.maximumf %376, %377 : vector<8x16xf32>
    %379 = math.sqrt %378 : vector<8x16xf32>
    %380 = math.exp %379 : vector<8x16xf32>
    %cst_81 = arith.constant 0.000000e+00 : f32
    %381 = vector.broadcast %cst_81 : f32 to vector<8x16xf32>
    %382 = arith.subf %381, %379 : vector<8x16xf32>
    %383 = math.exp %382 : vector<8x16xf32>
    %384 = arith.addf %380, %383 : vector<8x16xf32>
    %cst_82 = arith.constant 5.000000e-01 : f32
    %385 = vector.broadcast %cst_82 : f32 to vector<8x16xf32>
    %386 = arith.mulf %385, %384 : vector<8x16xf32>
    %cst_83 = arith.constant 1.000000e-03 : f32
    %387 = vector.broadcast %cst_83 : f32 to vector<8x16xf32>
    %388 = arith.cmpf ogt, %379, %387 : vector<8x16xf32>
    %389 = arith.subf %380, %383 : vector<8x16xf32>
    %cst_84 = arith.constant 5.000000e-01 : f32
    %390 = vector.broadcast %cst_84 : f32 to vector<8x16xf32>
    %391 = arith.mulf %390, %389 : vector<8x16xf32>
    %cst_85 = arith.constant 9.99999996E-13 : f32
    %392 = vector.broadcast %cst_85 : f32 to vector<8x16xf32>
    %393 = arith.maximumf %379, %392 : vector<8x16xf32>
    %394 = tpu.reciprocal %393 : vector<8x16xf32> -> vector<8x16xf32>
    %395 = arith.mulf %391, %394 : vector<8x16xf32>
    %cst_86 = arith.constant 6.000000e+00 : f32
    %396 = vector.broadcast %cst_86 : f32 to vector<8x16xf32>
    %397 = arith.divf %376, %396 : vector<8x16xf32>
    %cst_87 = arith.constant 1.000000e+00 : f32
    %398 = vector.broadcast %cst_87 : f32 to vector<8x16xf32>
    %399 = arith.addf %398, %397 : vector<8x16xf32>
    %400 = arith.select %388, %395, %399 : vector<8x16xi1>, vector<8x16xf32>
    %401 = math.exp %370 : vector<8x16xf32>
    %402 = arith.mulf %401, %386 : vector<8x16xf32>
    %403 = arith.mulf %401, %400 : vector<8x16xf32>
    %404 = arith.mulf %403, %373 : vector<8x16xf32>
    %405 = arith.addf %402, %404 : vector<8x16xf32>
    %406 = arith.mulf %403, %373 : vector<8x16xf32>
    %407 = arith.subf %402, %406 : vector<8x16xf32>
    %408 = arith.mulf %403, %365 : vector<8x16xf32>
    %409 = arith.mulf %403, %366 : vector<8x16xf32>
    %410 = arith.mulf %405, %342 : vector<8x16xf32>
    %411 = arith.mulf %408, %343 : vector<8x16xf32>
    %412 = arith.addf %410, %411 : vector<8x16xf32>
    %413 = arith.mulf %409, %342 : vector<8x16xf32>
    %414 = arith.mulf %407, %343 : vector<8x16xf32>
    %415 = arith.addf %413, %414 : vector<8x16xf32>
    %416 = arith.mulf %405, %405 : vector<8x16xf32>
    %417 = arith.mulf %416, %344 : vector<8x16xf32>
    %cst_88 = arith.constant 2.000000e+00 : f32
    %418 = vector.broadcast %cst_88 : f32 to vector<8x16xf32>
    %419 = arith.mulf %418, %405 : vector<8x16xf32>
    %420 = arith.mulf %419, %408 : vector<8x16xf32>
    %421 = arith.mulf %420, %346 : vector<8x16xf32>
    %422 = arith.addf %417, %421 : vector<8x16xf32>
    %423 = arith.mulf %408, %408 : vector<8x16xf32>
    %424 = arith.mulf %423, %345 : vector<8x16xf32>
    %425 = arith.addf %422, %424 : vector<8x16xf32>
    %426 = vector.broadcast %338 : vector<8x1xf32> to vector<8x16xf32>
    %427 = arith.mulf %38, %426 : vector<8x16xf32>
    %428 = arith.addf %425, %427 : vector<8x16xf32>
    %429 = arith.mulf %409, %409 : vector<8x16xf32>
    %430 = arith.mulf %429, %344 : vector<8x16xf32>
    %cst_89 = arith.constant 2.000000e+00 : f32
    %431 = vector.broadcast %cst_89 : f32 to vector<8x16xf32>
    %432 = arith.mulf %431, %409 : vector<8x16xf32>
    %433 = arith.mulf %432, %407 : vector<8x16xf32>
    %434 = arith.mulf %433, %346 : vector<8x16xf32>
    %435 = arith.addf %430, %434 : vector<8x16xf32>
    %436 = arith.mulf %407, %407 : vector<8x16xf32>
    %437 = arith.mulf %436, %345 : vector<8x16xf32>
    %438 = arith.addf %435, %437 : vector<8x16xf32>
    %439 = vector.broadcast %338 : vector<8x1xf32> to vector<8x16xf32>
    %440 = arith.mulf %39, %439 : vector<8x16xf32>
    %441 = arith.addf %438, %440 : vector<8x16xf32>
    %442 = arith.mulf %405, %409 : vector<8x16xf32>
    %443 = arith.mulf %442, %344 : vector<8x16xf32>
    %444 = arith.mulf %405, %407 : vector<8x16xf32>
    %445 = arith.mulf %408, %409 : vector<8x16xf32>
    %446 = arith.addf %444, %445 : vector<8x16xf32>
    %447 = arith.mulf %446, %346 : vector<8x16xf32>
    %448 = arith.addf %443, %447 : vector<8x16xf32>
    %449 = arith.mulf %408, %407 : vector<8x16xf32>
    %450 = arith.mulf %449, %345 : vector<8x16xf32>
    %451 = arith.addf %448, %450 : vector<8x16xf32>
    %452 = tpu.concatenate %412, %415, %428, %441, %451 in 1 : vector<8x16xf32>, vector<8x16xf32>, vector<8x16xf32>, vector<8x16xf32>, vector<8x16xf32> -> vector<8x80xf32>
    %453 = arith.addf %428, %336 : vector<8x16xf32>
    %454 = tpu.reciprocal %453 : vector<8x16xf32> -> vector<8x16xf32>
    %455 = arith.mulf %428, %454 : vector<8x16xf32>
    %456 = arith.mulf %451, %454 : vector<8x16xf32>
    %457 = arith.subf %334, %412 : vector<8x16xf32>
    %cst_90 = arith.constant 1.000000e+00 : f32
    %458 = vector.broadcast %cst_90 : f32 to vector<8x16xf32>
    %459 = arith.subf %458, %455 : vector<8x16xf32>
    %460 = arith.mulf %455, %457 : vector<8x16xf32>
    %461 = arith.addf %412, %460 : vector<8x16xf32>
    %462 = arith.mulf %456, %457 : vector<8x16xf32>
    %463 = arith.addf %415, %462 : vector<8x16xf32>
    %464 = arith.mulf %459, %428 : vector<8x16xf32>
    %465 = arith.mulf %456, %451 : vector<8x16xf32>
    %466 = arith.subf %441, %465 : vector<8x16xf32>
    %467 = arith.mulf %459, %451 : vector<8x16xf32>
    %468 = tpu.concatenate %461, %463, %464, %466, %467 in 1 : vector<8x16xf32>, vector<8x16xf32>, vector<8x16xf32>, vector<8x16xf32>, vector<8x16xf32> -> vector<8x80xf32>
    %469 = vector.shape_cast %341 : vector<8x1xi1> to vector<8x1xi1>
    %470 = vector.broadcast %469 : vector<8x1xi1> to vector<8x80xi1>
    %471 = arith.select %470, %468, %452 : vector<8x80xi1>, vector<8x80xf32>
    %472 = tpu.concatenate %455, %456 in 1 : vector<8x16xf32>, vector<8x16xf32> -> vector<8x32xf32>
    %cst_91 = arith.constant 0.000000e+00 : f32
    %473 = vector.shape_cast %341 : vector<8x1xi1> to vector<8x1xi1>
    %474 = vector.broadcast %473 : vector<8x1xi1> to vector<8x32xi1>
    %475 = vector.broadcast %cst_91 : f32 to vector<8x32xf32>
    %476 = arith.select %474, %472, %475 : vector<8x32xi1>, vector<8x32xf32>
    %477 = tpu.concatenate %471, %452, %476, %334, %336, %40 in 1 : vector<8x80xf32>, vector<8x80xf32>, vector<8x32xf32>, vector<8x16xf32>, vector<8x16xf32>, vector<8x32xf32> -> vector<8x256xf32>
    %c16_92 = arith.constant 16 : index
    %c0_93 = arith.constant 0 : index
    %478 = vector.load %arg2[%c16_92, %c0_93] : memref<64x256xf32, #tpu.memory_space<vmem>>, vector<8x256xf32>
    tpu.vector_store %arg2[%c16_92, %c0_93], %477 {strides = array<i32>} : memref<64x256xf32, #tpu.memory_space<vmem>>, vector<8x256xf32>,
    %c24 = arith.constant 24 : index
    %c0_94 = arith.constant 0 : index
    %479 = vector.load %arg4[%c24, %c0_94] : memref<64x32xf32, #tpu.memory_space<vmem>>, vector<8x32xf32>
    %480 = vector.extract_strided_slice %479 {offsets = [0, 0], sizes = [8, 16], strides = [1, 1]} : vector<8x32xf32> to vector<8x16xf32>
    %481 = vector.extract_strided_slice %479 {offsets = [0, 16], sizes = [8, 16], strides = [1, 1]} : vector<8x32xf32> to vector<8x16xf32>
    %482 = arith.mulf %481, %481 : vector<8x16xf32>
    %c24_95 = arith.constant 24 : index
    %c8_96 = arith.constant 8 : index
    %483 = vector.load %arg0[%c24_95, %c8_96] : memref<64x10xf32, #tpu.memory_space<vmem>>, vector<8x2xf32>
    %484 = vector.extract_strided_slice %483 {offsets = [0, 0], sizes = [8, 1], strides = [1, 1]} : vector<8x2xf32> to vector<8x1xf32>
    %485 = vector.extract_strided_slice %483 {offsets = [0, 1], sizes = [8, 1], strides = [1, 1]} : vector<8x2xf32> to vector<8x1xf32>
    %cst_97 = arith.constant 5.000000e-01 : f32
    %486 = vector.broadcast %cst_97 : f32 to vector<8x1xf32>
    %487 = arith.cmpf ogt, %485, %486 : vector<8x1xf32>
    %488 = vector.extract_strided_slice %471 {offsets = [0, 0], sizes = [8, 16], strides = [1, 1]} : vector<8x80xf32> to vector<8x16xf32>
    %489 = vector.extract_strided_slice %471 {offsets = [0, 16], sizes = [8, 16], strides = [1, 1]} : vector<8x80xf32> to vector<8x16xf32>
    %490 = vector.extract_strided_slice %471 {offsets = [0, 32], sizes = [8, 16], strides = [1, 1]} : vector<8x80xf32> to vector<8x16xf32>
    %491 = vector.extract_strided_slice %471 {offsets = [0, 48], sizes = [8, 16], strides = [1, 1]} : vector<8x80xf32> to vector<8x16xf32>
    %492 = vector.extract_strided_slice %471 {offsets = [0, 64], sizes = [8, 16], strides = [1, 1]} : vector<8x80xf32> to vector<8x16xf32>
    %493 = vector.extract_strided_slice %471 {offsets = [0, 0], sizes = [8, 32], strides = [1, 1]} : vector<8x80xf32> to vector<8x32xf32>
    %cst_98 = arith.constant dense<0.000000e+00> : vector<8x8xf32>
    %494 = tpu.matmul %493, %4, %cst_98 {dimension_numbers = #tpu.dot_dimension_numbers<[1], [0], [0], [1], [0, 0, 1, 1], [], []>} : vector<8x32xf32>, vector<32x8xf32>, vector<8x8xf32> -> vector<8x8xf32>
    %495 = vector.broadcast %5 : vector<1x8xf32> to vector<8x8xf32>
    %496 = arith.addf %494, %495 : vector<8x8xf32>
    %cst_99 = arith.constant dense<0xFF800000> : vector<8xf32>
    %497 = vector.multi_reduction <maximumf>, %496, %cst_99 [1] : vector<8x8xf32> to vector<8xf32>
    %498 = vector.shape_cast %497 : vector<8xf32> to vector<8x1xf32>
    %499 = vector.broadcast %498 : vector<8x1xf32> to vector<8x8xf32>
    %500 = arith.subf %496, %499 : vector<8x8xf32>
    %501 = math.exp %500 : vector<8x8xf32>
    %cst_100 = arith.constant dense<0.000000e+00> : vector<8xf32>
    %502 = vector.multi_reduction <add>, %501, %cst_100 [1] : vector<8x8xf32> to vector<8xf32>
    %503 = vector.shape_cast %502 : vector<8xf32> to vector<8x1xf32>
    %504 = tpu.reciprocal %503 : vector<8x1xf32> -> vector<8x1xf32>
    %505 = vector.broadcast %504 : vector<8x1xf32> to vector<8x8xf32>
    %506 = arith.mulf %501, %505 : vector<8x8xf32>
    %507 = vector.broadcast %484 : vector<8x1xf32> to vector<8x8xf32>
    %508 = arith.mulf %506, %507 : vector<8x8xf32>
    %cst_101 = arith.constant dense<0.000000e+00> : vector<8x64xf32>
    %509 = tpu.matmul %508, %6, %cst_101 {dimension_numbers = #tpu.dot_dimension_numbers<[1], [0], [0], [1], [0, 0, 1, 1], [], []>} : vector<8x8xf32>, vector<8x64xf32>, vector<8x64xf32> -> vector<8x64xf32>
    %510 = vector.extract_strided_slice %509 {offsets = [0, 0], sizes = [8, 16], strides = [1, 1]} : vector<8x64xf32> to vector<8x16xf32>
    %511 = vector.extract_strided_slice %509 {offsets = [0, 16], sizes = [8, 16], strides = [1, 1]} : vector<8x64xf32> to vector<8x16xf32>
    %512 = vector.extract_strided_slice %509 {offsets = [0, 32], sizes = [8, 16], strides = [1, 1]} : vector<8x64xf32> to vector<8x16xf32>
    %513 = vector.extract_strided_slice %509 {offsets = [0, 48], sizes = [8, 16], strides = [1, 1]} : vector<8x64xf32> to vector<8x16xf32>
    %514 = arith.addf %510, %513 : vector<8x16xf32>
    %cst_102 = arith.constant 5.000000e-01 : f32
    %515 = vector.broadcast %cst_102 : f32 to vector<8x16xf32>
    %516 = arith.mulf %515, %514 : vector<8x16xf32>
    %517 = arith.subf %510, %513 : vector<8x16xf32>
    %cst_103 = arith.constant 5.000000e-01 : f32
    %518 = vector.broadcast %cst_103 : f32 to vector<8x16xf32>
    %519 = arith.mulf %518, %517 : vector<8x16xf32>
    %520 = arith.mulf %519, %519 : vector<8x16xf32>
    %521 = arith.mulf %511, %512 : vector<8x16xf32>
    %522 = arith.addf %520, %521 : vector<8x16xf32>
    %cst_104 = arith.constant 0.000000e+00 : f32
    %523 = vector.broadcast %cst_104 : f32 to vector<8x16xf32>
    %524 = arith.maximumf %522, %523 : vector<8x16xf32>
    %525 = math.sqrt %524 : vector<8x16xf32>
    %526 = math.exp %525 : vector<8x16xf32>
    %cst_105 = arith.constant 0.000000e+00 : f32
    %527 = vector.broadcast %cst_105 : f32 to vector<8x16xf32>
    %528 = arith.subf %527, %525 : vector<8x16xf32>
    %529 = math.exp %528 : vector<8x16xf32>
    %530 = arith.addf %526, %529 : vector<8x16xf32>
    %cst_106 = arith.constant 5.000000e-01 : f32
    %531 = vector.broadcast %cst_106 : f32 to vector<8x16xf32>
    %532 = arith.mulf %531, %530 : vector<8x16xf32>
    %cst_107 = arith.constant 1.000000e-03 : f32
    %533 = vector.broadcast %cst_107 : f32 to vector<8x16xf32>
    %534 = arith.cmpf ogt, %525, %533 : vector<8x16xf32>
    %535 = arith.subf %526, %529 : vector<8x16xf32>
    %cst_108 = arith.constant 5.000000e-01 : f32
    %536 = vector.broadcast %cst_108 : f32 to vector<8x16xf32>
    %537 = arith.mulf %536, %535 : vector<8x16xf32>
    %cst_109 = arith.constant 9.99999996E-13 : f32
    %538 = vector.broadcast %cst_109 : f32 to vector<8x16xf32>
    %539 = arith.maximumf %525, %538 : vector<8x16xf32>
    %540 = tpu.reciprocal %539 : vector<8x16xf32> -> vector<8x16xf32>
    %541 = arith.mulf %537, %540 : vector<8x16xf32>
    %cst_110 = arith.constant 6.000000e+00 : f32
    %542 = vector.broadcast %cst_110 : f32 to vector<8x16xf32>
    %543 = arith.divf %522, %542 : vector<8x16xf32>
    %cst_111 = arith.constant 1.000000e+00 : f32
    %544 = vector.broadcast %cst_111 : f32 to vector<8x16xf32>
    %545 = arith.addf %544, %543 : vector<8x16xf32>
    %546 = arith.select %534, %541, %545 : vector<8x16xi1>, vector<8x16xf32>
    %547 = math.exp %516 : vector<8x16xf32>
    %548 = arith.mulf %547, %532 : vector<8x16xf32>
    %549 = arith.mulf %547, %546 : vector<8x16xf32>
    %550 = arith.mulf %549, %519 : vector<8x16xf32>
    %551 = arith.addf %548, %550 : vector<8x16xf32>
    %552 = arith.mulf %549, %519 : vector<8x16xf32>
    %553 = arith.subf %548, %552 : vector<8x16xf32>
    %554 = arith.mulf %549, %511 : vector<8x16xf32>
    %555 = arith.mulf %549, %512 : vector<8x16xf32>
    %556 = arith.mulf %551, %488 : vector<8x16xf32>
    %557 = arith.mulf %554, %489 : vector<8x16xf32>
    %558 = arith.addf %556, %557 : vector<8x16xf32>
    %559 = arith.mulf %555, %488 : vector<8x16xf32>
    %560 = arith.mulf %553, %489 : vector<8x16xf32>
    %561 = arith.addf %559, %560 : vector<8x16xf32>
    %562 = arith.mulf %551, %551 : vector<8x16xf32>
    %563 = arith.mulf %562, %490 : vector<8x16xf32>
    %cst_112 = arith.constant 2.000000e+00 : f32
    %564 = vector.broadcast %cst_112 : f32 to vector<8x16xf32>
    %565 = arith.mulf %564, %551 : vector<8x16xf32>
    %566 = arith.mulf %565, %554 : vector<8x16xf32>
    %567 = arith.mulf %566, %492 : vector<8x16xf32>
    %568 = arith.addf %563, %567 : vector<8x16xf32>
    %569 = arith.mulf %554, %554 : vector<8x16xf32>
    %570 = arith.mulf %569, %491 : vector<8x16xf32>
    %571 = arith.addf %568, %570 : vector<8x16xf32>
    %572 = vector.broadcast %484 : vector<8x1xf32> to vector<8x16xf32>
    %573 = arith.mulf %38, %572 : vector<8x16xf32>
    %574 = arith.addf %571, %573 : vector<8x16xf32>
    %575 = arith.mulf %555, %555 : vector<8x16xf32>
    %576 = arith.mulf %575, %490 : vector<8x16xf32>
    %cst_113 = arith.constant 2.000000e+00 : f32
    %577 = vector.broadcast %cst_113 : f32 to vector<8x16xf32>
    %578 = arith.mulf %577, %555 : vector<8x16xf32>
    %579 = arith.mulf %578, %553 : vector<8x16xf32>
    %580 = arith.mulf %579, %492 : vector<8x16xf32>
    %581 = arith.addf %576, %580 : vector<8x16xf32>
    %582 = arith.mulf %553, %553 : vector<8x16xf32>
    %583 = arith.mulf %582, %491 : vector<8x16xf32>
    %584 = arith.addf %581, %583 : vector<8x16xf32>
    %585 = vector.broadcast %484 : vector<8x1xf32> to vector<8x16xf32>
    %586 = arith.mulf %39, %585 : vector<8x16xf32>
    %587 = arith.addf %584, %586 : vector<8x16xf32>
    %588 = arith.mulf %551, %555 : vector<8x16xf32>
    %589 = arith.mulf %588, %490 : vector<8x16xf32>
    %590 = arith.mulf %551, %553 : vector<8x16xf32>
    %591 = arith.mulf %554, %555 : vector<8x16xf32>
    %592 = arith.addf %590, %591 : vector<8x16xf32>
    %593 = arith.mulf %592, %492 : vector<8x16xf32>
    %594 = arith.addf %589, %593 : vector<8x16xf32>
    %595 = arith.mulf %554, %553 : vector<8x16xf32>
    %596 = arith.mulf %595, %491 : vector<8x16xf32>
    %597 = arith.addf %594, %596 : vector<8x16xf32>
    %598 = tpu.concatenate %558, %561, %574, %587, %597 in 1 : vector<8x16xf32>, vector<8x16xf32>, vector<8x16xf32>, vector<8x16xf32>, vector<8x16xf32> -> vector<8x80xf32>
    %599 = arith.addf %574, %482 : vector<8x16xf32>
    %600 = tpu.reciprocal %599 : vector<8x16xf32> -> vector<8x16xf32>
    %601 = arith.mulf %574, %600 : vector<8x16xf32>
    %602 = arith.mulf %597, %600 : vector<8x16xf32>
    %603 = arith.subf %480, %558 : vector<8x16xf32>
    %cst_114 = arith.constant 1.000000e+00 : f32
    %604 = vector.broadcast %cst_114 : f32 to vector<8x16xf32>
    %605 = arith.subf %604, %601 : vector<8x16xf32>
    %606 = arith.mulf %601, %603 : vector<8x16xf32>
    %607 = arith.addf %558, %606 : vector<8x16xf32>
    %608 = arith.mulf %602, %603 : vector<8x16xf32>
    %609 = arith.addf %561, %608 : vector<8x16xf32>
    %610 = arith.mulf %605, %574 : vector<8x16xf32>
    %611 = arith.mulf %602, %597 : vector<8x16xf32>
    %612 = arith.subf %587, %611 : vector<8x16xf32>
    %613 = arith.mulf %605, %597 : vector<8x16xf32>
    %614 = tpu.concatenate %607, %609, %610, %612, %613 in 1 : vector<8x16xf32>, vector<8x16xf32>, vector<8x16xf32>, vector<8x16xf32>, vector<8x16xf32> -> vector<8x80xf32>
    %615 = vector.shape_cast %487 : vector<8x1xi1> to vector<8x1xi1>
    %616 = vector.broadcast %615 : vector<8x1xi1> to vector<8x80xi1>
    %617 = arith.select %616, %614, %598 : vector<8x80xi1>, vector<8x80xf32>
    %618 = tpu.concatenate %601, %602 in 1 : vector<8x16xf32>, vector<8x16xf32> -> vector<8x32xf32>
    %cst_115 = arith.constant 0.000000e+00 : f32
    %619 = vector.shape_cast %487 : vector<8x1xi1> to vector<8x1xi1>
    %620 = vector.broadcast %619 : vector<8x1xi1> to vector<8x32xi1>
    %621 = vector.broadcast %cst_115 : f32 to vector<8x32xf32>
    %622 = arith.select %620, %618, %621 : vector<8x32xi1>, vector<8x32xf32>
    %623 = tpu.concatenate %617, %598, %622, %480, %482, %40 in 1 : vector<8x80xf32>, vector<8x80xf32>, vector<8x32xf32>, vector<8x16xf32>, vector<8x16xf32>, vector<8x32xf32> -> vector<8x256xf32>
    %c24_116 = arith.constant 24 : index
    %c0_117 = arith.constant 0 : index
    %624 = vector.load %arg2[%c24_116, %c0_117] : memref<64x256xf32, #tpu.memory_space<vmem>>, vector<8x256xf32>
    tpu.vector_store %arg2[%c24_116, %c0_117], %623 {strides = array<i32>} : memref<64x256xf32, #tpu.memory_space<vmem>>, vector<8x256xf32>,
    %c32 = arith.constant 32 : index
    %c0_118 = arith.constant 0 : index
    %625 = vector.load %arg4[%c32, %c0_118] : memref<64x32xf32, #tpu.memory_space<vmem>>, vector<8x32xf32>
    %626 = vector.extract_strided_slice %625 {offsets = [0, 0], sizes = [8, 16], strides = [1, 1]} : vector<8x32xf32> to vector<8x16xf32>
    %627 = vector.extract_strided_slice %625 {offsets = [0, 16], sizes = [8, 16], strides = [1, 1]} : vector<8x32xf32> to vector<8x16xf32>
    %628 = arith.mulf %627, %627 : vector<8x16xf32>
    %c32_119 = arith.constant 32 : index
    %c8_120 = arith.constant 8 : index
    %629 = vector.load %arg0[%c32_119, %c8_120] : memref<64x10xf32, #tpu.memory_space<vmem>>, vector<8x2xf32>
    %630 = vector.extract_strided_slice %629 {offsets = [0, 0], sizes = [8, 1], strides = [1, 1]} : vector<8x2xf32> to vector<8x1xf32>
    %631 = vector.extract_strided_slice %629 {offsets = [0, 1], sizes = [8, 1], strides = [1, 1]} : vector<8x2xf32> to vector<8x1xf32>
    %cst_121 = arith.constant 5.000000e-01 : f32
    %632 = vector.broadcast %cst_121 : f32 to vector<8x1xf32>
    %633 = arith.cmpf ogt, %631, %632 : vector<8x1xf32>
    %634 = vector.extract_strided_slice %617 {offsets = [0, 0], sizes = [8, 16], strides = [1, 1]} : vector<8x80xf32> to vector<8x16xf32>
    %635 = vector.extract_strided_slice %617 {offsets = [0, 16], sizes = [8, 16], strides = [1, 1]} : vector<8x80xf32> to vector<8x16xf32>
    %636 = vector.extract_strided_slice %617 {offsets = [0, 32], sizes = [8, 16], strides = [1, 1]} : vector<8x80xf32> to vector<8x16xf32>
    %637 = vector.extract_strided_slice %617 {offsets = [0, 48], sizes = [8, 16], strides = [1, 1]} : vector<8x80xf32> to vector<8x16xf32>
    %638 = vector.extract_strided_slice %617 {offsets = [0, 64], sizes = [8, 16], strides = [1, 1]} : vector<8x80xf32> to vector<8x16xf32>
    %639 = vector.extract_strided_slice %617 {offsets = [0, 0], sizes = [8, 32], strides = [1, 1]} : vector<8x80xf32> to vector<8x32xf32>
    %cst_122 = arith.constant dense<0.000000e+00> : vector<8x8xf32>
    %640 = tpu.matmul %639, %4, %cst_122 {dimension_numbers = #tpu.dot_dimension_numbers<[1], [0], [0], [1], [0, 0, 1, 1], [], []>} : vector<8x32xf32>, vector<32x8xf32>, vector<8x8xf32> -> vector<8x8xf32>
    %641 = vector.broadcast %5 : vector<1x8xf32> to vector<8x8xf32>
    %642 = arith.addf %640, %641 : vector<8x8xf32>
    %cst_123 = arith.constant dense<0xFF800000> : vector<8xf32>
    %643 = vector.multi_reduction <maximumf>, %642, %cst_123 [1] : vector<8x8xf32> to vector<8xf32>
    %644 = vector.shape_cast %643 : vector<8xf32> to vector<8x1xf32>
    %645 = vector.broadcast %644 : vector<8x1xf32> to vector<8x8xf32>
    %646 = arith.subf %642, %645 : vector<8x8xf32>
    %647 = math.exp %646 : vector<8x8xf32>
    %cst_124 = arith.constant dense<0.000000e+00> : vector<8xf32>
    %648 = vector.multi_reduction <add>, %647, %cst_124 [1] : vector<8x8xf32> to vector<8xf32>
    %649 = vector.shape_cast %648 : vector<8xf32> to vector<8x1xf32>
    %650 = tpu.reciprocal %649 : vector<8x1xf32> -> vector<8x1xf32>
    %651 = vector.broadcast %650 : vector<8x1xf32> to vector<8x8xf32>
    %652 = arith.mulf %647, %651 : vector<8x8xf32>
    %653 = vector.broadcast %630 : vector<8x1xf32> to vector<8x8xf32>
    %654 = arith.mulf %652, %653 : vector<8x8xf32>
    %cst_125 = arith.constant dense<0.000000e+00> : vector<8x64xf32>
    %655 = tpu.matmul %654, %6, %cst_125 {dimension_numbers = #tpu.dot_dimension_numbers<[1], [0], [0], [1], [0, 0, 1, 1], [], []>} : vector<8x8xf32>, vector<8x64xf32>, vector<8x64xf32> -> vector<8x64xf32>
    %656 = vector.extract_strided_slice %655 {offsets = [0, 0], sizes = [8, 16], strides = [1, 1]} : vector<8x64xf32> to vector<8x16xf32>
    %657 = vector.extract_strided_slice %655 {offsets = [0, 16], sizes = [8, 16], strides = [1, 1]} : vector<8x64xf32> to vector<8x16xf32>
    %658 = vector.extract_strided_slice %655 {offsets = [0, 32], sizes = [8, 16], strides = [1, 1]} : vector<8x64xf32> to vector<8x16xf32>
    %659 = vector.extract_strided_slice %655 {offsets = [0, 48], sizes = [8, 16], strides = [1, 1]} : vector<8x64xf32> to vector<8x16xf32>
    %660 = arith.addf %656, %659 : vector<8x16xf32>
    %cst_126 = arith.constant 5.000000e-01 : f32
    %661 = vector.broadcast %cst_126 : f32 to vector<8x16xf32>
    %662 = arith.mulf %661, %660 : vector<8x16xf32>
    %663 = arith.subf %656, %659 : vector<8x16xf32>
    %cst_127 = arith.constant 5.000000e-01 : f32
    %664 = vector.broadcast %cst_127 : f32 to vector<8x16xf32>
    %665 = arith.mulf %664, %663 : vector<8x16xf32>
    %666 = arith.mulf %665, %665 : vector<8x16xf32>
    %667 = arith.mulf %657, %658 : vector<8x16xf32>
    %668 = arith.addf %666, %667 : vector<8x16xf32>
    %cst_128 = arith.constant 0.000000e+00 : f32
    %669 = vector.broadcast %cst_128 : f32 to vector<8x16xf32>
    %670 = arith.maximumf %668, %669 : vector<8x16xf32>
    %671 = math.sqrt %670 : vector<8x16xf32>
    %672 = math.exp %671 : vector<8x16xf32>
    %cst_129 = arith.constant 0.000000e+00 : f32
    %673 = vector.broadcast %cst_129 : f32 to vector<8x16xf32>
    %674 = arith.subf %673, %671 : vector<8x16xf32>
    %675 = math.exp %674 : vector<8x16xf32>
    %676 = arith.addf %672, %675 : vector<8x16xf32>
    %cst_130 = arith.constant 5.000000e-01 : f32
    %677 = vector.broadcast %cst_130 : f32 to vector<8x16xf32>
    %678 = arith.mulf %677, %676 : vector<8x16xf32>
    %cst_131 = arith.constant 1.000000e-03 : f32
    %679 = vector.broadcast %cst_131 : f32 to vector<8x16xf32>
    %680 = arith.cmpf ogt, %671, %679 : vector<8x16xf32>
    %681 = arith.subf %672, %675 : vector<8x16xf32>
    %cst_132 = arith.constant 5.000000e-01 : f32
    %682 = vector.broadcast %cst_132 : f32 to vector<8x16xf32>
    %683 = arith.mulf %682, %681 : vector<8x16xf32>
    %cst_133 = arith.constant 9.99999996E-13 : f32
    %684 = vector.broadcast %cst_133 : f32 to vector<8x16xf32>
    %685 = arith.maximumf %671, %684 : vector<8x16xf32>
    %686 = tpu.reciprocal %685 : vector<8x16xf32> -> vector<8x16xf32>
    %687 = arith.mulf %683, %686 : vector<8x16xf32>
    %cst_134 = arith.constant 6.000000e+00 : f32
    %688 = vector.broadcast %cst_134 : f32 to vector<8x16xf32>
    %689 = arith.divf %668, %688 : vector<8x16xf32>
    %cst_135 = arith.constant 1.000000e+00 : f32
    %690 = vector.broadcast %cst_135 : f32 to vector<8x16xf32>
    %691 = arith.addf %690, %689 : vector<8x16xf32>
    %692 = arith.select %680, %687, %691 : vector<8x16xi1>, vector<8x16xf32>
    %693 = math.exp %662 : vector<8x16xf32>
    %694 = arith.mulf %693, %678 : vector<8x16xf32>
    %695 = arith.mulf %693, %692 : vector<8x16xf32>
    %696 = arith.mulf %695, %665 : vector<8x16xf32>
    %697 = arith.addf %694, %696 : vector<8x16xf32>
    %698 = arith.mulf %695, %665 : vector<8x16xf32>
    %699 = arith.subf %694, %698 : vector<8x16xf32>
    %700 = arith.mulf %695, %657 : vector<8x16xf32>
    %701 = arith.mulf %695, %658 : vector<8x16xf32>
    %702 = arith.mulf %697, %634 : vector<8x16xf32>
    %703 = arith.mulf %700, %635 : vector<8x16xf32>
    %704 = arith.addf %702, %703 : vector<8x16xf32>
    %705 = arith.mulf %701, %634 : vector<8x16xf32>
    %706 = arith.mulf %699, %635 : vector<8x16xf32>
    %707 = arith.addf %705, %706 : vector<8x16xf32>
    %708 = arith.mulf %697, %697 : vector<8x16xf32>
    %709 = arith.mulf %708, %636 : vector<8x16xf32>
    %cst_136 = arith.constant 2.000000e+00 : f32
    %710 = vector.broadcast %cst_136 : f32 to vector<8x16xf32>
    %711 = arith.mulf %710, %697 : vector<8x16xf32>
    %712 = arith.mulf %711, %700 : vector<8x16xf32>
    %713 = arith.mulf %712, %638 : vector<8x16xf32>
    %714 = arith.addf %709, %713 : vector<8x16xf32>
    %715 = arith.mulf %700, %700 : vector<8x16xf32>
    %716 = arith.mulf %715, %637 : vector<8x16xf32>
    %717 = arith.addf %714, %716 : vector<8x16xf32>
    %718 = vector.broadcast %630 : vector<8x1xf32> to vector<8x16xf32>
    %719 = arith.mulf %38, %718 : vector<8x16xf32>
    %720 = arith.addf %717, %719 : vector<8x16xf32>
    %721 = arith.mulf %701, %701 : vector<8x16xf32>
    %722 = arith.mulf %721, %636 : vector<8x16xf32>
    %cst_137 = arith.constant 2.000000e+00 : f32
    %723 = vector.broadcast %cst_137 : f32 to vector<8x16xf32>
    %724 = arith.mulf %723, %701 : vector<8x16xf32>
    %725 = arith.mulf %724, %699 : vector<8x16xf32>
    %726 = arith.mulf %725, %638 : vector<8x16xf32>
    %727 = arith.addf %722, %726 : vector<8x16xf32>
    %728 = arith.mulf %699, %699 : vector<8x16xf32>
    %729 = arith.mulf %728, %637 : vector<8x16xf32>
    %730 = arith.addf %727, %729 : vector<8x16xf32>
    %731 = vector.broadcast %630 : vector<8x1xf32> to vector<8x16xf32>
    %732 = arith.mulf %39, %731 : vector<8x16xf32>
    %733 = arith.addf %730, %732 : vector<8x16xf32>
    %734 = arith.mulf %697, %701 : vector<8x16xf32>
    %735 = arith.mulf %734, %636 : vector<8x16xf32>
    %736 = arith.mulf %697, %699 : vector<8x16xf32>
    %737 = arith.mulf %700, %701 : vector<8x16xf32>
    %738 = arith.addf %736, %737 : vector<8x16xf32>
    %739 = arith.mulf %738, %638 : vector<8x16xf32>
    %740 = arith.addf %735, %739 : vector<8x16xf32>
    %741 = arith.mulf %700, %699 : vector<8x16xf32>
    %742 = arith.mulf %741, %637 : vector<8x16xf32>
    %743 = arith.addf %740, %742 : vector<8x16xf32>
    %744 = tpu.concatenate %704, %707, %720, %733, %743 in 1 : vector<8x16xf32>, vector<8x16xf32>, vector<8x16xf32>, vector<8x16xf32>, vector<8x16xf32> -> vector<8x80xf32>
    %745 = arith.addf %720, %628 : vector<8x16xf32>
    %746 = tpu.reciprocal %745 : vector<8x16xf32> -> vector<8x16xf32>
    %747 = arith.mulf %720, %746 : vector<8x16xf32>
    %748 = arith.mulf %743, %746 : vector<8x16xf32>
    %749 = arith.subf %626, %704 : vector<8x16xf32>
    %cst_138 = arith.constant 1.000000e+00 : f32
    %750 = vector.broadcast %cst_138 : f32 to vector<8x16xf32>
    %751 = arith.subf %750, %747 : vector<8x16xf32>
    %752 = arith.mulf %747, %749 : vector<8x16xf32>
    %753 = arith.addf %704, %752 : vector<8x16xf32>
    %754 = arith.mulf %748, %749 : vector<8x16xf32>
    %755 = arith.addf %707, %754 : vector<8x16xf32>
    %756 = arith.mulf %751, %720 : vector<8x16xf32>
    %757 = arith.mulf %748, %743 : vector<8x16xf32>
    %758 = arith.subf %733, %757 : vector<8x16xf32>
    %759 = arith.mulf %751, %743 : vector<8x16xf32>
    %760 = tpu.concatenate %753, %755, %756, %758, %759 in 1 : vector<8x16xf32>, vector<8x16xf32>, vector<8x16xf32>, vector<8x16xf32>, vector<8x16xf32> -> vector<8x80xf32>
    %761 = vector.shape_cast %633 : vector<8x1xi1> to vector<8x1xi1>
    %762 = vector.broadcast %761 : vector<8x1xi1> to vector<8x80xi1>
    %763 = arith.select %762, %760, %744 : vector<8x80xi1>, vector<8x80xf32>
    %764 = tpu.concatenate %747, %748 in 1 : vector<8x16xf32>, vector<8x16xf32> -> vector<8x32xf32>
    %cst_139 = arith.constant 0.000000e+00 : f32
    %765 = vector.shape_cast %633 : vector<8x1xi1> to vector<8x1xi1>
    %766 = vector.broadcast %765 : vector<8x1xi1> to vector<8x32xi1>
    %767 = vector.broadcast %cst_139 : f32 to vector<8x32xf32>
    %768 = arith.select %766, %764, %767 : vector<8x32xi1>, vector<8x32xf32>
    %769 = tpu.concatenate %763, %744, %768, %626, %628, %40 in 1 : vector<8x80xf32>, vector<8x80xf32>, vector<8x32xf32>, vector<8x16xf32>, vector<8x16xf32>, vector<8x32xf32> -> vector<8x256xf32>
    %c32_140 = arith.constant 32 : index
    %c0_141 = arith.constant 0 : index
    %770 = vector.load %arg2[%c32_140, %c0_141] : memref<64x256xf32, #tpu.memory_space<vmem>>, vector<8x256xf32>
    tpu.vector_store %arg2[%c32_140, %c0_141], %769 {strides = array<i32>} : memref<64x256xf32, #tpu.memory_space<vmem>>, vector<8x256xf32>,
    %c40_142 = arith.constant 40 : index
    %c0_143 = arith.constant 0 : index
    %771 = vector.load %arg4[%c40_142, %c0_143] : memref<64x32xf32, #tpu.memory_space<vmem>>, vector<8x32xf32>
    %772 = vector.extract_strided_slice %771 {offsets = [0, 0], sizes = [8, 16], strides = [1, 1]} : vector<8x32xf32> to vector<8x16xf32>
    %773 = vector.extract_strided_slice %771 {offsets = [0, 16], sizes = [8, 16], strides = [1, 1]} : vector<8x32xf32> to vector<8x16xf32>
    %774 = arith.mulf %773, %773 : vector<8x16xf32>
    %c40_144 = arith.constant 40 : index
    %c8_145 = arith.constant 8 : index
    %775 = vector.load %arg0[%c40_144, %c8_145] : memref<64x10xf32, #tpu.memory_space<vmem>>, vector<8x2xf32>
    %776 = vector.extract_strided_slice %775 {offsets = [0, 0], sizes = [8, 1], strides = [1, 1]} : vector<8x2xf32> to vector<8x1xf32>
    %777 = vector.extract_strided_slice %775 {offsets = [0, 1], sizes = [8, 1], strides = [1, 1]} : vector<8x2xf32> to vector<8x1xf32>
    %cst_146 = arith.constant 5.000000e-01 : f32
    %778 = vector.broadcast %cst_146 : f32 to vector<8x1xf32>
    %779 = arith.cmpf ogt, %777, %778 : vector<8x1xf32>
    %780 = vector.extract_strided_slice %763 {offsets = [0, 0], sizes = [8, 16], strides = [1, 1]} : vector<8x80xf32> to vector<8x16xf32>
    %781 = vector.extract_strided_slice %763 {offsets = [0, 16], sizes = [8, 16], strides = [1, 1]} : vector<8x80xf32> to vector<8x16xf32>
    %782 = vector.extract_strided_slice %763 {offsets = [0, 32], sizes = [8, 16], strides = [1, 1]} : vector<8x80xf32> to vector<8x16xf32>
    %783 = vector.extract_strided_slice %763 {offsets = [0, 48], sizes = [8, 16], strides = [1, 1]} : vector<8x80xf32> to vector<8x16xf32>
    %784 = vector.extract_strided_slice %763 {offsets = [0, 64], sizes = [8, 16], strides = [1, 1]} : vector<8x80xf32> to vector<8x16xf32>
    %785 = vector.extract_strided_slice %763 {offsets = [0, 0], sizes = [8, 32], strides = [1, 1]} : vector<8x80xf32> to vector<8x32xf32>
    %cst_147 = arith.constant dense<0.000000e+00> : vector<8x8xf32>
    %786 = tpu.matmul %785, %4, %cst_147 {dimension_numbers = #tpu.dot_dimension_numbers<[1], [0], [0], [1], [0, 0, 1, 1], [], []>} : vector<8x32xf32>, vector<32x8xf32>, vector<8x8xf32> -> vector<8x8xf32>
    %787 = vector.broadcast %5 : vector<1x8xf32> to vector<8x8xf32>
    %788 = arith.addf %786, %787 : vector<8x8xf32>
    %cst_148 = arith.constant dense<0xFF800000> : vector<8xf32>
    %789 = vector.multi_reduction <maximumf>, %788, %cst_148 [1] : vector<8x8xf32> to vector<8xf32>
    %790 = vector.shape_cast %789 : vector<8xf32> to vector<8x1xf32>
    %791 = vector.broadcast %790 : vector<8x1xf32> to vector<8x8xf32>
    %792 = arith.subf %788, %791 : vector<8x8xf32>
    %793 = math.exp %792 : vector<8x8xf32>
    %cst_149 = arith.constant dense<0.000000e+00> : vector<8xf32>
    %794 = vector.multi_reduction <add>, %793, %cst_149 [1] : vector<8x8xf32> to vector<8xf32>
    %795 = vector.shape_cast %794 : vector<8xf32> to vector<8x1xf32>
    %796 = tpu.reciprocal %795 : vector<8x1xf32> -> vector<8x1xf32>
    %797 = vector.broadcast %796 : vector<8x1xf32> to vector<8x8xf32>
    %798 = arith.mulf %793, %797 : vector<8x8xf32>
    %799 = vector.broadcast %776 : vector<8x1xf32> to vector<8x8xf32>
    %800 = arith.mulf %798, %799 : vector<8x8xf32>
    %cst_150 = arith.constant dense<0.000000e+00> : vector<8x64xf32>
    %801 = tpu.matmul %800, %6, %cst_150 {dimension_numbers = #tpu.dot_dimension_numbers<[1], [0], [0], [1], [0, 0, 1, 1], [], []>} : vector<8x8xf32>, vector<8x64xf32>, vector<8x64xf32> -> vector<8x64xf32>
    %802 = vector.extract_strided_slice %801 {offsets = [0, 0], sizes = [8, 16], strides = [1, 1]} : vector<8x64xf32> to vector<8x16xf32>
    %803 = vector.extract_strided_slice %801 {offsets = [0, 16], sizes = [8, 16], strides = [1, 1]} : vector<8x64xf32> to vector<8x16xf32>
    %804 = vector.extract_strided_slice %801 {offsets = [0, 32], sizes = [8, 16], strides = [1, 1]} : vector<8x64xf32> to vector<8x16xf32>
    %805 = vector.extract_strided_slice %801 {offsets = [0, 48], sizes = [8, 16], strides = [1, 1]} : vector<8x64xf32> to vector<8x16xf32>
    %806 = arith.addf %802, %805 : vector<8x16xf32>
    %cst_151 = arith.constant 5.000000e-01 : f32
    %807 = vector.broadcast %cst_151 : f32 to vector<8x16xf32>
    %808 = arith.mulf %807, %806 : vector<8x16xf32>
    %809 = arith.subf %802, %805 : vector<8x16xf32>
    %cst_152 = arith.constant 5.000000e-01 : f32
    %810 = vector.broadcast %cst_152 : f32 to vector<8x16xf32>
    %811 = arith.mulf %810, %809 : vector<8x16xf32>
    %812 = arith.mulf %811, %811 : vector<8x16xf32>
    %813 = arith.mulf %803, %804 : vector<8x16xf32>
    %814 = arith.addf %812, %813 : vector<8x16xf32>
    %cst_153 = arith.constant 0.000000e+00 : f32
    %815 = vector.broadcast %cst_153 : f32 to vector<8x16xf32>
    %816 = arith.maximumf %814, %815 : vector<8x16xf32>
    %817 = math.sqrt %816 : vector<8x16xf32>
    %818 = math.exp %817 : vector<8x16xf32>
    %cst_154 = arith.constant 0.000000e+00 : f32
    %819 = vector.broadcast %cst_154 : f32 to vector<8x16xf32>
    %820 = arith.subf %819, %817 : vector<8x16xf32>
    %821 = math.exp %820 : vector<8x16xf32>
    %822 = arith.addf %818, %821 : vector<8x16xf32>
    %cst_155 = arith.constant 5.000000e-01 : f32
    %823 = vector.broadcast %cst_155 : f32 to vector<8x16xf32>
    %824 = arith.mulf %823, %822 : vector<8x16xf32>
    %cst_156 = arith.constant 1.000000e-03 : f32
    %825 = vector.broadcast %cst_156 : f32 to vector<8x16xf32>
    %826 = arith.cmpf ogt, %817, %825 : vector<8x16xf32>
    %827 = arith.subf %818, %821 : vector<8x16xf32>
    %cst_157 = arith.constant 5.000000e-01 : f32
    %828 = vector.broadcast %cst_157 : f32 to vector<8x16xf32>
    %829 = arith.mulf %828, %827 : vector<8x16xf32>
    %cst_158 = arith.constant 9.99999996E-13 : f32
    %830 = vector.broadcast %cst_158 : f32 to vector<8x16xf32>
    %831 = arith.maximumf %817, %830 : vector<8x16xf32>
    %832 = tpu.reciprocal %831 : vector<8x16xf32> -> vector<8x16xf32>
    %833 = arith.mulf %829, %832 : vector<8x16xf32>
    %cst_159 = arith.constant 6.000000e+00 : f32
    %834 = vector.broadcast %cst_159 : f32 to vector<8x16xf32>
    %835 = arith.divf %814, %834 : vector<8x16xf32>
    %cst_160 = arith.constant 1.000000e+00 : f32
    %836 = vector.broadcast %cst_160 : f32 to vector<8x16xf32>
    %837 = arith.addf %836, %835 : vector<8x16xf32>
    %838 = arith.select %826, %833, %837 : vector<8x16xi1>, vector<8x16xf32>
    %839 = math.exp %808 : vector<8x16xf32>
    %840 = arith.mulf %839, %824 : vector<8x16xf32>
    %841 = arith.mulf %839, %838 : vector<8x16xf32>
    %842 = arith.mulf %841, %811 : vector<8x16xf32>
    %843 = arith.addf %840, %842 : vector<8x16xf32>
    %844 = arith.mulf %841, %811 : vector<8x16xf32>
    %845 = arith.subf %840, %844 : vector<8x16xf32>
    %846 = arith.mulf %841, %803 : vector<8x16xf32>
    %847 = arith.mulf %841, %804 : vector<8x16xf32>
    %848 = arith.mulf %843, %780 : vector<8x16xf32>
    %849 = arith.mulf %846, %781 : vector<8x16xf32>
    %850 = arith.addf %848, %849 : vector<8x16xf32>
    %851 = arith.mulf %847, %780 : vector<8x16xf32>
    %852 = arith.mulf %845, %781 : vector<8x16xf32>
    %853 = arith.addf %851, %852 : vector<8x16xf32>
    %854 = arith.mulf %843, %843 : vector<8x16xf32>
    %855 = arith.mulf %854, %782 : vector<8x16xf32>
    %cst_161 = arith.constant 2.000000e+00 : f32
    %856 = vector.broadcast %cst_161 : f32 to vector<8x16xf32>
    %857 = arith.mulf %856, %843 : vector<8x16xf32>
    %858 = arith.mulf %857, %846 : vector<8x16xf32>
    %859 = arith.mulf %858, %784 : vector<8x16xf32>
    %860 = arith.addf %855, %859 : vector<8x16xf32>
    %861 = arith.mulf %846, %846 : vector<8x16xf32>
    %862 = arith.mulf %861, %783 : vector<8x16xf32>
    %863 = arith.addf %860, %862 : vector<8x16xf32>
    %864 = vector.broadcast %776 : vector<8x1xf32> to vector<8x16xf32>
    %865 = arith.mulf %38, %864 : vector<8x16xf32>
    %866 = arith.addf %863, %865 : vector<8x16xf32>
    %867 = arith.mulf %847, %847 : vector<8x16xf32>
    %868 = arith.mulf %867, %782 : vector<8x16xf32>
    %cst_162 = arith.constant 2.000000e+00 : f32
    %869 = vector.broadcast %cst_162 : f32 to vector<8x16xf32>
    %870 = arith.mulf %869, %847 : vector<8x16xf32>
    %871 = arith.mulf %870, %845 : vector<8x16xf32>
    %872 = arith.mulf %871, %784 : vector<8x16xf32>
    %873 = arith.addf %868, %872 : vector<8x16xf32>
    %874 = arith.mulf %845, %845 : vector<8x16xf32>
    %875 = arith.mulf %874, %783 : vector<8x16xf32>
    %876 = arith.addf %873, %875 : vector<8x16xf32>
    %877 = vector.broadcast %776 : vector<8x1xf32> to vector<8x16xf32>
    %878 = arith.mulf %39, %877 : vector<8x16xf32>
    %879 = arith.addf %876, %878 : vector<8x16xf32>
    %880 = arith.mulf %843, %847 : vector<8x16xf32>
    %881 = arith.mulf %880, %782 : vector<8x16xf32>
    %882 = arith.mulf %843, %845 : vector<8x16xf32>
    %883 = arith.mulf %846, %847 : vector<8x16xf32>
    %884 = arith.addf %882, %883 : vector<8x16xf32>
    %885 = arith.mulf %884, %784 : vector<8x16xf32>
    %886 = arith.addf %881, %885 : vector<8x16xf32>
    %887 = arith.mulf %846, %845 : vector<8x16xf32>
    %888 = arith.mulf %887, %783 : vector<8x16xf32>
    %889 = arith.addf %886, %888 : vector<8x16xf32>
    %890 = tpu.concatenate %850, %853, %866, %879, %889 in 1 : vector<8x16xf32>, vector<8x16xf32>, vector<8x16xf32>, vector<8x16xf32>, vector<8x16xf32> -> vector<8x80xf32>
    %891 = arith.addf %866, %774 : vector<8x16xf32>
    %892 = tpu.reciprocal %891 : vector<8x16xf32> -> vector<8x16xf32>
    %893 = arith.mulf %866, %892 : vector<8x16xf32>
    %894 = arith.mulf %889, %892 : vector<8x16xf32>
    %895 = arith.subf %772, %850 : vector<8x16xf32>
    %cst_163 = arith.constant 1.000000e+00 : f32
    %896 = vector.broadcast %cst_163 : f32 to vector<8x16xf32>
    %897 = arith.subf %896, %893 : vector<8x16xf32>
    %898 = arith.mulf %893, %895 : vector<8x16xf32>
    %899 = arith.addf %850, %898 : vector<8x16xf32>
    %900 = arith.mulf %894, %895 : vector<8x16xf32>
    %901 = arith.addf %853, %900 : vector<8x16xf32>
    %902 = arith.mulf %897, %866 : vector<8x16xf32>
    %903 = arith.mulf %894, %889 : vector<8x16xf32>
    %904 = arith.subf %879, %903 : vector<8x16xf32>
    %905 = arith.mulf %897, %889 : vector<8x16xf32>
    %906 = tpu.concatenate %899, %901, %902, %904, %905 in 1 : vector<8x16xf32>, vector<8x16xf32>, vector<8x16xf32>, vector<8x16xf32>, vector<8x16xf32> -> vector<8x80xf32>
    %907 = vector.shape_cast %779 : vector<8x1xi1> to vector<8x1xi1>
    %908 = vector.broadcast %907 : vector<8x1xi1> to vector<8x80xi1>
    %909 = arith.select %908, %906, %890 : vector<8x80xi1>, vector<8x80xf32>
    %910 = tpu.concatenate %893, %894 in 1 : vector<8x16xf32>, vector<8x16xf32> -> vector<8x32xf32>
    %cst_164 = arith.constant 0.000000e+00 : f32
    %911 = vector.shape_cast %779 : vector<8x1xi1> to vector<8x1xi1>
    %912 = vector.broadcast %911 : vector<8x1xi1> to vector<8x32xi1>
    %913 = vector.broadcast %cst_164 : f32 to vector<8x32xf32>
    %914 = arith.select %912, %910, %913 : vector<8x32xi1>, vector<8x32xf32>
    %915 = tpu.concatenate %909, %890, %914, %772, %774, %40 in 1 : vector<8x80xf32>, vector<8x80xf32>, vector<8x32xf32>, vector<8x16xf32>, vector<8x16xf32>, vector<8x32xf32> -> vector<8x256xf32>
    %c40_165 = arith.constant 40 : index
    %c0_166 = arith.constant 0 : index
    %916 = vector.load %arg2[%c40_165, %c0_166] : memref<64x256xf32, #tpu.memory_space<vmem>>, vector<8x256xf32>
    tpu.vector_store %arg2[%c40_165, %c0_166], %915 {strides = array<i32>} : memref<64x256xf32, #tpu.memory_space<vmem>>, vector<8x256xf32>,
    %c48 = arith.constant 48 : index
    %c0_167 = arith.constant 0 : index
    %917 = vector.load %arg4[%c48, %c0_167] : memref<64x32xf32, #tpu.memory_space<vmem>>, vector<8x32xf32>
    %918 = vector.extract_strided_slice %917 {offsets = [0, 0], sizes = [8, 16], strides = [1, 1]} : vector<8x32xf32> to vector<8x16xf32>
    %919 = vector.extract_strided_slice %917 {offsets = [0, 16], sizes = [8, 16], strides = [1, 1]} : vector<8x32xf32> to vector<8x16xf32>
    %920 = arith.mulf %919, %919 : vector<8x16xf32>
    %c48_168 = arith.constant 48 : index
    %c8_169 = arith.constant 8 : index
    %921 = vector.load %arg0[%c48_168, %c8_169] : memref<64x10xf32, #tpu.memory_space<vmem>>, vector<8x2xf32>
    %922 = vector.extract_strided_slice %921 {offsets = [0, 0], sizes = [8, 1], strides = [1, 1]} : vector<8x2xf32> to vector<8x1xf32>
    %923 = vector.extract_strided_slice %921 {offsets = [0, 1], sizes = [8, 1], strides = [1, 1]} : vector<8x2xf32> to vector<8x1xf32>
    %cst_170 = arith.constant 5.000000e-01 : f32
    %924 = vector.broadcast %cst_170 : f32 to vector<8x1xf32>
    %925 = arith.cmpf ogt, %923, %924 : vector<8x1xf32>
    %926 = vector.extract_strided_slice %909 {offsets = [0, 0], sizes = [8, 16], strides = [1, 1]} : vector<8x80xf32> to vector<8x16xf32>
    %927 = vector.extract_strided_slice %909 {offsets = [0, 16], sizes = [8, 16], strides = [1, 1]} : vector<8x80xf32> to vector<8x16xf32>
    %928 = vector.extract_strided_slice %909 {offsets = [0, 32], sizes = [8, 16], strides = [1, 1]} : vector<8x80xf32> to vector<8x16xf32>
    %929 = vector.extract_strided_slice %909 {offsets = [0, 48], sizes = [8, 16], strides = [1, 1]} : vector<8x80xf32> to vector<8x16xf32>
    %930 = vector.extract_strided_slice %909 {offsets = [0, 64], sizes = [8, 16], strides = [1, 1]} : vector<8x80xf32> to vector<8x16xf32>
    %931 = vector.extract_strided_slice %909 {offsets = [0, 0], sizes = [8, 32], strides = [1, 1]} : vector<8x80xf32> to vector<8x32xf32>
    %cst_171 = arith.constant dense<0.000000e+00> : vector<8x8xf32>
    %932 = tpu.matmul %931, %4, %cst_171 {dimension_numbers = #tpu.dot_dimension_numbers<[1], [0], [0], [1], [0, 0, 1, 1], [], []>} : vector<8x32xf32>, vector<32x8xf32>, vector<8x8xf32> -> vector<8x8xf32>
    %933 = vector.broadcast %5 : vector<1x8xf32> to vector<8x8xf32>
    %934 = arith.addf %932, %933 : vector<8x8xf32>
    %cst_172 = arith.constant dense<0xFF800000> : vector<8xf32>
    %935 = vector.multi_reduction <maximumf>, %934, %cst_172 [1] : vector<8x8xf32> to vector<8xf32>
    %936 = vector.shape_cast %935 : vector<8xf32> to vector<8x1xf32>
    %937 = vector.broadcast %936 : vector<8x1xf32> to vector<8x8xf32>
    %938 = arith.subf %934, %937 : vector<8x8xf32>
    %939 = math.exp %938 : vector<8x8xf32>
    %cst_173 = arith.constant dense<0.000000e+00> : vector<8xf32>
    %940 = vector.multi_reduction <add>, %939, %cst_173 [1] : vector<8x8xf32> to vector<8xf32>
    %941 = vector.shape_cast %940 : vector<8xf32> to vector<8x1xf32>
    %942 = tpu.reciprocal %941 : vector<8x1xf32> -> vector<8x1xf32>
    %943 = vector.broadcast %942 : vector<8x1xf32> to vector<8x8xf32>
    %944 = arith.mulf %939, %943 : vector<8x8xf32>
    %945 = vector.broadcast %922 : vector<8x1xf32> to vector<8x8xf32>
    %946 = arith.mulf %944, %945 : vector<8x8xf32>
    %cst_174 = arith.constant dense<0.000000e+00> : vector<8x64xf32>
    %947 = tpu.matmul %946, %6, %cst_174 {dimension_numbers = #tpu.dot_dimension_numbers<[1], [0], [0], [1], [0, 0, 1, 1], [], []>} : vector<8x8xf32>, vector<8x64xf32>, vector<8x64xf32> -> vector<8x64xf32>
    %948 = vector.extract_strided_slice %947 {offsets = [0, 0], sizes = [8, 16], strides = [1, 1]} : vector<8x64xf32> to vector<8x16xf32>
    %949 = vector.extract_strided_slice %947 {offsets = [0, 16], sizes = [8, 16], strides = [1, 1]} : vector<8x64xf32> to vector<8x16xf32>
    %950 = vector.extract_strided_slice %947 {offsets = [0, 32], sizes = [8, 16], strides = [1, 1]} : vector<8x64xf32> to vector<8x16xf32>
    %951 = vector.extract_strided_slice %947 {offsets = [0, 48], sizes = [8, 16], strides = [1, 1]} : vector<8x64xf32> to vector<8x16xf32>
    %952 = arith.addf %948, %951 : vector<8x16xf32>
    %cst_175 = arith.constant 5.000000e-01 : f32
    %953 = vector.broadcast %cst_175 : f32 to vector<8x16xf32>
    %954 = arith.mulf %953, %952 : vector<8x16xf32>
    %955 = arith.subf %948, %951 : vector<8x16xf32>
    %cst_176 = arith.constant 5.000000e-01 : f32
    %956 = vector.broadcast %cst_176 : f32 to vector<8x16xf32>
    %957 = arith.mulf %956, %955 : vector<8x16xf32>
    %958 = arith.mulf %957, %957 : vector<8x16xf32>
    %959 = arith.mulf %949, %950 : vector<8x16xf32>
    %960 = arith.addf %958, %959 : vector<8x16xf32>
    %cst_177 = arith.constant 0.000000e+00 : f32
    %961 = vector.broadcast %cst_177 : f32 to vector<8x16xf32>
    %962 = arith.maximumf %960, %961 : vector<8x16xf32>
    %963 = math.sqrt %962 : vector<8x16xf32>
    %964 = math.exp %963 : vector<8x16xf32>
    %cst_178 = arith.constant 0.000000e+00 : f32
    %965 = vector.broadcast %cst_178 : f32 to vector<8x16xf32>
    %966 = arith.subf %965, %963 : vector<8x16xf32>
    %967 = math.exp %966 : vector<8x16xf32>
    %968 = arith.addf %964, %967 : vector<8x16xf32>
    %cst_179 = arith.constant 5.000000e-01 : f32
    %969 = vector.broadcast %cst_179 : f32 to vector<8x16xf32>
    %970 = arith.mulf %969, %968 : vector<8x16xf32>
    %cst_180 = arith.constant 1.000000e-03 : f32
    %971 = vector.broadcast %cst_180 : f32 to vector<8x16xf32>
    %972 = arith.cmpf ogt, %963, %971 : vector<8x16xf32>
    %973 = arith.subf %964, %967 : vector<8x16xf32>
    %cst_181 = arith.constant 5.000000e-01 : f32
    %974 = vector.broadcast %cst_181 : f32 to vector<8x16xf32>
    %975 = arith.mulf %974, %973 : vector<8x16xf32>
    %cst_182 = arith.constant 9.99999996E-13 : f32
    %976 = vector.broadcast %cst_182 : f32 to vector<8x16xf32>
    %977 = arith.maximumf %963, %976 : vector<8x16xf32>
    %978 = tpu.reciprocal %977 : vector<8x16xf32> -> vector<8x16xf32>
    %979 = arith.mulf %975, %978 : vector<8x16xf32>
    %cst_183 = arith.constant 6.000000e+00 : f32
    %980 = vector.broadcast %cst_183 : f32 to vector<8x16xf32>
    %981 = arith.divf %960, %980 : vector<8x16xf32>
    %cst_184 = arith.constant 1.000000e+00 : f32
    %982 = vector.broadcast %cst_184 : f32 to vector<8x16xf32>
    %983 = arith.addf %982, %981 : vector<8x16xf32>
    %984 = arith.select %972, %979, %983 : vector<8x16xi1>, vector<8x16xf32>
    %985 = math.exp %954 : vector<8x16xf32>
    %986 = arith.mulf %985, %970 : vector<8x16xf32>
    %987 = arith.mulf %985, %984 : vector<8x16xf32>
    %988 = arith.mulf %987, %957 : vector<8x16xf32>
    %989 = arith.addf %986, %988 : vector<8x16xf32>
    %990 = arith.mulf %987, %957 : vector<8x16xf32>
    %991 = arith.subf %986, %990 : vector<8x16xf32>
    %992 = arith.mulf %987, %949 : vector<8x16xf32>
    %993 = arith.mulf %987, %950 : vector<8x16xf32>
    %994 = arith.mulf %989, %926 : vector<8x16xf32>
    %995 = arith.mulf %992, %927 : vector<8x16xf32>
    %996 = arith.addf %994, %995 : vector<8x16xf32>
    %997 = arith.mulf %993, %926 : vector<8x16xf32>
    %998 = arith.mulf %991, %927 : vector<8x16xf32>
    %999 = arith.addf %997, %998 : vector<8x16xf32>
    %1000 = arith.mulf %989, %989 : vector<8x16xf32>
    %1001 = arith.mulf %1000, %928 : vector<8x16xf32>
    %cst_185 = arith.constant 2.000000e+00 : f32
    %1002 = vector.broadcast %cst_185 : f32 to vector<8x16xf32>
    %1003 = arith.mulf %1002, %989 : vector<8x16xf32>
    %1004 = arith.mulf %1003, %992 : vector<8x16xf32>
    %1005 = arith.mulf %1004, %930 : vector<8x16xf32>
    %1006 = arith.addf %1001, %1005 : vector<8x16xf32>
    %1007 = arith.mulf %992, %992 : vector<8x16xf32>
    %1008 = arith.mulf %1007, %929 : vector<8x16xf32>
    %1009 = arith.addf %1006, %1008 : vector<8x16xf32>
    %1010 = vector.broadcast %922 : vector<8x1xf32> to vector<8x16xf32>
    %1011 = arith.mulf %38, %1010 : vector<8x16xf32>
    %1012 = arith.addf %1009, %1011 : vector<8x16xf32>
    %1013 = arith.mulf %993, %993 : vector<8x16xf32>
    %1014 = arith.mulf %1013, %928 : vector<8x16xf32>
    %cst_186 = arith.constant 2.000000e+00 : f32
    %1015 = vector.broadcast %cst_186 : f32 to vector<8x16xf32>
    %1016 = arith.mulf %1015, %993 : vector<8x16xf32>
    %1017 = arith.mulf %1016, %991 : vector<8x16xf32>
    %1018 = arith.mulf %1017, %930 : vector<8x16xf32>
    %1019 = arith.addf %1014, %1018 : vector<8x16xf32>
    %1020 = arith.mulf %991, %991 : vector<8x16xf32>
    %1021 = arith.mulf %1020, %929 : vector<8x16xf32>
    %1022 = arith.addf %1019, %1021 : vector<8x16xf32>
    %1023 = vector.broadcast %922 : vector<8x1xf32> to vector<8x16xf32>
    %1024 = arith.mulf %39, %1023 : vector<8x16xf32>
    %1025 = arith.addf %1022, %1024 : vector<8x16xf32>
    %1026 = arith.mulf %989, %993 : vector<8x16xf32>
    %1027 = arith.mulf %1026, %928 : vector<8x16xf32>
    %1028 = arith.mulf %989, %991 : vector<8x16xf32>
    %1029 = arith.mulf %992, %993 : vector<8x16xf32>
    %1030 = arith.addf %1028, %1029 : vector<8x16xf32>
    %1031 = arith.mulf %1030, %930 : vector<8x16xf32>
    %1032 = arith.addf %1027, %1031 : vector<8x16xf32>
    %1033 = arith.mulf %992, %991 : vector<8x16xf32>
    %1034 = arith.mulf %1033, %929 : vector<8x16xf32>
    %1035 = arith.addf %1032, %1034 : vector<8x16xf32>
    %1036 = tpu.concatenate %996, %999, %1012, %1025, %1035 in 1 : vector<8x16xf32>, vector<8x16xf32>, vector<8x16xf32>, vector<8x16xf32>, vector<8x16xf32> -> vector<8x80xf32>
    %1037 = arith.addf %1012, %920 : vector<8x16xf32>
    %1038 = tpu.reciprocal %1037 : vector<8x16xf32> -> vector<8x16xf32>
    %1039 = arith.mulf %1012, %1038 : vector<8x16xf32>
    %1040 = arith.mulf %1035, %1038 : vector<8x16xf32>
    %1041 = arith.subf %918, %996 : vector<8x16xf32>
    %cst_187 = arith.constant 1.000000e+00 : f32
    %1042 = vector.broadcast %cst_187 : f32 to vector<8x16xf32>
    %1043 = arith.subf %1042, %1039 : vector<8x16xf32>
    %1044 = arith.mulf %1039, %1041 : vector<8x16xf32>
    %1045 = arith.addf %996, %1044 : vector<8x16xf32>
    %1046 = arith.mulf %1040, %1041 : vector<8x16xf32>
    %1047 = arith.addf %999, %1046 : vector<8x16xf32>
    %1048 = arith.mulf %1043, %1012 : vector<8x16xf32>
    %1049 = arith.mulf %1040, %1035 : vector<8x16xf32>
    %1050 = arith.subf %1025, %1049 : vector<8x16xf32>
    %1051 = arith.mulf %1043, %1035 : vector<8x16xf32>
    %1052 = tpu.concatenate %1045, %1047, %1048, %1050, %1051 in 1 : vector<8x16xf32>, vector<8x16xf32>, vector<8x16xf32>, vector<8x16xf32>, vector<8x16xf32> -> vector<8x80xf32>
    %1053 = vector.shape_cast %925 : vector<8x1xi1> to vector<8x1xi1>
    %1054 = vector.broadcast %1053 : vector<8x1xi1> to vector<8x80xi1>
    %1055 = arith.select %1054, %1052, %1036 : vector<8x80xi1>, vector<8x80xf32>
    %1056 = tpu.concatenate %1039, %1040 in 1 : vector<8x16xf32>, vector<8x16xf32> -> vector<8x32xf32>
    %cst_188 = arith.constant 0.000000e+00 : f32
    %1057 = vector.shape_cast %925 : vector<8x1xi1> to vector<8x1xi1>
    %1058 = vector.broadcast %1057 : vector<8x1xi1> to vector<8x32xi1>
    %1059 = vector.broadcast %cst_188 : f32 to vector<8x32xf32>
    %1060 = arith.select %1058, %1056, %1059 : vector<8x32xi1>, vector<8x32xf32>
    %1061 = tpu.concatenate %1055, %1036, %1060, %918, %920, %40 in 1 : vector<8x80xf32>, vector<8x80xf32>, vector<8x32xf32>, vector<8x16xf32>, vector<8x16xf32>, vector<8x32xf32> -> vector<8x256xf32>
    %c48_189 = arith.constant 48 : index
    %c0_190 = arith.constant 0 : index
    %1062 = vector.load %arg2[%c48_189, %c0_190] : memref<64x256xf32, #tpu.memory_space<vmem>>, vector<8x256xf32>
    tpu.vector_store %arg2[%c48_189, %c0_190], %1061 {strides = array<i32>} : memref<64x256xf32, #tpu.memory_space<vmem>>, vector<8x256xf32>,
    %c56 = arith.constant 56 : index
    %c0_191 = arith.constant 0 : index
    %1063 = vector.load %arg4[%c56, %c0_191] : memref<64x32xf32, #tpu.memory_space<vmem>>, vector<8x32xf32>
    %1064 = vector.extract_strided_slice %1063 {offsets = [0, 0], sizes = [8, 16], strides = [1, 1]} : vector<8x32xf32> to vector<8x16xf32>
    %1065 = vector.extract_strided_slice %1063 {offsets = [0, 16], sizes = [8, 16], strides = [1, 1]} : vector<8x32xf32> to vector<8x16xf32>
    %1066 = arith.mulf %1065, %1065 : vector<8x16xf32>
    %c56_192 = arith.constant 56 : index
    %c8_193 = arith.constant 8 : index
    %1067 = vector.load %arg0[%c56_192, %c8_193] : memref<64x10xf32, #tpu.memory_space<vmem>>, vector<8x2xf32>
    %1068 = vector.extract_strided_slice %1067 {offsets = [0, 0], sizes = [8, 1], strides = [1, 1]} : vector<8x2xf32> to vector<8x1xf32>
    %1069 = vector.extract_strided_slice %1067 {offsets = [0, 1], sizes = [8, 1], strides = [1, 1]} : vector<8x2xf32> to vector<8x1xf32>
    %cst_194 = arith.constant 5.000000e-01 : f32
    %1070 = vector.broadcast %cst_194 : f32 to vector<8x1xf32>
    %1071 = arith.cmpf ogt, %1069, %1070 : vector<8x1xf32>
    %1072 = vector.extract_strided_slice %1055 {offsets = [0, 0], sizes = [8, 16], strides = [1, 1]} : vector<8x80xf32> to vector<8x16xf32>
    %1073 = vector.extract_strided_slice %1055 {offsets = [0, 16], sizes = [8, 16], strides = [1, 1]} : vector<8x80xf32> to vector<8x16xf32>
    %1074 = vector.extract_strided_slice %1055 {offsets = [0, 32], sizes = [8, 16], strides = [1, 1]} : vector<8x80xf32> to vector<8x16xf32>
    %1075 = vector.extract_strided_slice %1055 {offsets = [0, 48], sizes = [8, 16], strides = [1, 1]} : vector<8x80xf32> to vector<8x16xf32>
    %1076 = vector.extract_strided_slice %1055 {offsets = [0, 64], sizes = [8, 16], strides = [1, 1]} : vector<8x80xf32> to vector<8x16xf32>
    %1077 = vector.extract_strided_slice %1055 {offsets = [0, 0], sizes = [8, 32], strides = [1, 1]} : vector<8x80xf32> to vector<8x32xf32>
    %cst_195 = arith.constant dense<0.000000e+00> : vector<8x8xf32>
    %1078 = tpu.matmul %1077, %4, %cst_195 {dimension_numbers = #tpu.dot_dimension_numbers<[1], [0], [0], [1], [0, 0, 1, 1], [], []>} : vector<8x32xf32>, vector<32x8xf32>, vector<8x8xf32> -> vector<8x8xf32>
    %1079 = vector.broadcast %5 : vector<1x8xf32> to vector<8x8xf32>
    %1080 = arith.addf %1078, %1079 : vector<8x8xf32>
    %cst_196 = arith.constant dense<0xFF800000> : vector<8xf32>
    %1081 = vector.multi_reduction <maximumf>, %1080, %cst_196 [1] : vector<8x8xf32> to vector<8xf32>
    %1082 = vector.shape_cast %1081 : vector<8xf32> to vector<8x1xf32>
    %1083 = vector.broadcast %1082 : vector<8x1xf32> to vector<8x8xf32>
    %1084 = arith.subf %1080, %1083 : vector<8x8xf32>
    %1085 = math.exp %1084 : vector<8x8xf32>
    %cst_197 = arith.constant dense<0.000000e+00> : vector<8xf32>
    %1086 = vector.multi_reduction <add>, %1085, %cst_197 [1] : vector<8x8xf32> to vector<8xf32>
    %1087 = vector.shape_cast %1086 : vector<8xf32> to vector<8x1xf32>
    %1088 = tpu.reciprocal %1087 : vector<8x1xf32> -> vector<8x1xf32>
    %1089 = vector.broadcast %1088 : vector<8x1xf32> to vector<8x8xf32>
    %1090 = arith.mulf %1085, %1089 : vector<8x8xf32>
    %1091 = vector.broadcast %1068 : vector<8x1xf32> to vector<8x8xf32>
    %1092 = arith.mulf %1090, %1091 : vector<8x8xf32>
    %cst_198 = arith.constant dense<0.000000e+00> : vector<8x64xf32>
    %1093 = tpu.matmul %1092, %6, %cst_198 {dimension_numbers = #tpu.dot_dimension_numbers<[1], [0], [0], [1], [0, 0, 1, 1], [], []>} : vector<8x8xf32>, vector<8x64xf32>, vector<8x64xf32> -> vector<8x64xf32>
    %1094 = vector.extract_strided_slice %1093 {offsets = [0, 0], sizes = [8, 16], strides = [1, 1]} : vector<8x64xf32> to vector<8x16xf32>
    %1095 = vector.extract_strided_slice %1093 {offsets = [0, 16], sizes = [8, 16], strides = [1, 1]} : vector<8x64xf32> to vector<8x16xf32>
    %1096 = vector.extract_strided_slice %1093 {offsets = [0, 32], sizes = [8, 16], strides = [1, 1]} : vector<8x64xf32> to vector<8x16xf32>
    %1097 = vector.extract_strided_slice %1093 {offsets = [0, 48], sizes = [8, 16], strides = [1, 1]} : vector<8x64xf32> to vector<8x16xf32>
    %1098 = arith.addf %1094, %1097 : vector<8x16xf32>
    %cst_199 = arith.constant 5.000000e-01 : f32
    %1099 = vector.broadcast %cst_199 : f32 to vector<8x16xf32>
    %1100 = arith.mulf %1099, %1098 : vector<8x16xf32>
    %1101 = arith.subf %1094, %1097 : vector<8x16xf32>
    %cst_200 = arith.constant 5.000000e-01 : f32
    %1102 = vector.broadcast %cst_200 : f32 to vector<8x16xf32>
    %1103 = arith.mulf %1102, %1101 : vector<8x16xf32>
    %1104 = arith.mulf %1103, %1103 : vector<8x16xf32>
    %1105 = arith.mulf %1095, %1096 : vector<8x16xf32>
    %1106 = arith.addf %1104, %1105 : vector<8x16xf32>
    %cst_201 = arith.constant 0.000000e+00 : f32
    %1107 = vector.broadcast %cst_201 : f32 to vector<8x16xf32>
    %1108 = arith.maximumf %1106, %1107 : vector<8x16xf32>
    %1109 = math.sqrt %1108 : vector<8x16xf32>
    %1110 = math.exp %1109 : vector<8x16xf32>
    %cst_202 = arith.constant 0.000000e+00 : f32
    %1111 = vector.broadcast %cst_202 : f32 to vector<8x16xf32>
    %1112 = arith.subf %1111, %1109 : vector<8x16xf32>
    %1113 = math.exp %1112 : vector<8x16xf32>
    %1114 = arith.addf %1110, %1113 : vector<8x16xf32>
    %cst_203 = arith.constant 5.000000e-01 : f32
    %1115 = vector.broadcast %cst_203 : f32 to vector<8x16xf32>
    %1116 = arith.mulf %1115, %1114 : vector<8x16xf32>
    %cst_204 = arith.constant 1.000000e-03 : f32
    %1117 = vector.broadcast %cst_204 : f32 to vector<8x16xf32>
    %1118 = arith.cmpf ogt, %1109, %1117 : vector<8x16xf32>
    %1119 = arith.subf %1110, %1113 : vector<8x16xf32>
    %cst_205 = arith.constant 5.000000e-01 : f32
    %1120 = vector.broadcast %cst_205 : f32 to vector<8x16xf32>
    %1121 = arith.mulf %1120, %1119 : vector<8x16xf32>
    %cst_206 = arith.constant 9.99999996E-13 : f32
    %1122 = vector.broadcast %cst_206 : f32 to vector<8x16xf32>
    %1123 = arith.maximumf %1109, %1122 : vector<8x16xf32>
    %1124 = tpu.reciprocal %1123 : vector<8x16xf32> -> vector<8x16xf32>
    %1125 = arith.mulf %1121, %1124 : vector<8x16xf32>
    %cst_207 = arith.constant 6.000000e+00 : f32
    %1126 = vector.broadcast %cst_207 : f32 to vector<8x16xf32>
    %1127 = arith.divf %1106, %1126 : vector<8x16xf32>
    %cst_208 = arith.constant 1.000000e+00 : f32
    %1128 = vector.broadcast %cst_208 : f32 to vector<8x16xf32>
    %1129 = arith.addf %1128, %1127 : vector<8x16xf32>
    %1130 = arith.select %1118, %1125, %1129 : vector<8x16xi1>, vector<8x16xf32>
    %1131 = math.exp %1100 : vector<8x16xf32>
    %1132 = arith.mulf %1131, %1116 : vector<8x16xf32>
    %1133 = arith.mulf %1131, %1130 : vector<8x16xf32>
    %1134 = arith.mulf %1133, %1103 : vector<8x16xf32>
    %1135 = arith.addf %1132, %1134 : vector<8x16xf32>
    %1136 = arith.mulf %1133, %1103 : vector<8x16xf32>
    %1137 = arith.subf %1132, %1136 : vector<8x16xf32>
    %1138 = arith.mulf %1133, %1095 : vector<8x16xf32>
    %1139 = arith.mulf %1133, %1096 : vector<8x16xf32>
    %1140 = arith.mulf %1135, %1072 : vector<8x16xf32>
    %1141 = arith.mulf %1138, %1073 : vector<8x16xf32>
    %1142 = arith.addf %1140, %1141 : vector<8x16xf32>
    %1143 = arith.mulf %1139, %1072 : vector<8x16xf32>
    %1144 = arith.mulf %1137, %1073 : vector<8x16xf32>
    %1145 = arith.addf %1143, %1144 : vector<8x16xf32>
    %1146 = arith.mulf %1135, %1135 : vector<8x16xf32>
    %1147 = arith.mulf %1146, %1074 : vector<8x16xf32>
    %cst_209 = arith.constant 2.000000e+00 : f32
    %1148 = vector.broadcast %cst_209 : f32 to vector<8x16xf32>
    %1149 = arith.mulf %1148, %1135 : vector<8x16xf32>
    %1150 = arith.mulf %1149, %1138 : vector<8x16xf32>
    %1151 = arith.mulf %1150, %1076 : vector<8x16xf32>
    %1152 = arith.addf %1147, %1151 : vector<8x16xf32>
    %1153 = arith.mulf %1138, %1138 : vector<8x16xf32>
    %1154 = arith.mulf %1153, %1075 : vector<8x16xf32>
    %1155 = arith.addf %1152, %1154 : vector<8x16xf32>
    %1156 = vector.broadcast %1068 : vector<8x1xf32> to vector<8x16xf32>
    %1157 = arith.mulf %38, %1156 : vector<8x16xf32>
    %1158 = arith.addf %1155, %1157 : vector<8x16xf32>
    %1159 = arith.mulf %1139, %1139 : vector<8x16xf32>
    %1160 = arith.mulf %1159, %1074 : vector<8x16xf32>
    %cst_210 = arith.constant 2.000000e+00 : f32
    %1161 = vector.broadcast %cst_210 : f32 to vector<8x16xf32>
    %1162 = arith.mulf %1161, %1139 : vector<8x16xf32>
    %1163 = arith.mulf %1162, %1137 : vector<8x16xf32>
    %1164 = arith.mulf %1163, %1076 : vector<8x16xf32>
    %1165 = arith.addf %1160, %1164 : vector<8x16xf32>
    %1166 = arith.mulf %1137, %1137 : vector<8x16xf32>
    %1167 = arith.mulf %1166, %1075 : vector<8x16xf32>
    %1168 = arith.addf %1165, %1167 : vector<8x16xf32>
    %1169 = vector.broadcast %1068 : vector<8x1xf32> to vector<8x16xf32>
    %1170 = arith.mulf %39, %1169 : vector<8x16xf32>
    %1171 = arith.addf %1168, %1170 : vector<8x16xf32>
    %1172 = arith.mulf %1135, %1139 : vector<8x16xf32>
    %1173 = arith.mulf %1172, %1074 : vector<8x16xf32>
    %1174 = arith.mulf %1135, %1137 : vector<8x16xf32>
    %1175 = arith.mulf %1138, %1139 : vector<8x16xf32>
    %1176 = arith.addf %1174, %1175 : vector<8x16xf32>
    %1177 = arith.mulf %1176, %1076 : vector<8x16xf32>
    %1178 = arith.addf %1173, %1177 : vector<8x16xf32>
    %1179 = arith.mulf %1138, %1137 : vector<8x16xf32>
    %1180 = arith.mulf %1179, %1075 : vector<8x16xf32>
    %1181 = arith.addf %1178, %1180 : vector<8x16xf32>
    %1182 = tpu.concatenate %1142, %1145, %1158, %1171, %1181 in 1 : vector<8x16xf32>, vector<8x16xf32>, vector<8x16xf32>, vector<8x16xf32>, vector<8x16xf32> -> vector<8x80xf32>
    %1183 = arith.addf %1158, %1066 : vector<8x16xf32>
    %1184 = tpu.reciprocal %1183 : vector<8x16xf32> -> vector<8x16xf32>
    %1185 = arith.mulf %1158, %1184 : vector<8x16xf32>
    %1186 = arith.mulf %1181, %1184 : vector<8x16xf32>
    %1187 = arith.subf %1064, %1142 : vector<8x16xf32>
    %cst_211 = arith.constant 1.000000e+00 : f32
    %1188 = vector.broadcast %cst_211 : f32 to vector<8x16xf32>
    %1189 = arith.subf %1188, %1185 : vector<8x16xf32>
    %1190 = arith.mulf %1185, %1187 : vector<8x16xf32>
    %1191 = arith.addf %1142, %1190 : vector<8x16xf32>
    %1192 = arith.mulf %1186, %1187 : vector<8x16xf32>
    %1193 = arith.addf %1145, %1192 : vector<8x16xf32>
    %1194 = arith.mulf %1189, %1158 : vector<8x16xf32>
    %1195 = arith.mulf %1186, %1181 : vector<8x16xf32>
    %1196 = arith.subf %1171, %1195 : vector<8x16xf32>
    %1197 = arith.mulf %1189, %1181 : vector<8x16xf32>
    %1198 = tpu.concatenate %1191, %1193, %1194, %1196, %1197 in 1 : vector<8x16xf32>, vector<8x16xf32>, vector<8x16xf32>, vector<8x16xf32>, vector<8x16xf32> -> vector<8x80xf32>
    %1199 = vector.shape_cast %1071 : vector<8x1xi1> to vector<8x1xi1>
    %1200 = vector.broadcast %1199 : vector<8x1xi1> to vector<8x80xi1>
    %1201 = arith.select %1200, %1198, %1182 : vector<8x80xi1>, vector<8x80xf32>
    %1202 = tpu.concatenate %1185, %1186 in 1 : vector<8x16xf32>, vector<8x16xf32> -> vector<8x32xf32>
    %cst_212 = arith.constant 0.000000e+00 : f32
    %1203 = vector.shape_cast %1071 : vector<8x1xi1> to vector<8x1xi1>
    %1204 = vector.broadcast %1203 : vector<8x1xi1> to vector<8x32xi1>
    %1205 = vector.broadcast %cst_212 : f32 to vector<8x32xf32>
    %1206 = arith.select %1204, %1202, %1205 : vector<8x32xi1>, vector<8x32xf32>
    %1207 = tpu.concatenate %1201, %1182, %1206, %1064, %1066, %40 in 1 : vector<8x80xf32>, vector<8x80xf32>, vector<8x32xf32>, vector<8x16xf32>, vector<8x16xf32>, vector<8x32xf32> -> vector<8x256xf32>
    %c56_213 = arith.constant 56 : index
    %c0_214 = arith.constant 0 : index
    %1208 = vector.load %arg2[%c56_213, %c0_214] : memref<64x256xf32, #tpu.memory_space<vmem>>, vector<8x256xf32>
    tpu.vector_store %arg2[%c56_213, %c0_214], %1207 {strides = array<i32>} : memref<64x256xf32, #tpu.memory_space<vmem>>, vector<8x256xf32>,
    %c0_215 = arith.constant 0 : index
    %c0_216 = arith.constant 0 : index
    %1209 = vector.load %arg2[%c0_215, %c0_216] : memref<64x256xf32, #tpu.memory_space<vmem>>, vector<64x80xf32>
    %c80 = arith.constant 80 : index
    %c0_217 = arith.constant 0 : index
    %1210 = vector.load %arg1[%c80, %c0_217] : memref<232x128xf32, #tpu.memory_space<vmem>>, vector<80x64xf32>
    %c227 = arith.constant 227 : index
    %c0_218 = arith.constant 0 : index
    %1211 = vector.load %arg1[%c227, %c0_218] : memref<232x128xf32, #tpu.memory_space<vmem>>, vector<1x64xf32>
    %c160 = arith.constant 160 : index
    %c0_219 = arith.constant 0 : index
    %1212 = vector.load %arg1[%c160, %c0_219] : memref<232x128xf32, #tpu.memory_space<vmem>>, vector<64x16xf32>
    %c228 = arith.constant 228 : index
    %c0_220 = arith.constant 0 : index
    %1213 = vector.load %arg1[%c228, %c0_220] : memref<232x128xf32, #tpu.memory_space<vmem>>, vector<1x16xf32>
    %cst_221 = arith.constant dense<0.000000e+00> : vector<64x64xf32>
    %1214 = tpu.matmul %1209, %1210, %cst_221 {dimension_numbers = #tpu.dot_dimension_numbers<[1], [0], [0], [1], [0, 0, 1, 1], [], []>} : vector<64x80xf32>, vector<80x64xf32>, vector<64x64xf32> -> vector<64x64xf32>
    %1215 = vector.broadcast %1211 : vector<1x64xf32> to vector<64x64xf32>
    %1216 = arith.addf %1214, %1215 : vector<64x64xf32>
    %cst_222 = arith.constant 0.000000e+00 : f32
    %1217 = vector.broadcast %cst_222 : f32 to vector<64x64xf32>
    %1218 = arith.maximumf %1216, %1217 : vector<64x64xf32>
    %cst_223 = arith.constant dense<0.000000e+00> : vector<64x16xf32>
    %1219 = tpu.matmul %1218, %1212, %cst_223 {dimension_numbers = #tpu.dot_dimension_numbers<[1], [0], [0], [1], [0, 0, 1, 1], [], []>} : vector<64x64xf32>, vector<64x16xf32>, vector<64x16xf32> -> vector<64x16xf32>
    %1220 = vector.broadcast %1213 : vector<1x16xf32> to vector<64x16xf32>
    %1221 = arith.addf %1219, %1220 : vector<64x16xf32>
    %1222 = vector.extract_strided_slice %1221 {offsets = [0, 0], sizes = [64, 8], strides = [1, 1]} : vector<64x16xf32> to vector<64x8xf32>
    %1223 = vector.extract_strided_slice %1221 {offsets = [0, 8], sizes = [64, 8], strides = [1, 1]} : vector<64x16xf32> to vector<64x8xf32>
    %1224 = math.exp %1223 : vector<64x8xf32>
    %1225 = tpu.concatenate %1222, %1224 in 1 : vector<64x8xf32>, vector<64x8xf32> -> vector<64x16xf32>
    %c0_224 = arith.constant 0 : index
    %c0_225 = arith.constant 0 : index
    %1226 = vector.load %arg3[%c0_224, %c0_225] : memref<64x16xf32, #tpu.memory_space<vmem>>, vector<64x16xf32>
    tpu.vector_store %arg3[%c0_224, %c0_225], %1225 {strides = array<i32>} : memref<64x16xf32, #tpu.memory_space<vmem>>, vector<64x16xf32>,
    return
  }
}

</mosaic_0001>

<llo_original>
// kernel: cru_forward.1
$region0: #{cru_forward.1}
  #allocation0 [shape = 'u32[]', space=smem, size = 0x4, offset = 0x4, fixed_abs, tag = 'smem constant byte address 0x4 - core index']
  #allocation1 [shape = 'u32[144,128]{1,0:T(1,128)}', space=vmem, size = 0x12000, scoped, tag = 'internal scratch']
  #allocation2 [shape = 'f32[64,32]{1,0:T(8,128)}', space=vmem, size = 0x8000, scoped, tag = 'scratch operand']
  %s0 = inlined_call_operand.vmem [shape: f32[64,10], index: 0, kind: input, shape index: {}]
  %s1 = inlined_call_operand.vmem [shape: f32[232,128], index: 1, kind: input, shape index: {}]
  %s2 = inlined_call_operand.vmem [shape: f32[64,256], index: 2, kind: output, shape index: {0}]
  %s3 = inlined_call_operand.vmem [shape: f32[64,16], index: 3, kind: output, shape index: {1}]
  %4 = xla_tuple %s2, %s3
  %s5 = sld [smem:[#allocation0]]
  $region26: #{cru_forward.1} parent=0
    _
  %s7 = ssub.s32 1, %s5
  %s8 = scalar_select 0, %s7, %s5
  // Predicated region
  $region2: #{cru_forward.1} parent=0 // pred_check
    _
  $region3: #{cru_forward.1} parent=0 // pred_check_branch
    %10 = sbr.rel (0) target = $region5
  $region4: #{cru_forward.1} parent=0 // pred_region
    _
  $region5: #{cru_forward.1} parent=0 // pred_fallthru
    _
  // Predicated region
  $region6: #{cru_forward.1} parent=0 // pred_check
    _
  $region7: #{cru_forward.1} parent=0 // pred_check_branch
    %12 = sbr.rel (0) target = $region9
  $region8: #{cru_forward.1} parent=0 // pred_region
    _
  $region9: #{cru_forward.1} parent=0 // pred_fallthru
    _
  %v13 = vld [vmem:[%s1] sm:$0xff]
  %v14 = vld [vmem:[%s1 + $0xe0] sm:$0x1]
  %v15 = vld [vmem:[%s1 + $0x8] sm:$0xff]
  %v16 = vld [vmem:[%s1 + $0x10] sm:$0xff]
  %v17 = vld [vmem:[%s1 + $0x18] sm:$0xff]
  %v18 = vld [vmem:[%s1 + $0x20] sm:$0xff]
  %v19 = vld [vmem:[%s1 + $0xe1] sm:$0x1]
  %v20 = vld [vmem:[%s1 + $0x28] sm:$0xff]
  %v21 = vld [vmem:[%s1 + $0x30] sm:$0xff]
  %v22 = vld [vmem:[%s1 + $0x38] sm:$0xff]
  %v23 = vld [vmem:[%s1 + $0x40] sm:$0xff]
  %v24 = vld [vmem:[%s1 + $0xe2] sm:$0x1]
  %v25 = vld [vmem:[%s1 + $0x48] sm:$0xff]
  %v26 = vld [vmem:[%s0] sm:$0xff]
  %v27 = vld [vmem:[%s0 + $0x8] sm:$0xff]
  %v28 = vld [vmem:[%s0 + $0x10] sm:$0xff]
  %v29 = vld [vmem:[%s0 + $0x18] sm:$0xff]
  %v30 = vld [vmem:[%s0 + $0x20] sm:$0xff]
  %v31 = vld [vmem:[%s0 + $0x28] sm:$0xff]
  %v32 = vld [vmem:[%s0 + $0x30] sm:$0xff]
  %v33 = vld [vmem:[%s0 + $0x38] sm:$0xff]
  %v34 = vlaneseq
  %v35 = vshrl.u32 %v34, 7
  %v36 = vsub.s32 0, %v35
  %v37 = vrot.slane %v14, %v36
  %vm38 = vcmask 64512
  %v40 = vsel %vm38, %v26, 0
  %v43 = vsel %vm38, %v27, 0
  %v46 = vsel %vm38, %v28, 0
  %v49 = vsel %vm38, %v29, 0
  %v52 = vsel %vm38, %v30, 0
  %v55 = vsel %vm38, %v31, 0
  %v58 = vsel %vm38, %v32, 0
  %v61 = vsel %vm38, %v33, 0
  %63 = vmatprep.subr.mxu0 0.0
  %64 = vmatpush1.msra.mxu0 %v13
  %65 = vmatprep.subr.mxu0 0.0
  %66 = vmatpush1.msra.mxu0 0.0
  %67 = vmatprep.subr.mxu0 0.0
  %68 = vmatpush1.msra.mxu0 0.0
  %69 = vmatprep.subr.mxu0 0.0
  %70 = vmatpush1.msra.mxu0 0.0
  %71 = vmatprep.subr.mxu0 0.0
  %72 = vmatpush1.msra.mxu0 0.0
  %73 = vmatprep.subr.mxu0 0.0
  %74 = vmatpush1.msra.mxu0 0.0
  %75 = vmatprep.subr.mxu0 0.0
  %76 = vmatpush1.msra.mxu0 0.0
  %77 = vmatprep.subr.mxu0 0.0
  %78 = vmatpush1.msra.mxu0 0.0
  %79 = vmatprep.subr.mxu0 0.0
  %80 = vmatpush1.msra.mxu0 0.0
  %81 = vmatprep.subr.mxu0 0.0
  %82 = vmatpush1.msra.mxu0 0.0
  %83 = vmatprep.subr.mxu0 0.0
  %84 = vmatpush1.msra.mxu0 0.0
  %85 = vmatprep.subr.mxu0 0.0
  %86 = vmatpush1.msra.mxu0 0.0
  %87 = vmatprep.subr.mxu0 0.0
  %88 = vmatpush1.msra.mxu0 0.0
  %89 = vmatprep.subr.mxu0 0.0
  %90 = vmatpush1.msra.mxu0 0.0
  %91 = vmatprep.subr.mxu0 0.0
  %92 = vmatpush1.msra.mxu0 0.0
  %93 = vmatprep.subr.mxu0 0.0
  %94 = vmatpush1.msra.mxu0 0.0
  %95 = vmatprep.subr.mxu0 0.0
  %96 = vmatpush1.msra.mxu0 0.0
  %97 = vmatprep.subr.mxu0 0.0
  %98 = vmatpush1.msra.mxu0 0.0
  %99 = vmatprep.subr.mxu0 0.0
  %100 = vmatpush1.msra.mxu0 0.0
  %101 = vmatprep.subr.mxu0 0.0
  %102 = vmatpush1.msra.mxu0 0.0
  %103 = vmatprep.subr.mxu0 0.0
  %104 = vmatpush1.msra.mxu0 0.0
  %105 = vmatprep.subr.mxu0 0.0
  %106 = vmatpush1.msra.mxu0 0.0
  %107 = vmatprep.subr.mxu0 0.0
  %108 = vmatpush1.msra.mxu0 0.0
  %109 = vmatprep.subr.mxu0 0.0
  %110 = vmatpush1.msra.mxu0 0.0
  %111 = vmatprep.subr.mxu0 0.0
  %112 = vmatpush1.msra.mxu0 0.0
  %113 = vmatprep.subr.mxu0 0.0
  %114 = vmatpush1.msra.mxu0 0.0
  %115 = vmatprep.subr.mxu0 0.0
  %116 = vmatpush1.msra.mxu0 0.0
  %117 = vmatprep.subr.mxu0 0.0
  %118 = vmatpush1.msra.mxu0 0.0
  %119 = vmatprep.subr.mxu0 0.0
  %120 = vmatpush1.msra.mxu0 0.0
  %121 = vmatprep.subr.mxu0 0.0
  %122 = vmatpush1.msra.mxu0 0.0
  %123 = vmatprep.subr.mxu0 0.0
  %124 = vmatpush1.msra.mxu0 0.0
  %125 = vmatprep.subr.mxu0 0.0
  %126 = vmatpush1.msra.mxu0 0.0
  %127 = vmatprep.mubr.f32.mxu0 0.0
  %128 = vmatmul.mubr.f32.gmra.mrb[0].mxu0 %v40
  %v129 = vpop.f32.mrb[0].mxu0
  %v130 = vadd.f32 %v37, %v129
  %v131 = vpop.f32.mrb[0].mxu0
  %132 = vmatprep.mubr.f32.mxu0 0.0
  %133 = vmatmul.mubr.f32.gmra.mrb[0].mxu0 %v43
  %v134 = vpop.f32.mrb[0].mxu0
  %v135 = vadd.f32 %v37, %v134
  %v136 = vpop.f32.mrb[0].mxu0
  %137 = vmatprep.mubr.f32.mxu0 0.0
  %138 = vmatmul.mubr.f32.gmra.mrb[0].mxu0 %v46
  %v139 = vpop.f32.mrb[0].mxu0
  %v140 = vadd.f32 %v37, %v139
  %v141 = vpop.f32.mrb[0].mxu0
  %142 = vmatprep.mubr.f32.mxu0 0.0
  %143 = vmatmul.mubr.f32.gmra.mrb[0].mxu0 %v49
  %v144 = vpop.f32.mrb[0].mxu0
  %v145 = vadd.f32 %v37, %v144
  %v146 = vpop.f32.mrb[0].mxu0
  %147 = vmatprep.mubr.f32.mxu0 0.0
  %148 = vmatmul.mubr.f32.gmra.mrb[0].mxu0 %v52
  %v149 = vpop.f32.mrb[0].mxu0
  %v150 = vadd.f32 %v37, %v149
  %v151 = vpop.f32.mrb[0].mxu0
  %152 = vmatprep.mubr.f32.mxu0 0.0
  %153 = vmatmul.mubr.f32.gmra.mrb[0].mxu0 %v55
  %v154 = vpop.f32.mrb[0].mxu0
  %v155 = vadd.f32 %v37, %v154
  %v156 = vpop.f32.mrb[0].mxu0
  %157 = vmatprep.mubr.f32.mxu0 0.0
  %158 = vmatmul.mubr.f32.gmra.mrb[0].mxu0 %v58
  %v159 = vpop.f32.mrb[0].mxu0
  %v160 = vadd.f32 %v37, %v159
  %v161 = vpop.f32.mrb[0].mxu0
  %162 = vmatprep.mubr.f32.mxu0 0.0
  %163 = vmatmul.mubr.f32.gmra.mrb[0].mxu0 %v61
  %v164 = vpop.f32.mrb[0].mxu0
  %v165 = vadd.f32 %v37, %v164
  %v166 = vpop.f32.mrb[0].mxu0
  %167 = vdwg.mxu0
  %v168 = vmax.f32 %v130, 0.0
  %v169 = vmax.f32 %v135, 0.0
  %v170 = vmax.f32 %v140, 0.0
  %v171 = vmax.f32 %v145, 0.0
  %v172 = vmax.f32 %v150, 0.0
  %v173 = vmax.f32 %v155, 0.0
  %v174 = vmax.f32 %v160, 0.0
  %v175 = vmax.f32 %v165, 0.0
  %v176 = vmul.f32 %v168, %v168
  %v177 = vmul.f32 %v169, %v169
  %v178 = vmul.f32 %v170, %v170
  %v179 = vmul.f32 %v171, %v171
  %v180 = vmul.f32 %v172, %v172
  %v181 = vmul.f32 %v173, %v173
  %v182 = vmul.f32 %v174, %v174
  %v183 = vmul.f32 %v175, %v175
  %vm184 = vcmask 261120
  %v185 = vsel %vm184, %v176, 0.0
  %186 = vadd.xlane.f32.xlu0 %v185
  %v187 = vpop.xlane.xlu0 %186
  %v188 = vsel %vm184, %v177, 0.0
  %189 = vadd.xlane.f32.xlu0 %v188
  %v190 = vpop.xlane.xlu0 %189
  %v191 = vsel %vm184, %v178, 0.0
  %192 = vadd.xlane.f32.xlu0 %v191
  %v193 = vpop.xlane.xlu0 %192
  %v194 = vsel %vm184, %v179, 0.0
  %195 = vadd.xlane.f32.xlu0 %v194
  %v196 = vpop.xlane.xlu0 %195
  %v197 = vsel %vm184, %v180, 0.0
  %198 = vadd.xlane.f32.xlu0 %v197
  %v199 = vpop.xlane.xlu0 %198
  %v200 = vsel %vm184, %v181, 0.0
  %201 = vadd.xlane.f32.xlu0 %v200
  %v202 = vpop.xlane.xlu0 %201
  %v203 = vsel %vm184, %v182, 0.0
  %204 = vadd.xlane.f32.xlu0 %v203
  %v205 = vpop.xlane.xlu0 %204
  %v206 = vsel %vm184, %v183, 0.0
  %207 = vadd.xlane.f32.xlu0 %v206
  %v208 = vpop.xlane.xlu0 %207
  %v209 = vrsqrt.pop %v187
  %v210 = vmul.f32 %v187, %v209
  %vm211 = vcmp.eq.f32.partialorder %v187, inf
  %v212 = vsel %vm211, %v187, %v210
  %vm213 = vcmp.eq.f32.partialorder %v187, 0.0
  %v214 = vand.u32 %v187, 2147483648
  %v215 = vsel %vm213, %v214, %v212
  %v216 = vrsqrt.pop %v190
  %v217 = vmul.f32 %v190, %v216
  %vm218 = vcmp.eq.f32.partialorder %v190, inf
  %v219 = vsel %vm218, %v190, %v217
  %vm220 = vcmp.eq.f32.partialorder %v190, 0.0
  %v221 = vand.u32 %v190, 2147483648
  %v222 = vsel %vm220, %v221, %v219
  %v223 = vrsqrt.pop %v193
  %v224 = vmul.f32 %v193, %v223
  %vm225 = vcmp.eq.f32.partialorder %v193, inf
  %v226 = vsel %vm225, %v193, %v224
  %vm227 = vcmp.eq.f32.partialorder %v193, 0.0
  %v228 = vand.u32 %v193, 2147483648
  %v229 = vsel %vm227, %v228, %v226
  %v230 = vrsqrt.pop %v196
  %v231 = vmul.f32 %v196, %v230
  %vm232 = vcmp.eq.f32.partialorder %v196, inf
  %v233 = vsel %vm232, %v196, %v231
  %vm234 = vcmp.eq.f32.partialorder %v196, 0.0
  %v235 = vand.u32 %v196, 2147483648
  %v236 = vsel %vm234, %v235, %v233
  %v237 = vrsqrt.pop %v199
  %v238 = vmul.f32 %v199, %v237
  %vm239 = vcmp.eq.f32.partialorder %v199, inf
  %v240 = vsel %vm239, %v199, %v238
  %vm241 = vcmp.eq.f32.partialorder %v199, 0.0
  %v242 = vand.u32 %v199, 2147483648
  %v243 = vsel %vm241, %v242, %v240
  %v244 = vrsqrt.pop %v202
  %v245 = vmul.f32 %v202, %v244
  %vm246 = vcmp.eq.f32.partialorder %v202, inf
  %v247 = vsel %vm246, %v202, %v245
  %vm248 = vcmp.eq.f32.partialorder %v202, 0.0
  %v249 = vand.u32 %v202, 2147483648
  %v250 = vsel %vm248, %v249, %v247
  %v251 = vrsqrt.pop %v205
  %v252 = vmul.f32 %v205, %v251
  %vm253 = vcmp.eq.f32.partialorder %v205, inf
  %v254 = vsel %vm253, %v205, %v252
  %vm255 = vcmp.eq.f32.partialorder %v205, 0.0
  %v256 = vand.u32 %v205, 2147483648
  %v257 = vsel %vm255, %v256, %v254
  %v258 = vrsqrt.pop %v208
  %v259 = vmul.f32 %v208, %v258
  %vm260 = vcmp.eq.f32.partialorder %v208, inf
  %v261 = vsel %vm260, %v208, %v259
  %vm262 = vcmp.eq.f32.partialorder %v208, 0.0
  %v263 = vand.u32 %v208, 2147483648
  %v264 = vsel %vm262, %v263, %v261
  %v265 = vmax.f32 %v215, 1e-12
  %v266 = vmax.f32 %v222, 1e-12
  %v267 = vmax.f32 %v229, 1e-12
  %v268 = vmax.f32 %v236, 1e-12
  %v269 = vmax.f32 %v243, 1e-12
  %v270 = vmax.f32 %v250, 1e-12
  %v271 = vmax.f32 %v257, 1e-12
  %v272 = vmax.f32 %v264, 1e-12
  %v273 = vrcp.pop %v265
  %v274 = vrcp.pop %v266
  %v275 = vrcp.pop %v267
  %v276 = vrcp.pop %v268
  %v277 = vrcp.pop %v269
  %v278 = vrcp.pop %v270
  %v279 = vrcp.pop %v271
  %v280 = vrcp.pop %v272
  %v281 = vmul.f32 %v168, %v273
  %v282 = vmul.f32 %v169, %v274
  %v283 = vmul.f32 %v170, %v275
  %v284 = vmul.f32 %v171, %v276
  %v285 = vmul.f32 %v172, %v277
  %v286 = vmul.f32 %v173, %v278
  %v287 = vmul.f32 %v174, %v279
  %v288 = vmul.f32 %v175, %v280
  %v289 = vlaneseq
  %v290 = vshrl.u32 %v289, 7
  %v291 = vsub.s32 0, %v290
  %v292 = vrot.slane %v19, %v291
  %v294 = vsel %vm184, %v281, 0
  %v297 = vsel %vm184, %v282, 0
  %v300 = vsel %vm184, %v283, 0
  %v303 = vsel %vm184, %v284, 0
  %v306 = vsel %vm184, %v285, 0
  %v309 = vsel %vm184, %v286, 0
  %v312 = vsel %vm184, %v287, 0
  %v315 = vsel %vm184, %v288, 0
  %317 = vmatprep.subr.mxu0 0.0
  %318 = vmatpush1.msra.mxu0 %v15
  %319 = vmatprep.subr.mxu0 0.0
  %320 = vmatpush1.msra.mxu0 %v16
  %321 = vmatprep.subr.mxu0 0.0
  %322 = vmatpush1.msra.mxu0 %v17
  %323 = vmatprep.subr.mxu0 0.0
  %324 = vmatpush1.msra.mxu0 %v18
  %325 = vmatprep.subr.mxu0 0.0
  %326 = vmatpush1.msra.mxu0 0.0
  %327 = vmatprep.subr.mxu0 0.0
  %328 = vmatpush1.msra.mxu0 0.0
  %329 = vmatprep.subr.mxu0 0.0
  %330 = vmatpush1.msra.mxu0 0.0
  %331 = vmatprep.subr.mxu0 0.0
  %332 = vmatpush1.msra.mxu0 0.0
  %333 = vmatprep.subr.mxu0 0.0
  %334 = vmatpush1.msra.mxu0 0.0
  %335 = vmatprep.subr.mxu0 0.0
  %336 = vmatpush1.msra.mxu0 0.0
  %337 = vmatprep.subr.mxu0 0.0
  %338 = vmatpush1.msra.mxu0 0.0
  %339 = vmatprep.subr.mxu0 0.0
  %340 = vmatpush1.msra.mxu0 0.0
  %341 = vmatprep.subr.mxu0 0.0
  %342 = vmatpush1.msra.mxu0 0.0
  %343 = vmatprep.subr.mxu0 0.0
  %344 = vmatpush1.msra.mxu0 0.0
  %345 = vmatprep.subr.mxu0 0.0
  %346 = vmatpush1.msra.mxu0 0.0
  %347 = vmatprep.subr.mxu0 0.0
  %348 = vmatpush1.msra.mxu0 0.0
  %349 = vmatprep.subr.mxu0 0.0
  %350 = vmatpush1.msra.mxu0 0.0
  %351 = vmatprep.subr.mxu0 0.0
  %352 = vmatpush1.msra.mxu0 0.0
  %353 = vmatprep.subr.mxu0 0.0
  %354 = vmatpush1.msra.mxu0 0.0
  %355 = vmatprep.subr.mxu0 0.0
  %356 = vmatpush1.msra.mxu0 0.0
  %357 = vmatprep.subr.mxu0 0.0
  %358 = vmatpush1.msra.mxu0 0.0
  %359 = vmatprep.subr.mxu0 0.0
  %360 = vmatpush1.msra.mxu0 0.0
  %361 = vmatprep.subr.mxu0 0.0
  %362 = vmatpush1.msra.mxu0 0.0
  %363 = vmatprep.subr.mxu0 0.0
  %364 = vmatpush1.msra.mxu0 0.0
  %365 = vmatprep.subr.mxu0 0.0
  %366 = vmatpush1.msra.mxu0 0.0
  %367 = vmatprep.subr.mxu0 0.0
  %368 = vmatpush1.msra.mxu0 0.0
  %369 = vmatprep.subr.mxu0 0.0
  %370 = vmatpush1.msra.mxu0 0.0
  %371 = vmatprep.subr.mxu0 0.0
  %372 = vmatpush1.msra.mxu0 0.0
  %373 = vmatprep.subr.mxu0 0.0
  %374 = vmatpush1.msra.mxu0 0.0
  %375 = vmatprep.subr.mxu0 0.0
  %376 = vmatpush1.msra.mxu0 0.0
  %377 = vmatprep.subr.mxu0 0.0
  %378 = vmatpush1.msra.mxu0 0.0
  %379 = vmatprep.subr.mxu0 0.0
  %380 = vmatpush1.msra.mxu0 0.0
  %381 = vmatprep.mubr.f32.mxu0 0.0
  %382 = vmatmul.mubr.f32.gmra.mrb[0].mxu0 %v294
  %v383 = vpop.f32.mrb[0].mxu0
  %v384 = vadd.f32 %v292, %v383
  %v385 = vpop.f32.mrb[0].mxu0
  %386 = vmatprep.mubr.f32.mxu0 0.0
  %387 = vmatmul.mubr.f32.gmra.mrb[0].mxu0 %v297
  %v388 = vpop.f32.mrb[0].mxu0
  %v389 = vadd.f32 %v292, %v388
  %v390 = vpop.f32.mrb[0].mxu0
  %391 = vmatprep.mubr.f32.mxu0 0.0
  %392 = vmatmul.mubr.f32.gmra.mrb[0].mxu0 %v300
  %v393 = vpop.f32.mrb[0].mxu0
  %v394 = vadd.f32 %v292, %v393
  %v395 = vpop.f32.mrb[0].mxu0
  %396 = vmatprep.mubr.f32.mxu0 0.0
  %397 = vmatmul.mubr.f32.gmra.mrb[0].mxu0 %v303
  %v398 = vpop.f32.mrb[0].mxu0
  %v399 = vadd.f32 %v292, %v398
  %v400 = vpop.f32.mrb[0].mxu0
  %401 = vmatprep.mubr.f32.mxu0 0.0
  %402 = vmatmul.mubr.f32.gmra.mrb[0].mxu0 %v306
  %v403 = vpop.f32.mrb[0].mxu0
  %v404 = vadd.f32 %v292, %v403
  %v405 = vpop.f32.mrb[0].mxu0
  %406 = vmatprep.mubr.f32.mxu0 0.0
  %407 = vmatmul.mubr.f32.gmra.mrb[0].mxu0 %v309
  %v408 = vpop.f32.mrb[0].mxu0
  %v409 = vadd.f32 %v292, %v408
  %v410 = vpop.f32.mrb[0].mxu0
  %411 = vmatprep.mubr.f32.mxu0 0.0
  %412 = vmatmul.mubr.f32.gmra.mrb[0].mxu0 %v312
  %v413 = vpop.f32.mrb[0].mxu0
  %v414 = vadd.f32 %v292, %v413
  %v415 = vpop.f32.mrb[0].mxu0
  %416 = vmatprep.mubr.f32.mxu0 0.0
  %417 = vmatmul.mubr.f32.gmra.mrb[0].mxu0 %v315
  %v418 = vpop.f32.mrb[0].mxu0
  %v419 = vadd.f32 %v292, %v418
  %v420 = vpop.f32.mrb[0].mxu0
  %421 = vdwg.mxu0
  %422 = vst.msk [vmem:[#allocation2] sm:$0xff] %vm184, %v384
  %423 = vst.msk [vmem:[#allocation2 + $0x8] sm:$0xff] %vm184, %v389
  %424 = vst.msk [vmem:[#allocation2 + $0x10] sm:$0xff] %vm184, %v394
  %425 = vst.msk [vmem:[#allocation2 + $0x18] sm:$0xff] %vm184, %v399
  %426 = vst.msk [vmem:[#allocation2 + $0x20] sm:$0xff] %vm184, %v404
  %427 = vst.msk [vmem:[#allocation2 + $0x28] sm:$0xff] %vm184, %v409
  %428 = vst.msk [vmem:[#allocation2 + $0x30] sm:$0xff] %vm184, %v414
  %429 = vst.msk [vmem:[#allocation2 + $0x38] sm:$0xff] %vm184, %v419
  %v430 = vld [vmem:[%s1 + $0xe5] sm:$0x1]
  %v431 = vld [vmem:[%s1 + $0xe6] sm:$0x1]
  %v432 = vlaneseq
  %v433 = vshrl.u32 %v432, 7
  %v434 = vsub.s32 0, %v433
  %v435 = vrot.slane %v431, %v434
  %vm436 = vcmp.lt.f32.partialorder %v435, 0.0
  %v437 = vmul.f32 %v435, 1.442695
  %v438 = vpow.pop %v437
  %v439 = vadd.f32 %v435, 1.0
  %v440 = vsel %vm436, %v438, %v439
  %v441 = vld [vmem:[#allocation2] sm:$0xff]
  %v442 = vmul.f32 %v441, %v441
  %v443 = vld [vmem:[%s0] sm:$0xff]
  %vm444 = vcmp.gt.f32.partialorder %v443, 0.5
  %v445 = vlaneseq
  %v446 = vshrl.u32 %v445, 7
  %v447 = vsub.s32 0, %v446
  %v448 = vrot.slane %v430, %v447
  %v449 = vlaneseq
  %v450 = vshrl.u32 %v449, 7
  %v451 = vsub.s32 0, %v450
  %v452 = vrot.slane %v24, %v451
  %v454 = vsel %vm184, %v448, 0
  %456 = vmatprep.subr.mxu0 0.0
  %457 = vmatpush1.msra.mxu0 %v20
  %458 = vmatprep.subr.mxu0 0.0
  %459 = vmatpush1.msra.mxu0 %v21
  %460 = vmatprep.subr.mxu0 0.0
  %461 = vmatpush1.msra.mxu0 %v22
  %462 = vmatprep.subr.mxu0 0.0
  %463 = vmatpush1.msra.mxu0 %v23
  %464 = vmatprep.subr.mxu0 0.0
  %465 = vmatpush1.msra.mxu0 0.0
  %466 = vmatprep.subr.mxu0 0.0
  %467 = vmatpush1.msra.mxu0 0.0
  %468 = vmatprep.subr.mxu0 0.0
  %469 = vmatpush1.msra.mxu0 0.0
  %470 = vmatprep.subr.mxu0 0.0
  %471 = vmatpush1.msra.mxu0 0.0
  %472 = vmatprep.subr.mxu0 0.0
  %473 = vmatpush1.msra.mxu0 0.0
  %474 = vmatprep.subr.mxu0 0.0
  %475 = vmatpush1.msra.mxu0 0.0
  %476 = vmatprep.subr.mxu0 0.0
  %477 = vmatpush1.msra.mxu0 0.0
  %478 = vmatprep.subr.mxu0 0.0
  %479 = vmatpush1.msra.mxu0 0.0
  %480 = vmatprep.subr.mxu0 0.0
  %481 = vmatpush1.msra.mxu0 0.0
  %482 = vmatprep.subr.mxu0 0.0
  %483 = vmatpush1.msra.mxu0 0.0
  %484 = vmatprep.subr.mxu0 0.0
  %485 = vmatpush1.msra.mxu0 0.0
  %486 = vmatprep.subr.mxu0 0.0
  %487 = vmatpush1.msra.mxu0 0.0
  %488 = vmatprep.subr.mxu0 0.0
  %489 = vmatpush1.msra.mxu0 0.0
  %490 = vmatprep.subr.mxu0 0.0
  %491 = vmatpush1.msra.mxu0 0.0
  %492 = vmatprep.subr.mxu0 0.0
  %493 = vmatpush1.msra.mxu0 0.0
  %494 = vmatprep.subr.mxu0 0.0
  %495 = vmatpush1.msra.mxu0 0.0
  %496 = vmatprep.subr.mxu0 0.0
  %497 = vmatpush1.msra.mxu0 0.0
  %498 = vmatprep.subr.mxu0 0.0
  %499 = vmatpush1.msra.mxu0 0.0
  %500 = vmatprep.subr.mxu0 0.0
  %501 = vmatpush1.msra.mxu0 0.0
  %502 = vmatprep.subr.mxu0 0.0
  %503 = vmatpush1.msra.mxu0 0.0
  %504 = vmatprep.subr.mxu0 0.0
  %505 = vmatpush1.msra.mxu0 0.0
  %506 = vmatprep.subr.mxu0 0.0
  %507 = vmatpush1.msra.mxu0 0.0
  %508 = vmatprep.subr.mxu0 0.0
  %509 = vmatpush1.msra.mxu0 0.0
  %510 = vmatprep.subr.mxu0 0.0
  %511 = vmatpush1.msra.mxu0 0.0
  %512 = vmatprep.subr.mxu0 0.0
  %513 = vmatpush1.msra.mxu0 0.0
  %514 = vmatprep.subr.mxu0 0.0
  %515 = vmatpush1.msra.mxu0 0.0
  %516 = vmatprep.subr.mxu0 0.0
  %517 = vmatpush1.msra.mxu0 0.0
  %518 = vmatprep.subr.mxu0 0.0
  %519 = vmatpush1.msra.mxu0 0.0
  %520 = vmatprep.mubr.f32.mxu0 0.0
  %521 = vmatmul.mubr.f32.gmra.mrb[0].mxu0 %v454
  %v522 = vpop.f32.mrb[0].mxu0
  %v523 = vadd.f32 %v452, %v522
  %v524 = vpop.f32.mrb[0].mxu0
  %525 = vdwg.mxu0
  %v526 = vsel %vm38, %v523, -inf
  %527 = vmax.xlane.f32.xlu0 %v526
  %v528 = vpop.xlane.xlu0 %527
  %v529 = vsub.f32 %v523, %v528
  %v530 = vmul.f32 %v529, 1.442695
  %v531 = vpow.pop %v530
  %v532 = vsel %vm38, %v531, 0.0
  %533 = vadd.xlane.f32.xlu0 %v532
  %v534 = vpop.xlane.xlu0 %533
  %v535 = vrcp.pop %v534
  %v536 = vmul.f32 %v531, %v535
  %538 = vset.pattern.permute.xlu0 8
  %539 = vperm.xlu0 %538, %v443
  %v540 = vpop.permute.xlu0 %539
  %v542 = vmul.f32 %v536, %v540
  %v544 = vsel %vm38, %v542, 0
  %546 = vmatprep.subr.mxu0 0.0
  %547 = vmatpush1.msra.mxu0 %v25
  %548 = vmatprep.subr.mxu0 0.0
  %549 = vmatpush1.msra.mxu0 0.0
  %550 = vmatprep.subr.mxu0 0.0
  %551 = vmatpush1.msra.mxu0 0.0
  %552 = vmatprep.subr.mxu0 0.0
  %553 = vmatpush1.msra.mxu0 0.0
  %554 = vmatprep.subr.mxu0 0.0
  %555 = vmatpush1.msra.mxu0 0.0
  %556 = vmatprep.subr.mxu0 0.0
  %557 = vmatpush1.msra.mxu0 0.0
  %558 = vmatprep.subr.mxu0 0.0
  %559 = vmatpush1.msra.mxu0 0.0
  %560 = vmatprep.subr.mxu0 0.0
  %561 = vmatpush1.msra.mxu0 0.0
  %562 = vmatprep.subr.mxu0 0.0
  %563 = vmatpush1.msra.mxu0 0.0
  %564 = vmatprep.subr.mxu0 0.0
  %565 = vmatpush1.msra.mxu0 0.0
  %566 = vmatprep.subr.mxu0 0.0
  %567 = vmatpush1.msra.mxu0 0.0
  %568 = vmatprep.subr.mxu0 0.0
  %569 = vmatpush1.msra.mxu0 0.0
  %570 = vmatprep.subr.mxu0 0.0
  %571 = vmatpush1.msra.mxu0 0.0
  %572 = vmatprep.subr.mxu0 0.0
  %573 = vmatpush1.msra.mxu0 0.0
  %574 = vmatprep.subr.mxu0 0.0
  %575 = vmatpush1.msra.mxu0 0.0
  %576 = vmatprep.subr.mxu0 0.0
  %577 = vmatpush1.msra.mxu0 0.0
  %578 = vmatprep.subr.mxu0 0.0
  %579 = vmatpush1.msra.mxu0 0.0
  %580 = vmatprep.subr.mxu0 0.0
  %581 = vmatpush1.msra.mxu0 0.0
  %582 = vmatprep.subr.mxu0 0.0
  %583 = vmatpush1.msra.mxu0 0.0
  %584 = vmatprep.subr.mxu0 0.0
  %585 = vmatpush1.msra.mxu0 0.0
  %586 = vmatprep.subr.mxu0 0.0
  %587 = vmatpush1.msra.mxu0 0.0
  %588 = vmatprep.subr.mxu0 0.0
  %589 = vmatpush1.msra.mxu0 0.0
  %590 = vmatprep.subr.mxu0 0.0
  %591 = vmatpush1.msra.mxu0 0.0
  %592 = vmatprep.subr.mxu0 0.0
  %593 = vmatpush1.msra.mxu0 0.0
  %594 = vmatprep.subr.mxu0 0.0
  %595 = vmatpush1.msra.mxu0 0.0
  %596 = vmatprep.subr.mxu0 0.0
  %597 = vmatpush1.msra.mxu0 0.0
  %598 = vmatprep.subr.mxu0 0.0
  %599 = vmatpush1.msra.mxu0 0.0
  %600 = vmatprep.subr.mxu0 0.0
  %601 = vmatpush1.msra.mxu0 0.0
  %602 = vmatprep.subr.mxu0 0.0
  %603 = vmatpush1.msra.mxu0 0.0
  %604 = vmatprep.subr.mxu0 0.0
  %605 = vmatpush1.msra.mxu0 0.0
  %606 = vmatprep.subr.mxu0 0.0
  %607 = vmatpush1.msra.mxu0 0.0
  %608 = vmatprep.subr.mxu0 0.0
  %609 = vmatpush1.msra.mxu0 0.0
  %610 = vmatprep.mubr.f32.mxu0 0.0
  %611 = vmatmul.mubr.f32.gmra.mrb[0].mxu0 %v544
  %v612 = vpop.f32.mrb[0].mxu0
  %v613 = vadd.f32 0.0, %v612
  %v614 = vpop.f32.mrb[0].mxu0
  %615 = vdwg.mxu0
  %617 = vrot.lane.b32.xlu0 %v613, 80
  %v618 = vpop.permute.xlu0 %617
  %v620 = vadd.f32 %v613, %v618
  %v621 = vmul.f32 %v620, 0.5
  %v622 = vsub.f32 %v613, %v618
  %v623 = vmul.f32 %v622, 0.5
  %v624 = vmul.f32 %v623, %v623
  %625 = vrot.lane.b32.xlu0 %v613, 112
  %v626 = vpop.permute.xlu0 %625
  %v628 = vmul.f32 %v613, %v626
  %630 = vrot.lane.b32.xlu0 %v628, 112
  %v631 = vpop.permute.xlu0 %630
  %v633 = vadd.f32 %v624, %v631
  %v634 = vmax.f32 %v633, 0.0
  %v635 = vrsqrt.pop %v634
  %v636 = vmul.f32 %v634, %v635
  %vm637 = vcmp.eq.f32.partialorder %v634, inf
  %v638 = vsel %vm637, %v634, %v636
  %vm639 = vcmp.eq.f32.partialorder %v634, 0.0
  %v640 = vand.u32 %v634, 2147483648
  %v641 = vsel %vm639, %v640, %v638
  %v642 = vmul.f32 %v641, 1.442695
  %v643 = vpow.pop %v642
  %v644 = vsub.f32 0.0, %v641
  %v645 = vmul.f32 %v644, 1.442695
  %v646 = vpow.pop %v645
  %v647 = vadd.f32 %v643, %v646
  %v648 = vmul.f32 %v647, 0.5
  %vm649 = vcmp.gt.f32.partialorder %v641, 0.001
  %v650 = vsub.f32 %v643, %v646
  %v651 = vmul.f32 %v650, 0.5
  %v652 = vmax.f32 %v641, 1e-12
  %v653 = vrcp.pop %v652
  %v654 = vmul.f32 %v651, %v653
  %v655 = vrcp.pop 6.0
  %v656 = vmul.f32 %v633, %v655
  %v657 = vadd.f32 %v656, 1.0
  %v658 = vsel %vm649, %v654, %v657
  %v659 = vmul.f32 %v621, 1.442695
  %v660 = vpow.pop %v659
  %v661 = vmul.f32 %v660, %v648
  %v662 = vmul.f32 %v660, %v658
  %v663 = vmul.f32 %v662, %v623
  %v664 = vadd.f32 %v661, %v663
  %v665 = vsub.f32 %v661, %v663
  %v666 = vmul.f32 %v662, %v626
  %667 = vrot.lane.b32.xlu0 %v613, 96
  %v668 = vpop.permute.xlu0 %667
  %v670 = vmul.f32 %v662, %v668
  %v671 = vmul.f32 %v664, %v448
  %672 = vrot.lane.b32.xlu0 %v448, 112
  %v673 = vpop.permute.xlu0 %672
  %v675 = vmul.f32 %v666, %v673
  %v676 = vadd.f32 %v671, %v675
  %v677 = vmul.f32 %v670, %v448
  %v678 = vmul.f32 %v665, %v673
  %v679 = vadd.f32 %v677, %v678
  %v680 = vmul.f32 %v664, %v664
  %681 = vrot.lane.b32.xlu0 %v448, 96
  %v682 = vpop.permute.xlu0 %681
  %v684 = vmul.f32 %v680, %v682
  %v685 = vmul.f32 %v664, 2.0
  %v686 = vmul.f32 %v685, %v666
  %687 = vrot.lane.b32.xlu0 %v448, 64
  %v688 = vpop.permute.xlu0 %687
  %v690 = vmul.f32 %v686, %v688
  %v691 = vadd.f32 %v684, %v690
  %v692 = vmul.f32 %v666, %v666
  %693 = vrot.lane.b32.xlu0 %v448, 80
  %v694 = vpop.permute.xlu0 %693
  %v696 = vmul.f32 %v692, %v694
  %v697 = vadd.f32 %v691, %v696
  %v698 = vmul.f32 %v440, %v540
  %v699 = vadd.f32 %v697, %v698
  %v700 = vmul.f32 %v670, %v670
  %v701 = vmul.f32 %v700, %v682
  %v702 = vmul.f32 %v670, 2.0
  %v703 = vmul.f32 %v702, %v665
  %v704 = vmul.f32 %v703, %v688
  %v705 = vadd.f32 %v701, %v704
  %v706 = vmul.f32 %v665, %v665
  %v707 = vmul.f32 %v706, %v694
  %v708 = vadd.f32 %v705, %v707
  %710 = vrot.lane.b32.xlu0 %v698, 112
  %v711 = vpop.permute.xlu0 %710
  %v713 = vadd.f32 %v708, %v711
  %v714 = vmul.f32 %v664, %v670
  %v715 = vmul.f32 %v714, %v682
  %v716 = vmul.f32 %v664, %v665
  %v717 = vmul.f32 %v666, %v670
  %v718 = vadd.f32 %v716, %v717
  %v719 = vmul.f32 %v718, %v688
  %v720 = vadd.f32 %v715, %v719
  %v721 = vmul.f32 %v666, %v665
  %v722 = vmul.f32 %v721, %v694
  %v723 = vadd.f32 %v720, %v722
  %725 = vrot.lane.b32.xlu0 %v679, 16
  %v726 = vpop.permute.xlu0 %725
  %729 = vrot.lane.b32.xlu0 %v699, 32
  %v730 = vpop.permute.xlu0 %729
  %733 = vrot.lane.b32.xlu0 %v713, 48
  %v734 = vpop.permute.xlu0 %733
  %737 = vrot.lane.b32.xlu0 %v723, 64
  %v738 = vpop.permute.xlu0 %737
  %vm740 = vcmask 130048
  %v741 = vsel %vm740, %v676, %v726
  %v742 = vsel %vm184, %v741, %v730
  %vm743 = vcmask 392192
  %v744 = vsel %vm743, %v742, %v734
  %vm745 = vcmask 523264
  %v746 = vsel %vm745, %v744, %v738
  %748 = vrot.lane.b32.xlu0 %v442, 112
  %v749 = vpop.permute.xlu0 %748
  %v751 = vadd.f32 %v699, %v749
  %v752 = vrcp.pop %v751
  %v753 = vmul.f32 %v699, %v752
  %v754 = vmul.f32 %v723, %v752
  %v755 = vsub.f32 %v441, %v676
  %v756 = vsub.f32 1.0, %v753
  %v757 = vmul.f32 %v753, %v755
  %v758 = vadd.f32 %v676, %v757
  %v759 = vmul.f32 %v754, %v755
  %v760 = vadd.f32 %v679, %v759
  %v761 = vmul.f32 %v756, %v699
  %v762 = vmul.f32 %v754, %v723
  %v763 = vsub.f32 %v713, %v762
  %v764 = vmul.f32 %v756, %v723
  %766 = vrot.lane.b32.xlu0 %v760, 16
  %v767 = vpop.permute.xlu0 %766
  %770 = vrot.lane.b32.xlu0 %v761, 32
  %v771 = vpop.permute.xlu0 %770
  %774 = vrot.lane.b32.xlu0 %v763, 48
  %v775 = vpop.permute.xlu0 %774
  %778 = vrot.lane.b32.xlu0 %v764, 64
  %v779 = vpop.permute.xlu0 %778
  %v781 = vsel %vm740, %v758, %v767
  %v782 = vsel %vm184, %v781, %v771
  %v783 = vsel %vm743, %v782, %v775
  %v784 = vsel %vm745, %v783, %v779
  %v785 = vsel %vm444, 1, 0
  %786 = vset.pattern.permute.xlu0 9
  %787 = vperm.xlu0 %786, %v785
  %v788 = vpop.permute.xlu0 %787
  %vm789 = vcmp.eq.s32.totalorder %v788, 1
  %v790 = vsel %vm789, %v784, %v746
  %792 = vrot.lane.b32.xlu0 %v754, 16
  %v793 = vpop.permute.xlu0 %792
  %v795 = vsel %vm740, %v753, %v793
  %v796 = vsel %vm789, %v795, 0.0
  %798 = vrot.lane.b32.xlu0 %v746, 80
  %v799 = vpop.permute.xlu0 %798
  %802 = vrot.lane.b32.xlu0 %v796, 32
  %v803 = vpop.permute.xlu0 %802
  %806 = vrot.lane.b32.xlu0 %v441, 64
  %v807 = vpop.permute.xlu0 %806
  %809 = vrot.lane.b32.xlu0 %v442, 64
  %v810 = vpop.permute.xlu0 %809
  %vm812 = vcmask 654336
  %v813 = vsel %vm812, %v790, %v799
  %v814 = vsel %vm184, %v799, %v803
  %v815 = vsel %vm745, %v814, %v807
  %v816 = vsel %vm812, %v815, %v810
  %vm817 = vcmask 785408
  %v818 = vsel %vm817, %v816, 0.0
  %819 = vst [vmem:[%s2] sm:$0xff] %v813
  %820 = vst [vmem:[%s2 + $0x8] sm:$0xff] %v818
  %v821 = vld [vmem:[#allocation2 + $0x8] sm:$0xff]
  %v822 = vmul.f32 %v821, %v821
  %v823 = vld [vmem:[%s0 + $0x8] sm:$0xff]
  %vm824 = vcmp.gt.f32.partialorder %v823, 0.5
  %v826 = vsel %vm184, %v790, 0
  %828 = vmatprep.subr.mxu0 0.0
  %829 = vmatpush1.msra.mxu0 %v20
  %830 = vmatprep.subr.mxu0 0.0
  %831 = vmatpush1.msra.mxu0 %v21
  %832 = vmatprep.subr.mxu0 0.0
  %833 = vmatpush1.msra.mxu0 %v22
  %834 = vmatprep.subr.mxu0 0.0
  %835 = vmatpush1.msra.mxu0 %v23
  %836 = vmatprep.subr.mxu0 0.0
  %837 = vmatpush1.msra.mxu0 0.0
  %838 = vmatprep.subr.mxu0 0.0
  %839 = vmatpush1.msra.mxu0 0.0
  %840 = vmatprep.subr.mxu0 0.0
  %841 = vmatpush1.msra.mxu0 0.0
  %842 = vmatprep.subr.mxu0 0.0
  %843 = vmatpush1.msra.mxu0 0.0
  %844 = vmatprep.subr.mxu0 0.0
  %845 = vmatpush1.msra.mxu0 0.0
  %846 = vmatprep.subr.mxu0 0.0
  %847 = vmatpush1.msra.mxu0 0.0
  %848 = vmatprep.subr.mxu0 0.0
  %849 = vmatpush1.msra.mxu0 0.0
  %850 = vmatprep.subr.mxu0 0.0
  %851 = vmatpush1.msra.mxu0 0.0
  %852 = vmatprep.subr.mxu0 0.0
  %853 = vmatpush1.msra.mxu0 0.0
  %854 = vmatprep.subr.mxu0 0.0
  %855 = vmatpush1.msra.mxu0 0.0
  %856 = vmatprep.subr.mxu0 0.0
  %857 = vmatpush1.msra.mxu0 0.0
  %858 = vmatprep.subr.mxu0 0.0
  %859 = vmatpush1.msra.mxu0 0.0
  %860 = vmatprep.subr.mxu0 0.0
  %861 = vmatpush1.msra.mxu0 0.0
  %862 = vmatprep.subr.mxu0 0.0
  %863 = vmatpush1.msra.mxu0 0.0
  %864 = vmatprep.subr.mxu0 0.0
  %865 = vmatpush1.msra.mxu0 0.0
  %866 = vmatprep.subr.mxu0 0.0
  %867 = vmatpush1.msra.mxu0 0.0
  %868 = vmatprep.subr.mxu0 0.0
  %869 = vmatpush1.msra.mxu0 0.0
  %870 = vmatprep.subr.mxu0 0.0
  %871 = vmatpush1.msra.mxu0 0.0
  %872 = vmatprep.subr.mxu0 0.0
  %873 = vmatpush1.msra.mxu0 0.0
  %874 = vmatprep.subr.mxu0 0.0
  %875 = vmatpush1.msra.mxu0 0.0
  %876 = vmatprep.subr.mxu0 0.0
  %877 = vmatpush1.msra.mxu0 0.0
  %878 = vmatprep.subr.mxu0 0.0
  %879 = vmatpush1.msra.mxu0 0.0
  %880 = vmatprep.subr.mxu0 0.0
  %881 = vmatpush1.msra.mxu0 0.0
  %882 = vmatprep.subr.mxu0 0.0
  %883 = vmatpush1.msra.mxu0 0.0
  %884 = vmatprep.subr.mxu0 0.0
  %885 = vmatpush1.msra.mxu0 0.0
  %886 = vmatprep.subr.mxu0 0.0
  %887 = vmatpush1.msra.mxu0 0.0
  %888 = vmatprep.subr.mxu0 0.0
  %889 = vmatpush1.msra.mxu0 0.0
  %890 = vmatprep.subr.mxu0 0.0
  %891 = vmatpush1.msra.mxu0 0.0
  %892 = vmatprep.mubr.f32.mxu0 0.0
  %893 = vmatmul.mubr.f32.gmra.mrb[0].mxu0 %v826
  %v894 = vpop.f32.mrb[0].mxu0
  %v895 = vadd.f32 %v452, %v894
  %v896 = vpop.f32.mrb[0].mxu0
  %897 = vdwg.mxu0
  %v898 = vsel %vm38, %v895, -inf
  %899 = vmax.xlane.f32.xlu0 %v898
  %v900 = vpop.xlane.xlu0 %899
  %v901 = vsub.f32 %v895, %v900
  %v902 = vmul.f32 %v901, 1.442695
  %v903 = vpow.pop %v902
  %v904 = vsel %vm38, %v903, 0.0
  %905 = vadd.xlane.f32.xlu0 %v904
  %v906 = vpop.xlane.xlu0 %905
  %v907 = vrcp.pop %v906
  %v908 = vmul.f32 %v903, %v907
  %910 = vset.pattern.permute.xlu0 8
  %911 = vperm.xlu0 %910, %v823
  %v912 = vpop.permute.xlu0 %911
  %v914 = vmul.f32 %v908, %v912
  %v916 = vsel %vm38, %v914, 0
  %918 = vmatprep.subr.mxu0 0.0
  %919 = vmatpush1.msra.mxu0 %v25
  %920 = vmatprep.subr.mxu0 0.0
  %921 = vmatpush1.msra.mxu0 0.0
  %922 = vmatprep.subr.mxu0 0.0
  %923 = vmatpush1.msra.mxu0 0.0
  %924 = vmatprep.subr.mxu0 0.0
  %925 = vmatpush1.msra.mxu0 0.0
  %926 = vmatprep.subr.mxu0 0.0
  %927 = vmatpush1.msra.mxu0 0.0
  %928 = vmatprep.subr.mxu0 0.0
  %929 = vmatpush1.msra.mxu0 0.0
  %930 = vmatprep.subr.mxu0 0.0
  %931 = vmatpush1.msra.mxu0 0.0
  %932 = vmatprep.subr.mxu0 0.0
  %933 = vmatpush1.msra.mxu0 0.0
  %934 = vmatprep.subr.mxu0 0.0
  %935 = vmatpush1.msra.mxu0 0.0
  %936 = vmatprep.subr.mxu0 0.0
  %937 = vmatpush1.msra.mxu0 0.0
  %938 = vmatprep.subr.mxu0 0.0
  %939 = vmatpush1.msra.mxu0 0.0
  %940 = vmatprep.subr.mxu0 0.0
  %941 = vmatpush1.msra.mxu0 0.0
  %942 = vmatprep.subr.mxu0 0.0
  %943 = vmatpush1.msra.mxu0 0.0
  %944 = vmatprep.subr.mxu0 0.0
  %945 = vmatpush1.msra.mxu0 0.0
  %946 = vmatprep.subr.mxu0 0.0
  %947 = vmatpush1.msra.mxu0 0.0
  %948 = vmatprep.subr.mxu0 0.0
  %949 = vmatpush1.msra.mxu0 0.0
  %950 = vmatprep.subr.mxu0 0.0
  %951 = vmatpush1.msra.mxu0 0.0
  %952 = vmatprep.subr.mxu0 0.0
  %953 = vmatpush1.msra.mxu0 0.0
  %954 = vmatprep.subr.mxu0 0.0
  %955 = vmatpush1.msra.mxu0 0.0
  %956 = vmatprep.subr.mxu0 0.0
  %957 = vmatpush1.msra.mxu0 0.0
  %958 = vmatprep.subr.mxu0 0.0
  %959 = vmatpush1.msra.mxu0 0.0
  %960 = vmatprep.subr.mxu0 0.0
  %961 = vmatpush1.msra.mxu0 0.0
  %962 = vmatprep.subr.mxu0 0.0
  %963 = vmatpush1.msra.mxu0 0.0
  %964 = vmatprep.subr.mxu0 0.0
  %965 = vmatpush1.msra.mxu0 0.0
  %966 = vmatprep.subr.mxu0 0.0
  %967 = vmatpush1.msra.mxu0 0.0
  %968 = vmatprep.subr.mxu0 0.0
  %969 = vmatpush1.msra.mxu0 0.0
  %970 = vmatprep.subr.mxu0 0.0
  %971 = vmatpush1.msra.mxu0 0.0
  %972 = vmatprep.subr.mxu0 0.0
  %973 = vmatpush1.msra.mxu0 0.0
  %974 = vmatprep.subr.mxu0 0.0
  %975 = vmatpush1.msra.mxu0 0.0
  %976 = vmatprep.subr.mxu0 0.0
  %977 = vmatpush1.msra.mxu0 0.0
  %978 = vmatprep.subr.mxu0 0.0
  %979 = vmatpush1.msra.mxu0 0.0
  %980 = vmatprep.subr.mxu0 0.0
  %981 = vmatpush1.msra.mxu0 0.0
  %982 = vmatprep.mubr.f32.mxu0 0.0
  %983 = vmatmul.mubr.f32.gmra.mrb[0].mxu0 %v916
  %v984 = vpop.f32.mrb[0].mxu0
  %v985 = vadd.f32 0.0, %v984
  %v986 = vpop.f32.mrb[0].mxu0
  %987 = vdwg.mxu0
  %989 = vrot.lane.b32.xlu0 %v985, 80
  %v990 = vpop.permute.xlu0 %989
  %v992 = vadd.f32 %v985, %v990
  %v993 = vmul.f32 %v992, 0.5
  %v994 = vsub.f32 %v985, %v990
  %v995 = vmul.f32 %v994, 0.5
  %v996 = vmul.f32 %v995, %v995
  %997 = vrot.lane.b32.xlu0 %v985, 112
  %v998 = vpop.permute.xlu0 %997
  %v1000 = vmul.f32 %v985, %v998
  %1002 = vrot.lane.b32.xlu0 %v1000, 112
  %v1003 = vpop.permute.xlu0 %1002
  %v1005 = vadd.f32 %v996, %v1003
  %v1006 = vmax.f32 %v1005, 0.0
  %v1007 = vrsqrt.pop %v1006
  %v1008 = vmul.f32 %v1006, %v1007
  %vm1009 = vcmp.eq.f32.partialorder %v1006, inf
  %v1010 = vsel %vm1009, %v1006, %v1008
  %vm1011 = vcmp.eq.f32.partialorder %v1006, 0.0
  %v1012 = vand.u32 %v1006, 2147483648
  %v1013 = vsel %vm1011, %v1012, %v1010
  %v1014 = vmul.f32 %v1013, 1.442695
  %v1015 = vpow.pop %v1014
  %v1016 = vsub.f32 0.0, %v1013
  %v1017 = vmul.f32 %v1016, 1.442695
  %v1018 = vpow.pop %v1017
  %v1019 = vadd.f32 %v1015, %v1018
  %v1020 = vmul.f32 %v1019, 0.5
  %vm1021 = vcmp.gt.f32.partialorder %v1013, 0.001
  %v1022 = vsub.f32 %v1015, %v1018
  %v1023 = vmul.f32 %v1022, 0.5
  %v1024 = vmax.f32 %v1013, 1e-12
  %v1025 = vrcp.pop %v1024
  %v1026 = vmul.f32 %v1023, %v1025
  %v1027 = vmul.f32 %v1005, %v655
  %v1028 = vadd.f32 %v1027, 1.0
  %v1029 = vsel %vm1021, %v1026, %v1028
  %v1030 = vmul.f32 %v993, 1.442695
  %v1031 = vpow.pop %v1030
  %v1032 = vmul.f32 %v1031, %v1020
  %v1033 = vmul.f32 %v1031, %v1029
  %v1034 = vmul.f32 %v1033, %v995
  %v1035 = vadd.f32 %v1032, %v1034
  %v1036 = vsub.f32 %v1032, %v1034
  %v1037 = vmul.f32 %v1033, %v998
  %1038 = vrot.lane.b32.xlu0 %v985, 96
  %v1039 = vpop.permute.xlu0 %1038
  %v1041 = vmul.f32 %v1033, %v1039
  %v1042 = vmul.f32 %v1035, %v790
  %1043 = vrot.lane.b32.xlu0 %v790, 112
  %v1044 = vpop.permute.xlu0 %1043
  %v1046 = vmul.f32 %v1037, %v1044
  %v1047 = vadd.f32 %v1042, %v1046
  %v1048 = vmul.f32 %v1041, %v790
  %v1049 = vmul.f32 %v1036, %v1044
  %v1050 = vadd.f32 %v1048, %v1049
  %v1051 = vmul.f32 %v1035, %v1035
  %1052 = vrot.lane.b32.xlu0 %v790, 96
  %v1053 = vpop.permute.xlu0 %1052
  %v1055 = vmul.f32 %v1051, %v1053
  %v1056 = vmul.f32 %v1035, 2.0
  %v1057 = vmul.f32 %v1056, %v1037
  %1058 = vrot.lane.b32.xlu0 %v790, 64
  %v1059 = vpop.permute.xlu0 %1058
  %v1061 = vmul.f32 %v1057, %v1059
  %v1062 = vadd.f32 %v1055, %v1061
  %v1063 = vmul.f32 %v1037, %v1037
  %1064 = vrot.lane.b32.xlu0 %v790, 80
  %v1065 = vpop.permute.xlu0 %1064
  %v1067 = vmul.f32 %v1063, %v1065
  %v1068 = vadd.f32 %v1062, %v1067
  %v1069 = vmul.f32 %v440, %v912
  %v1070 = vadd.f32 %v1068, %v1069
  %v1071 = vmul.f32 %v1041, %v1041
  %v1072 = vmul.f32 %v1071, %v1053
  %v1073 = vmul.f32 %v1041, 2.0
  %v1074 = vmul.f32 %v1073, %v1036
  %v1075 = vmul.f32 %v1074, %v1059
  %v1076 = vadd.f32 %v1072, %v1075
  %v1077 = vmul.f32 %v1036, %v1036
  %v1078 = vmul.f32 %v1077, %v1065
  %v1079 = vadd.f32 %v1076, %v1078
  %1081 = vrot.lane.b32.xlu0 %v1069, 112
  %v1082 = vpop.permute.xlu0 %1081
  %v1084 = vadd.f32 %v1079, %v1082
  %v1085 = vmul.f32 %v1035, %v1041
  %v1086 = vmul.f32 %v1085, %v1053
  %v1087 = vmul.f32 %v1035, %v1036
  %v1088 = vmul.f32 %v1037, %v1041
  %v1089 = vadd.f32 %v1087, %v1088
  %v1090 = vmul.f32 %v1089, %v1059
  %v1091 = vadd.f32 %v1086, %v1090
  %v1092 = vmul.f32 %v1037, %v1036
  %v1093 = vmul.f32 %v1092, %v1065
  %v1094 = vadd.f32 %v1091, %v1093
  %1096 = vrot.lane.b32.xlu0 %v1050, 16
  %v1097 = vpop.permute.xlu0 %1096
  %1100 = vrot.lane.b32.xlu0 %v1070, 32
  %v1101 = vpop.permute.xlu0 %1100
  %1104 = vrot.lane.b32.xlu0 %v1084, 48
  %v1105 = vpop.permute.xlu0 %1104
  %1108 = vrot.lane.b32.xlu0 %v1094, 64
  %v1109 = vpop.permute.xlu0 %1108
  %v1111 = vsel %vm740, %v1047, %v1097
  %v1112 = vsel %vm184, %v1111, %v1101
  %v1113 = vsel %vm743, %v1112, %v1105
  %v1114 = vsel %vm745, %v1113, %v1109
  %1116 = vrot.lane.b32.xlu0 %v822, 112
  %v1117 = vpop.permute.xlu0 %1116
  %v1119 = vadd.f32 %v1070, %v1117
  %v1120 = vrcp.pop %v1119
  %v1121 = vmul.f32 %v1070, %v1120
  %v1122 = vmul.f32 %v1094, %v1120
  %v1123 = vsub.f32 %v821, %v1047
  %v1124 = vsub.f32 1.0, %v1121
  %v1125 = vmul.f32 %v1121, %v1123
  %v1126 = vadd.f32 %v1047, %v1125
  %v1127 = vmul.f32 %v1122, %v1123
  %v1128 = vadd.f32 %v1050, %v1127
  %v1129 = vmul.f32 %v1124, %v1070
  %v1130 = vmul.f32 %v1122, %v1094
  %v1131 = vsub.f32 %v1084, %v1130
  %v1132 = vmul.f32 %v1124, %v1094
  %1134 = vrot.lane.b32.xlu0 %v1128, 16
  %v1135 = vpop.permute.xlu0 %1134
  %1138 = vrot.lane.b32.xlu0 %v1129, 32
  %v1139 = vpop.permute.xlu0 %1138
  %1142 = vrot.lane.b32.xlu0 %v1131, 48
  %v1143 = vpop.permute.xlu0 %1142
  %1146 = vrot.lane.b32.xlu0 %v1132, 64
  %v1147 = vpop.permute.xlu0 %1146
  %v1149 = vsel %vm740, %v1126, %v1135
  %v1150 = vsel %vm184, %v1149, %v1139
  %v1151 = vsel %vm743, %v1150, %v1143
  %v1152 = vsel %vm745, %v1151, %v1147
  %v1153 = vsel %vm824, 1, 0
  %1154 = vset.pattern.permute.xlu0 9
  %1155 = vperm.xlu0 %1154, %v1153
  %v1156 = vpop.permute.xlu0 %1155
  %vm1157 = vcmp.eq.s32.totalorder %v1156, 1
  %v1158 = vsel %vm1157, %v1152, %v1114
  %1160 = vrot.lane.b32.xlu0 %v1122, 16
  %v1161 = vpop.permute.xlu0 %1160
  %v1163 = vsel %vm740, %v1121, %v1161
  %v1164 = vsel %vm1157, %v1163, 0.0
  %1166 = vrot.lane.b32.xlu0 %v1114, 80
  %v1167 = vpop.permute.xlu0 %1166
  %1170 = vrot.lane.b32.xlu0 %v1164, 32
  %v1171 = vpop.permute.xlu0 %1170
  %1174 = vrot.lane.b32.xlu0 %v821, 64
  %v1175 = vpop.permute.xlu0 %1174
  %1177 = vrot.lane.b32.xlu0 %v822, 64
  %v1178 = vpop.permute.xlu0 %1177
  %v1180 = vsel %vm812, %v1158, %v1167
  %v1181 = vsel %vm184, %v1167, %v1171
  %v1182 = vsel %vm745, %v1181, %v1175
  %v1183 = vsel %vm812, %v1182, %v1178
  %v1184 = vsel %vm817, %v1183, 0.0
  %1185 = vst [vmem:[%s2 + $0x10] sm:$0xff] %v1180
  %1186 = vst [vmem:[%s2 + $0x18] sm:$0xff] %v1184
  %v1187 = vld [vmem:[#allocation2 + $0x10] sm:$0xff]
  %v1188 = vmul.f32 %v1187, %v1187
  %v1189 = vld [vmem:[%s0 + $0x10] sm:$0xff]
  %vm1190 = vcmp.gt.f32.partialorder %v1189, 0.5
  %v1192 = vsel %vm184, %v1158, 0
  %1194 = vmatprep.subr.mxu0 0.0
  %1195 = vmatpush1.msra.mxu0 %v20
  %1196 = vmatprep.subr.mxu0 0.0
  %1197 = vmatpush1.msra.mxu0 %v21
  %1198 = vmatprep.subr.mxu0 0.0
  %1199 = vmatpush1.msra.mxu0 %v22
  %1200 = vmatprep.subr.mxu0 0.0
  %1201 = vmatpush1.msra.mxu0 %v23
  %1202 = vmatprep.subr.mxu0 0.0
  %1203 = vmatpush1.msra.mxu0 0.0
  %1204 = vmatprep.subr.mxu0 0.0
  %1205 = vmatpush1.msra.mxu0 0.0
  %1206 = vmatprep.subr.mxu0 0.0
  %1207 = vmatpush1.msra.mxu0 0.0
  %1208 = vmatprep.subr.mxu0 0.0
  %1209 = vmatpush1.msra.mxu0 0.0
  %1210 = vmatprep.subr.mxu0 0.0
  %1211 = vmatpush1.msra.mxu0 0.0
  %1212 = vmatprep.subr.mxu0 0.0
  %1213 = vmatpush1.msra.mxu0 0.0
  %1214 = vmatprep.subr.mxu0 0.0
  %1215 = vmatpush1.msra.mxu0 0.0
  %1216 = vmatprep.subr.mxu0 0.0
  %1217 = vmatpush1.msra.mxu0 0.0
  %1218 = vmatprep.subr.mxu0 0.0
  %1219 = vmatpush1.msra.mxu0 0.0
  %1220 = vmatprep.subr.mxu0 0.0
  %1221 = vmatpush1.msra.mxu0 0.0
  %1222 = vmatprep.subr.mxu0 0.0
  %1223 = vmatpush1.msra.mxu0 0.0
  %1224 = vmatprep.subr.mxu0 0.0
  %1225 = vmatpush1.msra.mxu0 0.0
  %1226 = vmatprep.subr.mxu0 0.0
  %1227 = vmatpush1.msra.mxu0 0.0
  %1228 = vmatprep.subr.mxu0 0.0
  %1229 = vmatpush1.msra.mxu0 0.0
  %1230 = vmatprep.subr.mxu0 0.0
  %1231 = vmatpush1.msra.mxu0 0.0
  %1232 = vmatprep.subr.mxu0 0.0
  %1233 = vmatpush1.msra.mxu0 0.0
  %1234 = vmatprep.subr.mxu0 0.0
  %1235 = vmatpush1.msra.mxu0 0.0
  %1236 = vmatprep.subr.mxu0 0.0
  %1237 = vmatpush1.msra.mxu0 0.0
  %1238 = vmatprep.subr.mxu0 0.0
  %1239 = vmatpush1.msra.mxu0 0.0
  %1240 = vmatprep.subr.mxu0 0.0
  %1241 = vmatpush1.msra.mxu0 0.0
  %1242 = vmatprep.subr.mxu0 0.0
  %1243 = vmatpush1.msra.mxu0 0.0
  %1244 = vmatprep.subr.mxu0 0.0
  %1245 = vmatpush1.msra.mxu0 0.0
  %1246 = vmatprep.subr.mxu0 0.0
  %1247 = vmatpush1.msra.mxu0 0.0
  %1248 = vmatprep.subr.mxu0 0.0
  %1249 = vmatpush1.msra.mxu0 0.0
  %1250 = vmatprep.subr.mxu0 0.0
  %1251 = vmatpush1.msra.mxu0 0.0
  %1252 = vmatprep.subr.mxu0 0.0
  %1253 = vmatpush1.msra.mxu0 0.0
  %1254 = vmatprep.subr.mxu0 0.0
  %1255 = vmatpush1.msra.mxu0 0.0
  %1256 = vmatprep.subr.mxu0 0.0
  %1257 = vmatpush1.msra.mxu0 0.0
  %1258 = vmatprep.mubr.f32.mxu0 0.0
  %1259 = vmatmul.mubr.f32.gmra.mrb[0].mxu0 %v1192
  %v1260 = vpop.f32.mrb[0].mxu0
  %v1261 = vadd.f32 %v452, %v1260
  %v1262 = vpop.f32.mrb[0].mxu0
  %1263 = vdwg.mxu0
  %v1264 = vsel %vm38, %v1261, -inf
  %1265 = vmax.xlane.f32.xlu0 %v1264
  %v1266 = vpop.xlane.xlu0 %1265
  %v1267 = vsub.f32 %v1261, %v1266
  %v1268 = vmul.f32 %v1267, 1.442695
  %v1269 = vpow.pop %v1268
  %v1270 = vsel %vm38, %v1269, 0.0
  %1271 = vadd.xlane.f32.xlu0 %v1270
  %v1272 = vpop.xlane.xlu0 %1271
  %v1273 = vrcp.pop %v1272
  %v1274 = vmul.f32 %v1269, %v1273
  %1276 = vset.pattern.permute.xlu0 8
  %1277 = vperm.xlu0 %1276, %v1189
  %v1278 = vpop.permute.xlu0 %1277
  %v1280 = vmul.f32 %v1274, %v1278
  %v1282 = vsel %vm38, %v1280, 0
  %1284 = vmatprep.subr.mxu0 0.0
  %1285 = vmatpush1.msra.mxu0 %v25
  %1286 = vmatprep.subr.mxu0 0.0
  %1287 = vmatpush1.msra.mxu0 0.0
  %1288 = vmatprep.subr.mxu0 0.0
  %1289 = vmatpush1.msra.mxu0 0.0
  %1290 = vmatprep.subr.mxu0 0.0
  %1291 = vmatpush1.msra.mxu0 0.0
  %1292 = vmatprep.subr.mxu0 0.0
  %1293 = vmatpush1.msra.mxu0 0.0
  %1294 = vmatprep.subr.mxu0 0.0
  %1295 = vmatpush1.msra.mxu0 0.0
  %1296 = vmatprep.subr.mxu0 0.0
  %1297 = vmatpush1.msra.mxu0 0.0
  %1298 = vmatprep.subr.mxu0 0.0
  %1299 = vmatpush1.msra.mxu0 0.0
  %1300 = vmatprep.subr.mxu0 0.0
  %1301 = vmatpush1.msra.mxu0 0.0
  %1302 = vmatprep.subr.mxu0 0.0
  %1303 = vmatpush1.msra.mxu0 0.0
  %1304 = vmatprep.subr.mxu0 0.0
  %1305 = vmatpush1.msra.mxu0 0.0
  %1306 = vmatprep.subr.mxu0 0.0
  %1307 = vmatpush1.msra.mxu0 0.0
  %1308 = vmatprep.subr.mxu0 0.0
  %1309 = vmatpush1.msra.mxu0 0.0
  %1310 = vmatprep.subr.mxu0 0.0
  %1311 = vmatpush1.msra.mxu0 0.0
  %1312 = vmatprep.subr.mxu0 0.0
  %1313 = vmatpush1.msra.mxu0 0.0
  %1314 = vmatprep.subr.mxu0 0.0
  %1315 = vmatpush1.msra.mxu0 0.0
  %1316 = vmatprep.subr.mxu0 0.0
  %1317 = vmatpush1.msra.mxu0 0.0
  %1318 = vmatprep.subr.mxu0 0.0
  %1319 = vmatpush1.msra.mxu0 0.0
  %1320 = vmatprep.subr.mxu0 0.0
  %1321 = vmatpush1.msra.mxu0 0.0
  %1322 = vmatprep.subr.mxu0 0.0
  %1323 = vmatpush1.msra.mxu0 0.0
  %1324 = vmatprep.subr.mxu0 0.0
  %1325 = vmatpush1.msra.mxu0 0.0
  %1326 = vmatprep.subr.mxu0 0.0
  %1327 = vmatpush1.msra.mxu0 0.0
  %1328 = vmatprep.subr.mxu0 0.0
  %1329 = vmatpush1.msra.mxu0 0.0
  %1330 = vmatprep.subr.mxu0 0.0
  %1331 = vmatpush1.msra.mxu0 0.0
  %1332 = vmatprep.subr.mxu0 0.0
  %1333 = vmatpush1.msra.mxu0 0.0
  %1334 = vmatprep.subr.mxu0 0.0
  %1335 = vmatpush1.msra.mxu0 0.0
  %1336 = vmatprep.subr.mxu0 0.0
  %1337 = vmatpush1.msra.mxu0 0.0
  %1338 = vmatprep.subr.mxu0 0.0
  %1339 = vmatpush1.msra.mxu0 0.0
  %1340 = vmatprep.subr.mxu0 0.0
  %1341 = vmatpush1.msra.mxu0 0.0
  %1342 = vmatprep.subr.mxu0 0.0
  %1343 = vmatpush1.msra.mxu0 0.0
  %1344 = vmatprep.subr.mxu0 0.0
  %1345 = vmatpush1.msra.mxu0 0.0
  %1346 = vmatprep.subr.mxu0 0.0
  %1347 = vmatpush1.msra.mxu0 0.0
  %1348 = vmatprep.mubr.f32.mxu0 0.0
  %1349 = vmatmul.mubr.f32.gmra.mrb[0].mxu0 %v1282
  %v1350 = vpop.f32.mrb[0].mxu0
  %v1351 = vadd.f32 0.0, %v1350
  %v1352 = vpop.f32.mrb[0].mxu0
  %1353 = vdwg.mxu0
  %1355 = vrot.lane.b32.xlu0 %v1351, 80
  %v1356 = vpop.permute.xlu0 %1355
  %v1358 = vadd.f32 %v1351, %v1356
  %v1359 = vmul.f32 %v1358, 0.5
  %v1360 = vsub.f32 %v1351, %v1356
  %v1361 = vmul.f32 %v1360, 0.5
  %v1362 = vmul.f32 %v1361, %v1361
  %1363 = vrot.lane.b32.xlu0 %v1351, 112
  %v1364 = vpop.permute.xlu0 %1363
  %v1366 = vmul.f32 %v1351, %v1364
  %1368 = vrot.lane.b32.xlu0 %v1366, 112
  %v1369 = vpop.permute.xlu0 %1368
  %v1371 = vadd.f32 %v1362, %v1369
  %v1372 = vmax.f32 %v1371, 0.0
  %v1373 = vrsqrt.pop %v1372
  %v1374 = vmul.f32 %v1372, %v1373
  %vm1375 = vcmp.eq.f32.partialorder %v1372, inf
  %v1376 = vsel %vm1375, %v1372, %v1374
  %vm1377 = vcmp.eq.f32.partialorder %v1372, 0.0
  %v1378 = vand.u32 %v1372, 2147483648
  %v1379 = vsel %vm1377, %v1378, %v1376
  %v1380 = vmul.f32 %v1379, 1.442695
  %v1381 = vpow.pop %v1380
  %v1382 = vsub.f32 0.0, %v1379
  %v1383 = vmul.f32 %v1382, 1.442695
  %v1384 = vpow.pop %v1383
  %v1385 = vadd.f32 %v1381, %v1384
  %v1386 = vmul.f32 %v1385, 0.5
  %vm1387 = vcmp.gt.f32.partialorder %v1379, 0.001
  %v1388 = vsub.f32 %v1381, %v1384
  %v1389 = vmul.f32 %v1388, 0.5
  %v1390 = vmax.f32 %v1379, 1e-12
  %v1391 = vrcp.pop %v1390
  %v1392 = vmul.f32 %v1389, %v1391
  %v1393 = vmul.f32 %v1371, %v655
  %v1394 = vadd.f32 %v1393, 1.0
  %v1395 = vsel %vm1387, %v1392, %v1394
  %v1396 = vmul.f32 %v1359, 1.442695
  %v1397 = vpow.pop %v1396
  %v1398 = vmul.f32 %v1397, %v1386
  %v1399 = vmul.f32 %v1397, %v1395
  %v1400 = vmul.f32 %v1399, %v1361
  %v1401 = vadd.f32 %v1398, %v1400
  %v1402 = vsub.f32 %v1398, %v1400
  %v1403 = vmul.f32 %v1399, %v1364
  %1404 = vrot.lane.b32.xlu0 %v1351, 96
  %v1405 = vpop.permute.xlu0 %1404
  %v1407 = vmul.f32 %v1399, %v1405
  %v1408 = vmul.f32 %v1401, %v1158
  %1409 = vrot.lane.b32.xlu0 %v1158, 112
  %v1410 = vpop.permute.xlu0 %1409
  %v1412 = vmul.f32 %v1403, %v1410
  %v1413 = vadd.f32 %v1408, %v1412
  %v1414 = vmul.f32 %v1407, %v1158
  %v1415 = vmul.f32 %v1402, %v1410
  %v1416 = vadd.f32 %v1414, %v1415
  %v1417 = vmul.f32 %v1401, %v1401
  %1418 = vrot.lane.b32.xlu0 %v1158, 96
  %v1419 = vpop.permute.xlu0 %1418
  %v1421 = vmul.f32 %v1417, %v1419
  %v1422 = vmul.f32 %v1401, 2.0
  %v1423 = vmul.f32 %v1422, %v1403
  %1424 = vrot.lane.b32.xlu0 %v1158, 64
  %v1425 = vpop.permute.xlu0 %1424
  %v1427 = vmul.f32 %v1423, %v1425
  %v1428 = vadd.f32 %v1421, %v1427
  %v1429 = vmul.f32 %v1403, %v1403
  %1430 = vrot.lane.b32.xlu0 %v1158, 80
  %v1431 = vpop.permute.xlu0 %1430
  %v1433 = vmul.f32 %v1429, %v1431
  %v1434 = vadd.f32 %v1428, %v1433
  %v1435 = vmul.f32 %v440, %v1278
  %v1436 = vadd.f32 %v1434, %v1435
  %v1437 = vmul.f32 %v1407, %v1407
  %v1438 = vmul.f32 %v1437, %v1419
  %v1439 = vmul.f32 %v1407, 2.0
  %v1440 = vmul.f32 %v1439, %v1402
  %v1441 = vmul.f32 %v1440, %v1425
  %v1442 = vadd.f32 %v1438, %v1441
  %v1443 = vmul.f32 %v1402, %v1402
  %v1444 = vmul.f32 %v1443, %v1431
  %v1445 = vadd.f32 %v1442, %v1444
  %1447 = vrot.lane.b32.xlu0 %v1435, 112
  %v1448 = vpop.permute.xlu0 %1447
  %v1450 = vadd.f32 %v1445, %v1448
  %v1451 = vmul.f32 %v1401, %v1407
  %v1452 = vmul.f32 %v1451, %v1419
  %v1453 = vmul.f32 %v1401, %v1402
  %v1454 = vmul.f32 %v1403, %v1407
  %v1455 = vadd.f32 %v1453, %v1454
  %v1456 = vmul.f32 %v1455, %v1425
  %v1457 = vadd.f32 %v1452, %v1456
  %v1458 = vmul.f32 %v1403, %v1402
  %v1459 = vmul.f32 %v1458, %v1431
  %v1460 = vadd.f32 %v1457, %v1459
  %1462 = vrot.lane.b32.xlu0 %v1416, 16
  %v1463 = vpop.permute.xlu0 %1462
  %1466 = vrot.lane.b32.xlu0 %v1436, 32
  %v1467 = vpop.permute.xlu0 %1466
  %1470 = vrot.lane.b32.xlu0 %v1450, 48
  %v1471 = vpop.permute.xlu0 %1470
  %1474 = vrot.lane.b32.xlu0 %v1460, 64
  %v1475 = vpop.permute.xlu0 %1474
  %v1477 = vsel %vm740, %v1413, %v1463
  %v1478 = vsel %vm184, %v1477, %v1467
  %v1479 = vsel %vm743, %v1478, %v1471
  %v1480 = vsel %vm745, %v1479, %v1475
  %1482 = vrot.lane.b32.xlu0 %v1188, 112
  %v1483 = vpop.permute.xlu0 %1482
  %v1485 = vadd.f32 %v1436, %v1483
  %v1486 = vrcp.pop %v1485
  %v1487 = vmul.f32 %v1436, %v1486
  %v1488 = vmul.f32 %v1460, %v1486
  %v1489 = vsub.f32 %v1187, %v1413
  %v1490 = vsub.f32 1.0, %v1487
  %v1491 = vmul.f32 %v1487, %v1489
  %v1492 = vadd.f32 %v1413, %v1491
  %v1493 = vmul.f32 %v1488, %v1489
  %v1494 = vadd.f32 %v1416, %v1493
  %v1495 = vmul.f32 %v1490, %v1436
  %v1496 = vmul.f32 %v1488, %v1460
  %v1497 = vsub.f32 %v1450, %v1496
  %v1498 = vmul.f32 %v1490, %v1460
  %1500 = vrot.lane.b32.xlu0 %v1494, 16
  %v1501 = vpop.permute.xlu0 %1500
  %1504 = vrot.lane.b32.xlu0 %v1495, 32
  %v1505 = vpop.permute.xlu0 %1504
  %1508 = vrot.lane.b32.xlu0 %v1497, 48
  %v1509 = vpop.permute.xlu0 %1508
  %1512 = vrot.lane.b32.xlu0 %v1498, 64
  %v1513 = vpop.permute.xlu0 %1512
  %v1515 = vsel %vm740, %v1492, %v1501
  %v1516 = vsel %vm184, %v1515, %v1505
  %v1517 = vsel %vm743, %v1516, %v1509
  %v1518 = vsel %vm745, %v1517, %v1513
  %v1519 = vsel %vm1190, 1, 0
  %1520 = vset.pattern.permute.xlu0 9
  %1521 = vperm.xlu0 %1520, %v1519
  %v1522 = vpop.permute.xlu0 %1521
  %vm1523 = vcmp.eq.s32.totalorder %v1522, 1
  %v1524 = vsel %vm1523, %v1518, %v1480
  %1526 = vrot.lane.b32.xlu0 %v1488, 16
  %v1527 = vpop.permute.xlu0 %1526
  %v1529 = vsel %vm740, %v1487, %v1527
  %v1530 = vsel %vm1523, %v1529, 0.0
  %1532 = vrot.lane.b32.xlu0 %v1480, 80
  %v1533 = vpop.permute.xlu0 %1532
  %1536 = vrot.lane.b32.xlu0 %v1530, 32
  %v1537 = vpop.permute.xlu0 %1536
  %1540 = vrot.lane.b32.xlu0 %v1187, 64
  %v1541 = vpop.permute.xlu0 %1540
  %1543 = vrot.lane.b32.xlu0 %v1188, 64
  %v1544 = vpop.permute.xlu0 %1543
  %v1546 = vsel %vm812, %v1524, %v1533
  %v1547 = vsel %vm184, %v1533, %v1537
  %v1548 = vsel %vm745, %v1547, %v1541
  %v1549 = vsel %vm812, %v1548, %v1544
  %v1550 = vsel %vm817, %v1549, 0.0
  %1551 = vst [vmem:[%s2 + $0x20] sm:$0xff] %v1546
  %1552 = vst [vmem:[%s2 + $0x28] sm:$0xff] %v1550
  %v1553 = vld [vmem:[#allocation2 + $0x18] sm:$0xff]
  %v1554 = vmul.f32 %v1553, %v1553
  %v1555 = vld [vmem:[%s0 + $0x18] sm:$0xff]
  %vm1556 = vcmp.gt.f32.partialorder %v1555, 0.5
  %v1558 = vsel %vm184, %v1524, 0
  %1560 = vmatprep.subr.mxu0 0.0
  %1561 = vmatpush1.msra.mxu0 %v20
  %1562 = vmatprep.subr.mxu0 0.0
  %1563 = vmatpush1.msra.mxu0 %v21
  %1564 = vmatprep.subr.mxu0 0.0
  %1565 = vmatpush1.msra.mxu0 %v22
  %1566 = vmatprep.subr.mxu0 0.0
  %1567 = vmatpush1.msra.mxu0 %v23
  %1568 = vmatprep.subr.mxu0 0.0
  %1569 = vmatpush1.msra.mxu0 0.0
  %1570 = vmatprep.subr.mxu0 0.0
  %1571 = vmatpush1.msra.mxu0 0.0
  %1572 = vmatprep.subr.mxu0 0.0
  %1573 = vmatpush1.msra.mxu0 0.0
  %1574 = vmatprep.subr.mxu0 0.0
  %1575 = vmatpush1.msra.mxu0 0.0
  %1576 = vmatprep.subr.mxu0 0.0
  %1577 = vmatpush1.msra.mxu0 0.0
  %1578 = vmatprep.subr.mxu0 0.0
  %1579 = vmatpush1.msra.mxu0 0.0
  %1580 = vmatprep.subr.mxu0 0.0
  %1581 = vmatpush1.msra.mxu0 0.0
  %1582 = vmatprep.subr.mxu0 0.0
  %1583 = vmatpush1.msra.mxu0 0.0
  %1584 = vmatprep.subr.mxu0 0.0
  %1585 = vmatpush1.msra.mxu0 0.0
  %1586 = vmatprep.subr.mxu0 0.0
  %1587 = vmatpush1.msra.mxu0 0.0
  %1588 = vmatprep.subr.mxu0 0.0
  %1589 = vmatpush1.msra.mxu0 0.0
  %1590 = vmatprep.subr.mxu0 0.0
  %1591 = vmatpush1.msra.mxu0 0.0
  %1592 = vmatprep.subr.mxu0 0.0
  %1593 = vmatpush1.msra.mxu0 0.0
  %1594 = vmatprep.subr.mxu0 0.0
  %1595 = vmatpush1.msra.mxu0 0.0
  %1596 = vmatprep.subr.mxu0 0.0
  %1597 = vmatpush1.msra.mxu0 0.0
  %1598 = vmatprep.subr.mxu0 0.0
  %1599 = vmatpush1.msra.mxu0 0.0
  %1600 = vmatprep.subr.mxu0 0.0
  %1601 = vmatpush1.msra.mxu0 0.0
  %1602 = vmatprep.subr.mxu0 0.0
  %1603 = vmatpush1.msra.mxu0 0.0
  %1604 = vmatprep.subr.mxu0 0.0
  %1605 = vmatpush1.msra.mxu0 0.0
  %1606 = vmatprep.subr.mxu0 0.0
  %1607 = vmatpush1.msra.mxu0 0.0
  %1608 = vmatprep.subr.mxu0 0.0
  %1609 = vmatpush1.msra.mxu0 0.0
  %1610 = vmatprep.subr.mxu0 0.0
  %1611 = vmatpush1.msra.mxu0 0.0
  %1612 = vmatprep.subr.mxu0 0.0
  %1613 = vmatpush1.msra.mxu0 0.0
  %1614 = vmatprep.subr.mxu0 0.0
  %1615 = vmatpush1.msra.mxu0 0.0
  %1616 = vmatprep.subr.mxu0 0.0
  %1617 = vmatpush1.msra.mxu0 0.0
  %1618 = vmatprep.subr.mxu0 0.0
  %1619 = vmatpush1.msra.mxu0 0.0
  %1620 = vmatprep.subr.mxu0 0.0
  %1621 = vmatpush1.msra.mxu0 0.0
  %1622 = vmatprep.subr.mxu0 0.0
  %1623 = vmatpush1.msra.mxu0 0.0
  %1624 = vmatprep.mubr.f32.mxu0 0.0
  %1625 = vmatmul.mubr.f32.gmra.mrb[0].mxu0 %v1558
  %v1626 = vpop.f32.mrb[0].mxu0
  %v1627 = vadd.f32 %v452, %v1626
  %v1628 = vpop.f32.mrb[0].mxu0
  %1629 = vdwg.mxu0
  %v1630 = vsel %vm38, %v1627, -inf
  %1631 = vmax.xlane.f32.xlu0 %v1630
  %v1632 = vpop.xlane.xlu0 %1631
  %v1633 = vsub.f32 %v1627, %v1632
  %v1634 = vmul.f32 %v1633, 1.442695
  %v1635 = vpow.pop %v1634
  %v1636 = vsel %vm38, %v1635, 0.0
  %1637 = vadd.xlane.f32.xlu0 %v1636
  %v1638 = vpop.xlane.xlu0 %1637
  %v1639 = vrcp.pop %v1638
  %v1640 = vmul.f32 %v1635, %v1639
  %1642 = vset.pattern.permute.xlu0 8
  %1643 = vperm.xlu0 %1642, %v1555
  %v1644 = vpop.permute.xlu0 %1643
  %v1646 = vmul.f32 %v1640, %v1644
  %v1648 = vsel %vm38, %v1646, 0
  %1650 = vmatprep.subr.mxu0 0.0
  %1651 = vmatpush1.msra.mxu0 %v25
  %1652 = vmatprep.subr.mxu0 0.0
  %1653 = vmatpush1.msra.mxu0 0.0
  %1654 = vmatprep.subr.mxu0 0.0
  %1655 = vmatpush1.msra.mxu0 0.0
  %1656 = vmatprep.subr.mxu0 0.0
  %1657 = vmatpush1.msra.mxu0 0.0
  %1658 = vmatprep.subr.mxu0 0.0
  %1659 = vmatpush1.msra.mxu0 0.0
  %1660 = vmatprep.subr.mxu0 0.0
  %1661 = vmatpush1.msra.mxu0 0.0
  %1662 = vmatprep.subr.mxu0 0.0
  %1663 = vmatpush1.msra.mxu0 0.0
  %1664 = vmatprep.subr.mxu0 0.0
  %1665 = vmatpush1.msra.mxu0 0.0
  %1666 = vmatprep.subr.mxu0 0.0
  %1667 = vmatpush1.msra.mxu0 0.0
  %1668 = vmatprep.subr.mxu0 0.0
  %1669 = vmatpush1.msra.mxu0 0.0
  %1670 = vmatprep.subr.mxu0 0.0
  %1671 = vmatpush1.msra.mxu0 0.0
  %1672 = vmatprep.subr.mxu0 0.0
  %1673 = vmatpush1.msra.mxu0 0.0
  %1674 = vmatprep.subr.mxu0 0.0
  %1675 = vmatpush1.msra.mxu0 0.0
  %1676 = vmatprep.subr.mxu0 0.0
  %1677 = vmatpush1.msra.mxu0 0.0
  %1678 = vmatprep.subr.mxu0 0.0
  %1679 = vmatpush1.msra.mxu0 0.0
  %1680 = vmatprep.subr.mxu0 0.0
  %1681 = vmatpush1.msra.mxu0 0.0
  %1682 = vmatprep.subr.mxu0 0.0
  %1683 = vmatpush1.msra.mxu0 0.0
  %1684 = vmatprep.subr.mxu0 0.0
  %1685 = vmatpush1.msra.mxu0 0.0
  %1686 = vmatprep.subr.mxu0 0.0
  %1687 = vmatpush1.msra.mxu0 0.0
  %1688 = vmatprep.subr.mxu0 0.0
  %1689 = vmatpush1.msra.mxu0 0.0
  %1690 = vmatprep.subr.mxu0 0.0
  %1691 = vmatpush1.msra.mxu0 0.0
  %1692 = vmatprep.subr.mxu0 0.0
  %1693 = vmatpush1.msra.mxu0 0.0
  %1694 = vmatprep.subr.mxu0 0.0
  %1695 = vmatpush1.msra.mxu0 0.0
  %1696 = vmatprep.subr.mxu0 0.0
  %1697 = vmatpush1.msra.mxu0 0.0
  %1698 = vmatprep.subr.mxu0 0.0
  %1699 = vmatpush1.msra.mxu0 0.0
  %1700 = vmatprep.subr.mxu0 0.0
  %1701 = vmatpush1.msra.mxu0 0.0
  %1702 = vmatprep.subr.mxu0 0.0
  %1703 = vmatpush1.msra.mxu0 0.0
  %1704 = vmatprep.subr.mxu0 0.0
  %1705 = vmatpush1.msra.mxu0 0.0
  %1706 = vmatprep.subr.mxu0 0.0
  %1707 = vmatpush1.msra.mxu0 0.0
  %1708 = vmatprep.subr.mxu0 0.0
  %1709 = vmatpush1.msra.mxu0 0.0
  %1710 = vmatprep.subr.mxu0 0.0
  %1711 = vmatpush1.msra.mxu0 0.0
  %1712 = vmatprep.subr.mxu0 0.0
  %1713 = vmatpush1.msra.mxu0 0.0
  %1714 = vmatprep.mubr.f32.mxu0 0.0
  %1715 = vmatmul.mubr.f32.gmra.mrb[0].mxu0 %v1648
  %v1716 = vpop.f32.mrb[0].mxu0
  %v1717 = vadd.f32 0.0, %v1716
  %v1718 = vpop.f32.mrb[0].mxu0
  %1719 = vdwg.mxu0
  %1721 = vrot.lane.b32.xlu0 %v1717, 80
  %v1722 = vpop.permute.xlu0 %1721
  %v1724 = vadd.f32 %v1717, %v1722
  %v1725 = vmul.f32 %v1724, 0.5
  %v1726 = vsub.f32 %v1717, %v1722
  %v1727 = vmul.f32 %v1726, 0.5
  %v1728 = vmul.f32 %v1727, %v1727
  %1729 = vrot.lane.b32.xlu0 %v1717, 112
  %v1730 = vpop.permute.xlu0 %1729
  %v1732 = vmul.f32 %v1717, %v1730
  %1734 = vrot.lane.b32.xlu0 %v1732, 112
  %v1735 = vpop.permute.xlu0 %1734
  %v1737 = vadd.f32 %v1728, %v1735
  %v1738 = vmax.f32 %v1737, 0.0
  %v1739 = vrsqrt.pop %v1738
  %v1740 = vmul.f32 %v1738, %v1739
  %vm1741 = vcmp.eq.f32.partialorder %v1738, inf
  %v1742 = vsel %vm1741, %v1738, %v1740
  %vm1743 = vcmp.eq.f32.partialorder %v1738, 0.0
  %v1744 = vand.u32 %v1738, 2147483648
  %v1745 = vsel %vm1743, %v1744, %v1742
  %v1746 = vmul.f32 %v1745, 1.442695
  %v1747 = vpow.pop %v1746
  %v1748 = vsub.f32 0.0, %v1745
  %v1749 = vmul.f32 %v1748, 1.442695
  %v1750 = vpow.pop %v1749
  %v1751 = vadd.f32 %v1747, %v1750
  %v1752 = vmul.f32 %v1751, 0.5
  %vm1753 = vcmp.gt.f32.partialorder %v1745, 0.001
  %v1754 = vsub.f32 %v1747, %v1750
  %v1755 = vmul.f32 %v1754, 0.5
  %v1756 = vmax.f32 %v1745, 1e-12
  %v1757 = vrcp.pop %v1756
  %v1758 = vmul.f32 %v1755, %v1757
  %v1759 = vmul.f32 %v1737, %v655
  %v1760 = vadd.f32 %v1759, 1.0
  %v1761 = vsel %vm1753, %v1758, %v1760
  %v1762 = vmul.f32 %v1725, 1.442695
  %v1763 = vpow.pop %v1762
  %v1764 = vmul.f32 %v1763, %v1752
  %v1765 = vmul.f32 %v1763, %v1761
  %v1766 = vmul.f32 %v1765, %v1727
  %v1767 = vadd.f32 %v1764, %v1766
  %v1768 = vsub.f32 %v1764, %v1766
  %v1769 = vmul.f32 %v1765, %v1730
  %1770 = vrot.lane.b32.xlu0 %v1717, 96
  %v1771 = vpop.permute.xlu0 %1770
  %v1773 = vmul.f32 %v1765, %v1771
  %v1774 = vmul.f32 %v1767, %v1524
  %1775 = vrot.lane.b32.xlu0 %v1524, 112
  %v1776 = vpop.permute.xlu0 %1775
  %v1778 = vmul.f32 %v1769, %v1776
  %v1779 = vadd.f32 %v1774, %v1778
  %v1780 = vmul.f32 %v1773, %v1524
  %v1781 = vmul.f32 %v1768, %v1776
  %v1782 = vadd.f32 %v1780, %v1781
  %v1783 = vmul.f32 %v1767, %v1767
  %1784 = vrot.lane.b32.xlu0 %v1524, 96
  %v1785 = vpop.permute.xlu0 %1784
  %v1787 = vmul.f32 %v1783, %v1785
  %v1788 = vmul.f32 %v1767, 2.0
  %v1789 = vmul.f32 %v1788, %v1769
  %1790 = vrot.lane.b32.xlu0 %v1524, 64
  %v1791 = vpop.permute.xlu0 %1790
  %v1793 = vmul.f32 %v1789, %v1791
  %v1794 = vadd.f32 %v1787, %v1793
  %v1795 = vmul.f32 %v1769, %v1769
  %1796 = vrot.lane.b32.xlu0 %v1524, 80
  %v1797 = vpop.permute.xlu0 %1796
  %v1799 = vmul.f32 %v1795, %v1797
  %v1800 = vadd.f32 %v1794, %v1799
  %v1801 = vmul.f32 %v440, %v1644
  %v1802 = vadd.f32 %v1800, %v1801
  %v1803 = vmul.f32 %v1773, %v1773
  %v1804 = vmul.f32 %v1803, %v1785
  %v1805 = vmul.f32 %v1773, 2.0
  %v1806 = vmul.f32 %v1805, %v1768
  %v1807 = vmul.f32 %v1806, %v1791
  %v1808 = vadd.f32 %v1804, %v1807
  %v1809 = vmul.f32 %v1768, %v1768
  %v1810 = vmul.f32 %v1809, %v1797
  %v1811 = vadd.f32 %v1808, %v1810
  %1813 = vrot.lane.b32.xlu0 %v1801, 112
  %v1814 = vpop.permute.xlu0 %1813
  %v1816 = vadd.f32 %v1811, %v1814
  %v1817 = vmul.f32 %v1767, %v1773
  %v1818 = vmul.f32 %v1817, %v1785
  %v1819 = vmul.f32 %v1767, %v1768
  %v1820 = vmul.f32 %v1769, %v1773
  %v1821 = vadd.f32 %v1819, %v1820
  %v1822 = vmul.f32 %v1821, %v1791
  %v1823 = vadd.f32 %v1818, %v1822
  %v1824 = vmul.f32 %v1769, %v1768
  %v1825 = vmul.f32 %v1824, %v1797
  %v1826 = vadd.f32 %v1823, %v1825
  %1828 = vrot.lane.b32.xlu0 %v1782, 16
  %v1829 = vpop.permute.xlu0 %1828
  %1832 = vrot.lane.b32.xlu0 %v1802, 32
  %v1833 = vpop.permute.xlu0 %1832
  %1836 = vrot.lane.b32.xlu0 %v1816, 48
  %v1837 = vpop.permute.xlu0 %1836
  %1840 = vrot.lane.b32.xlu0 %v1826, 64
  %v1841 = vpop.permute.xlu0 %1840
  %v1843 = vsel %vm740, %v1779, %v1829
  %v1844 = vsel %vm184, %v1843, %v1833
  %v1845 = vsel %vm743, %v1844, %v1837
  %v1846 = vsel %vm745, %v1845, %v1841
  %1848 = vrot.lane.b32.xlu0 %v1554, 112
  %v1849 = vpop.permute.xlu0 %1848
  %v1851 = vadd.f32 %v1802, %v1849
  %v1852 = vrcp.pop %v1851
  %v1853 = vmul.f32 %v1802, %v1852
  %v1854 = vmul.f32 %v1826, %v1852
  %v1855 = vsub.f32 %v1553, %v1779
  %v1856 = vsub.f32 1.0, %v1853
  %v1857 = vmul.f32 %v1853, %v1855
  %v1858 = vadd.f32 %v1779, %v1857
  %v1859 = vmul.f32 %v1854, %v1855
  %v1860 = vadd.f32 %v1782, %v1859
  %v1861 = vmul.f32 %v1856, %v1802
  %v1862 = vmul.f32 %v1854, %v1826
  %v1863 = vsub.f32 %v1816, %v1862
  %v1864 = vmul.f32 %v1856, %v1826
  %1866 = vrot.lane.b32.xlu0 %v1860, 16
  %v1867 = vpop.permute.xlu0 %1866
  %1870 = vrot.lane.b32.xlu0 %v1861, 32
  %v1871 = vpop.permute.xlu0 %1870
  %1874 = vrot.lane.b32.xlu0 %v1863, 48
  %v1875 = vpop.permute.xlu0 %1874
  %1878 = vrot.lane.b32.xlu0 %v1864, 64
  %v1879 = vpop.permute.xlu0 %1878
  %v1881 = vsel %vm740, %v1858, %v1867
  %v1882 = vsel %vm184, %v1881, %v1871
  %v1883 = vsel %vm743, %v1882, %v1875
  %v1884 = vsel %vm745, %v1883, %v1879
  %v1885 = vsel %vm1556, 1, 0
  %1886 = vset.pattern.permute.xlu0 9
  %1887 = vperm.xlu0 %1886, %v1885
  %v1888 = vpop.permute.xlu0 %1887
  %vm1889 = vcmp.eq.s32.totalorder %v1888, 1
  %v1890 = vsel %vm1889, %v1884, %v1846
  %1892 = vrot.lane.b32.xlu0 %v1854, 16
  %v1893 = vpop.permute.xlu0 %1892
  %v1895 = vsel %vm740, %v1853, %v1893
  %v1896 = vsel %vm1889, %v1895, 0.0
  %1898 = vrot.lane.b32.xlu0 %v1846, 80
  %v1899 = vpop.permute.xlu0 %1898
  %1902 = vrot.lane.b32.xlu0 %v1896, 32
  %v1903 = vpop.permute.xlu0 %1902
  %1906 = vrot.lane.b32.xlu0 %v1553, 64
  %v1907 = vpop.permute.xlu0 %1906
  %1909 = vrot.lane.b32.xlu0 %v1554, 64
  %v1910 = vpop.permute.xlu0 %1909
  %v1912 = vsel %vm812, %v1890, %v1899
  %v1913 = vsel %vm184, %v1899, %v1903
  %v1914 = vsel %vm745, %v1913, %v1907
  %v1915 = vsel %vm812, %v1914, %v1910
  %v1916 = vsel %vm817, %v1915, 0.0
  %1917 = vst [vmem:[%s2 + $0x30] sm:$0xff] %v1912
  %1918 = vst [vmem:[%s2 + $0x38] sm:$0xff] %v1916
  %v1919 = vld [vmem:[#allocation2 + $0x20] sm:$0xff]
  %v1920 = vmul.f32 %v1919, %v1919
  %v1921 = vld [vmem:[%s0 + $0x20] sm:$0xff]
  %vm1922 = vcmp.gt.f32.partialorder %v1921, 0.5
  %v1924 = vsel %vm184, %v1890, 0
  %1926 = vmatprep.subr.mxu0 0.0
  %1927 = vmatpush1.msra.mxu0 %v20
  %1928 = vmatprep.subr.mxu0 0.0
  %1929 = vmatpush1.msra.mxu0 %v21
  %1930 = vmatprep.subr.mxu0 0.0
  %1931 = vmatpush1.msra.mxu0 %v22
  %1932 = vmatprep.subr.mxu0 0.0
  %1933 = vmatpush1.msra.mxu0 %v23
  %1934 = vmatprep.subr.mxu0 0.0
  %1935 = vmatpush1.msra.mxu0 0.0
  %1936 = vmatprep.subr.mxu0 0.0
  %1937 = vmatpush1.msra.mxu0 0.0
  %1938 = vmatprep.subr.mxu0 0.0
  %1939 = vmatpush1.msra.mxu0 0.0
  %1940 = vmatprep.subr.mxu0 0.0
  %1941 = vmatpush1.msra.mxu0 0.0
  %1942 = vmatprep.subr.mxu0 0.0
  %1943 = vmatpush1.msra.mxu0 0.0
  %1944 = vmatprep.subr.mxu0 0.0
  %1945 = vmatpush1.msra.mxu0 0.0
  %1946 = vmatprep.subr.mxu0 0.0
  %1947 = vmatpush1.msra.mxu0 0.0
  %1948 = vmatprep.subr.mxu0 0.0
  %1949 = vmatpush1.msra.mxu0 0.0
  %1950 = vmatprep.subr.mxu0 0.0
  %1951 = vmatpush1.msra.mxu0 0.0
  %1952 = vmatprep.subr.mxu0 0.0
  %1953 = vmatpush1.msra.mxu0 0.0
  %1954 = vmatprep.subr.mxu0 0.0
  %1955 = vmatpush1.msra.mxu0 0.0
  %1956 = vmatprep.subr.mxu0 0.0
  %1957 = vmatpush1.msra.mxu0 0.0
  %1958 = vmatprep.subr.mxu0 0.0
  %1959 = vmatpush1.msra.mxu0 0.0
  %1960 = vmatprep.subr.mxu0 0.0
  %1961 = vmatpush1.msra.mxu0 0.0
  %1962 = vmatprep.subr.mxu0 0.0
  %1963 = vmatpush1.msra.mxu0 0.0
  %1964 = vmatprep.subr.mxu0 0.0
  %1965 = vmatpush1.msra.mxu0 0.0
  %1966 = vmatprep.subr.mxu0 0.0
  %1967 = vmatpush1.msra.mxu0 0.0
  %1968 = vmatprep.subr.mxu0 0.0
  %1969 = vmatpush1.msra.mxu0 0.0
  %1970 = vmatprep.subr.mxu0 0.0
  %1971 = vmatpush1.msra.mxu0 0.0
  %1972 = vmatprep.subr.mxu0 0.0
  %1973 = vmatpush1.msra.mxu0 0.0
  %1974 = vmatprep.subr.mxu0 0.0
  %1975 = vmatpush1.msra.mxu0 0.0
  %1976 = vmatprep.subr.mxu0 0.0
  %1977 = vmatpush1.msra.mxu0 0.0
  %1978 = vmatprep.subr.mxu0 0.0
  %1979 = vmatpush1.msra.mxu0 0.0
  %1980 = vmatprep.subr.mxu0 0.0
  %1981 = vmatpush1.msra.mxu0 0.0
  %1982 = vmatprep.subr.mxu0 0.0
  %1983 = vmatpush1.msra.mxu0 0.0
  %1984 = vmatprep.subr.mxu0 0.0
  %1985 = vmatpush1.msra.mxu0 0.0
  %1986 = vmatprep.subr.mxu0 0.0
  %1987 = vmatpush1.msra.mxu0 0.0
  %1988 = vmatprep.subr.mxu0 0.0
  %1989 = vmatpush1.msra.mxu0 0.0
  %1990 = vmatprep.mubr.f32.mxu0 0.0
  %1991 = vmatmul.mubr.f32.gmra.mrb[0].mxu0 %v1924
  %v1992 = vpop.f32.mrb[0].mxu0
  %v1993 = vadd.f32 %v452, %v1992
  %v1994 = vpop.f32.mrb[0].mxu0
  %1995 = vdwg.mxu0
  %v1996 = vsel %vm38, %v1993, -inf
  %1997 = vmax.xlane.f32.xlu0 %v1996
  %v1998 = vpop.xlane.xlu0 %1997
  %v1999 = vsub.f32 %v1993, %v1998
  %v2000 = vmul.f32 %v1999, 1.442695
  %v2001 = vpow.pop %v2000
  %v2002 = vsel %vm38, %v2001, 0.0
  %2003 = vadd.xlane.f32.xlu0 %v2002
  %v2004 = vpop.xlane.xlu0 %2003
  %v2005 = vrcp.pop %v2004
  %v2006 = vmul.f32 %v2001, %v2005
  %2008 = vset.pattern.permute.xlu0 8
  %2009 = vperm.xlu0 %2008, %v1921
  %v2010 = vpop.permute.xlu0 %2009
  %v2012 = vmul.f32 %v2006, %v2010
  %v2014 = vsel %vm38, %v2012, 0
  %2016 = vmatprep.subr.mxu0 0.0
  %2017 = vmatpush1.msra.mxu0 %v25
  %2018 = vmatprep.subr.mxu0 0.0
  %2019 = vmatpush1.msra.mxu0 0.0
  %2020 = vmatprep.subr.mxu0 0.0
  %2021 = vmatpush1.msra.mxu0 0.0
  %2022 = vmatprep.subr.mxu0 0.0
  %2023 = vmatpush1.msra.mxu0 0.0
  %2024 = vmatprep.subr.mxu0 0.0
  %2025 = vmatpush1.msra.mxu0 0.0
  %2026 = vmatprep.subr.mxu0 0.0
  %2027 = vmatpush1.msra.mxu0 0.0
  %2028 = vmatprep.subr.mxu0 0.0
  %2029 = vmatpush1.msra.mxu0 0.0
  %2030 = vmatprep.subr.mxu0 0.0
  %2031 = vmatpush1.msra.mxu0 0.0
  %2032 = vmatprep.subr.mxu0 0.0
  %2033 = vmatpush1.msra.mxu0 0.0
  %2034 = vmatprep.subr.mxu0 0.0
  %2035 = vmatpush1.msra.mxu0 0.0
  %2036 = vmatprep.subr.mxu0 0.0
  %2037 = vmatpush1.msra.mxu0 0.0
  %2038 = vmatprep.subr.mxu0 0.0
  %2039 = vmatpush1.msra.mxu0 0.0
  %2040 = vmatprep.subr.mxu0 0.0
  %2041 = vmatpush1.msra.mxu0 0.0
  %2042 = vmatprep.subr.mxu0 0.0
  %2043 = vmatpush1.msra.mxu0 0.0
  %2044 = vmatprep.subr.mxu0 0.0
  %2045 = vmatpush1.msra.mxu0 0.0
  %2046 = vmatprep.subr.mxu0 0.0
  %2047 = vmatpush1.msra.mxu0 0.0
  %2048 = vmatprep.subr.mxu0 0.0
  %2049 = vmatpush1.msra.mxu0 0.0
  %2050 = vmatprep.subr.mxu0 0.0
  %2051 = vmatpush1.msra.mxu0 0.0
  %2052 = vmatprep.subr.mxu0 0.0
  %2053 = vmatpush1.msra.mxu0 0.0
  %2054 = vmatprep.subr.mxu0 0.0
  %2055 = vmatpush1.msra.mxu0 0.0
  %2056 = vmatprep.subr.mxu0 0.0
  %2057 = vmatpush1.msra.mxu0 0.0
  %2058 = vmatprep.subr.mxu0 0.0
  %2059 = vmatpush1.msra.mxu0 0.0
  %2060 = vmatprep.subr.mxu0 0.0
  %2061 = vmatpush1.msra.mxu0 0.0
  %2062 = vmatprep.subr.mxu0 0.0
  %2063 = vmatpush1.msra.mxu0 0.0
  %2064 = vmatprep.subr.mxu0 0.0
  %2065 = vmatpush1.msra.mxu0 0.0
  %2066 = vmatprep.subr.mxu0 0.0
  %2067 = vmatpush1.msra.mxu0 0.0
  %2068 = vmatprep.subr.mxu0 0.0
  %2069 = vmatpush1.msra.mxu0 0.0
  %2070 = vmatprep.subr.mxu0 0.0
  %2071 = vmatpush1.msra.mxu0 0.0
  %2072 = vmatprep.subr.mxu0 0.0
  %2073 = vmatpush1.msra.mxu0 0.0
  %2074 = vmatprep.subr.mxu0 0.0
  %2075 = vmatpush1.msra.mxu0 0.0
  %2076 = vmatprep.subr.mxu0 0.0
  %2077 = vmatpush1.msra.mxu0 0.0
  %2078 = vmatprep.subr.mxu0 0.0
  %2079 = vmatpush1.msra.mxu0 0.0
  %2080 = vmatprep.mubr.f32.mxu0 0.0
  %2081 = vmatmul.mubr.f32.gmra.mrb[0].mxu0 %v2014
  %v2082 = vpop.f32.mrb[0].mxu0
  %v2083 = vadd.f32 0.0, %v2082
  %v2084 = vpop.f32.mrb[0].mxu0
  %2085 = vdwg.mxu0
  %2087 = vrot.lane.b32.xlu0 %v2083, 80
  %v2088 = vpop.permute.xlu0 %2087
  %v2090 = vadd.f32 %v2083, %v2088
  %v2091 = vmul.f32 %v2090, 0.5
  %v2092 = vsub.f32 %v2083, %v2088
  %v2093 = vmul.f32 %v2092, 0.5
  %v2094 = vmul.f32 %v2093, %v2093
  %2095 = vrot.lane.b32.xlu0 %v2083, 112
  %v2096 = vpop.permute.xlu0 %2095
  %v2098 = vmul.f32 %v2083, %v2096
  %2100 = vrot.lane.b32.xlu0 %v2098, 112
  %v2101 = vpop.permute.xlu0 %2100
  %v2103 = vadd.f32 %v2094, %v2101
  %v2104 = vmax.f32 %v2103, 0.0
  %v2105 = vrsqrt.pop %v2104
  %v2106 = vmul.f32 %v2104, %v2105
  %vm2107 = vcmp.eq.f32.partialorder %v2104, inf
  %v2108 = vsel %vm2107, %v2104, %v2106
  %vm2109 = vcmp.eq.f32.partialorder %v2104, 0.0
  %v2110 = vand.u32 %v2104, 2147483648
  %v2111 = vsel %vm2109, %v2110, %v2108
  %v2112 = vmul.f32 %v2111, 1.442695
  %v2113 = vpow.pop %v2112
  %v2114 = vsub.f32 0.0, %v2111
  %v2115 = vmul.f32 %v2114, 1.442695
  %v2116 = vpow.pop %v2115
  %v2117 = vadd.f32 %v2113, %v2116
  %v2118 = vmul.f32 %v2117, 0.5
  %vm2119 = vcmp.gt.f32.partialorder %v2111, 0.001
  %v2120 = vsub.f32 %v2113, %v2116
  %v2121 = vmul.f32 %v2120, 0.5
  %v2122 = vmax.f32 %v2111, 1e-12
  %v2123 = vrcp.pop %v2122
  %v2124 = vmul.f32 %v2121, %v2123
  %v2125 = vmul.f32 %v2103, %v655
  %v2126 = vadd.f32 %v2125, 1.0
  %v2127 = vsel %vm2119, %v2124, %v2126
  %v2128 = vmul.f32 %v2091, 1.442695
  %v2129 = vpow.pop %v2128
  %v2130 = vmul.f32 %v2129, %v2118
  %v2131 = vmul.f32 %v2129, %v2127
  %v2132 = vmul.f32 %v2131, %v2093
  %v2133 = vadd.f32 %v2130, %v2132
  %v2134 = vsub.f32 %v2130, %v2132
  %v2135 = vmul.f32 %v2131, %v2096
  %2136 = vrot.lane.b32.xlu0 %v2083, 96
  %v2137 = vpop.permute.xlu0 %2136
  %v2139 = vmul.f32 %v2131, %v2137
  %v2140 = vmul.f32 %v2133, %v1890
  %2141 = vrot.lane.b32.xlu0 %v1890, 112
  %v2142 = vpop.permute.xlu0 %2141
  %v2144 = vmul.f32 %v2135, %v2142
  %v2145 = vadd.f32 %v2140, %v2144
  %v2146 = vmul.f32 %v2139, %v1890
  %v2147 = vmul.f32 %v2134, %v2142
  %v2148 = vadd.f32 %v2146, %v2147
  %v2149 = vmul.f32 %v2133, %v2133
  %2150 = vrot.lane.b32.xlu0 %v1890, 96
  %v2151 = vpop.permute.xlu0 %2150
  %v2153 = vmul.f32 %v2149, %v2151
  %v2154 = vmul.f32 %v2133, 2.0
  %v2155 = vmul.f32 %v2154, %v2135
  %2156 = vrot.lane.b32.xlu0 %v1890, 64
  %v2157 = vpop.permute.xlu0 %2156
  %v2159 = vmul.f32 %v2155, %v2157
  %v2160 = vadd.f32 %v2153, %v2159
  %v2161 = vmul.f32 %v2135, %v2135
  %2162 = vrot.lane.b32.xlu0 %v1890, 80
  %v2163 = vpop.permute.xlu0 %2162
  %v2165 = vmul.f32 %v2161, %v2163
  %v2166 = vadd.f32 %v2160, %v2165
  %v2167 = vmul.f32 %v440, %v2010
  %v2168 = vadd.f32 %v2166, %v2167
  %v2169 = vmul.f32 %v2139, %v2139
  %v2170 = vmul.f32 %v2169, %v2151
  %v2171 = vmul.f32 %v2139, 2.0
  %v2172 = vmul.f32 %v2171, %v2134
  %v2173 = vmul.f32 %v2172, %v2157
  %v2174 = vadd.f32 %v2170, %v2173
  %v2175 = vmul.f32 %v2134, %v2134
  %v2176 = vmul.f32 %v2175, %v2163
  %v2177 = vadd.f32 %v2174, %v2176
  %2179 = vrot.lane.b32.xlu0 %v2167, 112
  %v2180 = vpop.permute.xlu0 %2179
  %v2182 = vadd.f32 %v2177, %v2180
  %v2183 = vmul.f32 %v2133, %v2139
  %v2184 = vmul.f32 %v2183, %v2151
  %v2185 = vmul.f32 %v2133, %v2134
  %v2186 = vmul.f32 %v2135, %v2139
  %v2187 = vadd.f32 %v2185, %v2186
  %v2188 = vmul.f32 %v2187, %v2157
  %v2189 = vadd.f32 %v2184, %v2188
  %v2190 = vmul.f32 %v2135, %v2134
  %v2191 = vmul.f32 %v2190, %v2163
  %v2192 = vadd.f32 %v2189, %v2191
  %2194 = vrot.lane.b32.xlu0 %v2148, 16
  %v2195 = vpop.permute.xlu0 %2194
  %2198 = vrot.lane.b32.xlu0 %v2168, 32
  %v2199 = vpop.permute.xlu0 %2198
  %2202 = vrot.lane.b32.xlu0 %v2182, 48
  %v2203 = vpop.permute.xlu0 %2202
  %2206 = vrot.lane.b32.xlu0 %v2192, 64
  %v2207 = vpop.permute.xlu0 %2206
  %v2209 = vsel %vm740, %v2145, %v2195
  %v2210 = vsel %vm184, %v2209, %v2199
  %v2211 = vsel %vm743, %v2210, %v2203
  %v2212 = vsel %vm745, %v2211, %v2207
  %2214 = vrot.lane.b32.xlu0 %v1920, 112
  %v2215 = vpop.permute.xlu0 %2214
  %v2217 = vadd.f32 %v2168, %v2215
  %v2218 = vrcp.pop %v2217
  %v2219 = vmul.f32 %v2168, %v2218
  %v2220 = vmul.f32 %v2192, %v2218
  %v2221 = vsub.f32 %v1919, %v2145
  %v2222 = vsub.f32 1.0, %v2219
  %v2223 = vmul.f32 %v2219, %v2221
  %v2224 = vadd.f32 %v2145, %v2223
  %v2225 = vmul.f32 %v2220, %v2221
  %v2226 = vadd.f32 %v2148, %v2225
  %v2227 = vmul.f32 %v2222, %v2168
  %v2228 = vmul.f32 %v2220, %v2192
  %v2229 = vsub.f32 %v2182, %v2228
  %v2230 = vmul.f32 %v2222, %v2192
  %2232 = vrot.lane.b32.xlu0 %v2226, 16
  %v2233 = vpop.permute.xlu0 %2232
  %2236 = vrot.lane.b32.xlu0 %v2227, 32
  %v2237 = vpop.permute.xlu0 %2236
  %2240 = vrot.lane.b32.xlu0 %v2229, 48
  %v2241 = vpop.permute.xlu0 %2240
  %2244 = vrot.lane.b32.xlu0 %v2230, 64
  %v2245 = vpop.permute.xlu0 %2244
  %v2247 = vsel %vm740, %v2224, %v2233
  %v2248 = vsel %vm184, %v2247, %v2237
  %v2249 = vsel %vm743, %v2248, %v2241
  %v2250 = vsel %vm745, %v2249, %v2245
  %v2251 = vsel %vm1922, 1, 0
  %2252 = vset.pattern.permute.xlu0 9
  %2253 = vperm.xlu0 %2252, %v2251
  %v2254 = vpop.permute.xlu0 %2253
  %vm2255 = vcmp.eq.s32.totalorder %v2254, 1
  %v2256 = vsel %vm2255, %v2250, %v2212
  %2258 = vrot.lane.b32.xlu0 %v2220, 16
  %v2259 = vpop.permute.xlu0 %2258
  %v2261 = vsel %vm740, %v2219, %v2259
  %v2262 = vsel %vm2255, %v2261, 0.0
  %2264 = vrot.lane.b32.xlu0 %v2212, 80
  %v2265 = vpop.permute.xlu0 %2264
  %2268 = vrot.lane.b32.xlu0 %v2262, 32
  %v2269 = vpop.permute.xlu0 %2268
  %2272 = vrot.lane.b32.xlu0 %v1919, 64
  %v2273 = vpop.permute.xlu0 %2272
  %2275 = vrot.lane.b32.xlu0 %v1920, 64
  %v2276 = vpop.permute.xlu0 %2275
  %v2278 = vsel %vm812, %v2256, %v2265
  %v2279 = vsel %vm184, %v2265, %v2269
  %v2280 = vsel %vm745, %v2279, %v2273
  %v2281 = vsel %vm812, %v2280, %v2276
  %v2282 = vsel %vm817, %v2281, 0.0
  %2283 = vst [vmem:[%s2 + $0x40] sm:$0xff] %v2278
  %2284 = vst [vmem:[%s2 + $0x48] sm:$0xff] %v2282
  %v2285 = vld [vmem:[#allocation2 + $0x28] sm:$0xff]
  %v2286 = vmul.f32 %v2285, %v2285
  %v2287 = vld [vmem:[%s0 + $0x28] sm:$0xff]
  %vm2288 = vcmp.gt.f32.partialorder %v2287, 0.5
  %v2290 = vsel %vm184, %v2256, 0
  %2292 = vmatprep.subr.mxu0 0.0
  %2293 = vmatpush1.msra.mxu0 %v20
  %2294 = vmatprep.subr.mxu0 0.0
  %2295 = vmatpush1.msra.mxu0 %v21
  %2296 = vmatprep.subr.mxu0 0.0
  %2297 = vmatpush1.msra.mxu0 %v22
  %2298 = vmatprep.subr.mxu0 0.0
  %2299 = vmatpush1.msra.mxu0 %v23
  %2300 = vmatprep.subr.mxu0 0.0
  %2301 = vmatpush1.msra.mxu0 0.0
  %2302 = vmatprep.subr.mxu0 0.0
  %2303 = vmatpush1.msra.mxu0 0.0
  %2304 = vmatprep.subr.mxu0 0.0
  %2305 = vmatpush1.msra.mxu0 0.0
  %2306 = vmatprep.subr.mxu0 0.0
  %2307 = vmatpush1.msra.mxu0 0.0
  %2308 = vmatprep.subr.mxu0 0.0
  %2309 = vmatpush1.msra.mxu0 0.0
  %2310 = vmatprep.subr.mxu0 0.0
  %2311 = vmatpush1.msra.mxu0 0.0
  %2312 = vmatprep.subr.mxu0 0.0
  %2313 = vmatpush1.msra.mxu0 0.0
  %2314 = vmatprep.subr.mxu0 0.0
  %2315 = vmatpush1.msra.mxu0 0.0
  %2316 = vmatprep.subr.mxu0 0.0
  %2317 = vmatpush1.msra.mxu0 0.0
  %2318 = vmatprep.subr.mxu0 0.0
  %2319 = vmatpush1.msra.mxu0 0.0
  %2320 = vmatprep.subr.mxu0 0.0
  %2321 = vmatpush1.msra.mxu0 0.0
  %2322 = vmatprep.subr.mxu0 0.0
  %2323 = vmatpush1.msra.mxu0 0.0
  %2324 = vmatprep.subr.mxu0 0.0
  %2325 = vmatpush1.msra.mxu0 0.0
  %2326 = vmatprep.subr.mxu0 0.0
  %2327 = vmatpush1.msra.mxu0 0.0
  %2328 = vmatprep.subr.mxu0 0.0
  %2329 = vmatpush1.msra.mxu0 0.0
  %2330 = vmatprep.subr.mxu0 0.0
  %2331 = vmatpush1.msra.mxu0 0.0
  %2332 = vmatprep.subr.mxu0 0.0
  %2333 = vmatpush1.msra.mxu0 0.0
  %2334 = vmatprep.subr.mxu0 0.0
  %2335 = vmatpush1.msra.mxu0 0.0
  %2336 = vmatprep.subr.mxu0 0.0
  %2337 = vmatpush1.msra.mxu0 0.0
  %2338 = vmatprep.subr.mxu0 0.0
  %2339 = vmatpush1.msra.mxu0 0.0
  %2340 = vmatprep.subr.mxu0 0.0
  %2341 = vmatpush1.msra.mxu0 0.0
  %2342 = vmatprep.subr.mxu0 0.0
  %2343 = vmatpush1.msra.mxu0 0.0
  %2344 = vmatprep.subr.mxu0 0.0
  %2345 = vmatpush1.msra.mxu0 0.0
  %2346 = vmatprep.subr.mxu0 0.0
  %2347 = vmatpush1.msra.mxu0 0.0
  %2348 = vmatprep.subr.mxu0 0.0
  %2349 = vmatpush1.msra.mxu0 0.0
  %2350 = vmatprep.subr.mxu0 0.0
  %2351 = vmatpush1.msra.mxu0 0.0
  %2352 = vmatprep.subr.mxu0 0.0
  %2353 = vmatpush1.msra.mxu0 0.0
  %2354 = vmatprep.subr.mxu0 0.0
  %2355 = vmatpush1.msra.mxu0 0.0
  %2356 = vmatprep.mubr.f32.mxu0 0.0
  %2357 = vmatmul.mubr.f32.gmra.mrb[0].mxu0 %v2290
  %v2358 = vpop.f32.mrb[0].mxu0
  %v2359 = vadd.f32 %v452, %v2358
  %v2360 = vpop.f32.mrb[0].mxu0
  %2361 = vdwg.mxu0
  %v2362 = vsel %vm38, %v2359, -inf
  %2363 = vmax.xlane.f32.xlu0 %v2362
  %v2364 = vpop.xlane.xlu0 %2363
  %v2365 = vsub.f32 %v2359, %v2364
  %v2366 = vmul.f32 %v2365, 1.442695
  %v2367 = vpow.pop %v2366
  %v2368 = vsel %vm38, %v2367, 0.0
  %2369 = vadd.xlane.f32.xlu0 %v2368
  %v2370 = vpop.xlane.xlu0 %2369
  %v2371 = vrcp.pop %v2370
  %v2372 = vmul.f32 %v2367, %v2371
  %2374 = vset.pattern.permute.xlu0 8
  %2375 = vperm.xlu0 %2374, %v2287
  %v2376 = vpop.permute.xlu0 %2375
  %v2378 = vmul.f32 %v2372, %v2376
  %v2380 = vsel %vm38, %v2378, 0
  %2382 = vmatprep.subr.mxu0 0.0
  %2383 = vmatpush1.msra.mxu0 %v25
  %2384 = vmatprep.subr.mxu0 0.0
  %2385 = vmatpush1.msra.mxu0 0.0
  %2386 = vmatprep.subr.mxu0 0.0
  %2387 = vmatpush1.msra.mxu0 0.0
  %2388 = vmatprep.subr.mxu0 0.0
  %2389 = vmatpush1.msra.mxu0 0.0
  %2390 = vmatprep.subr.mxu0 0.0
  %2391 = vmatpush1.msra.mxu0 0.0
  %2392 = vmatprep.subr.mxu0 0.0
  %2393 = vmatpush1.msra.mxu0 0.0
  %2394 = vmatprep.subr.mxu0 0.0
  %2395 = vmatpush1.msra.mxu0 0.0
  %2396 = vmatprep.subr.mxu0 0.0
  %2397 = vmatpush1.msra.mxu0 0.0
  %2398 = vmatprep.subr.mxu0 0.0
  %2399 = vmatpush1.msra.mxu0 0.0
  %2400 = vmatprep.subr.mxu0 0.0
  %2401 = vmatpush1.msra.mxu0 0.0
  %2402 = vmatprep.subr.mxu0 0.0
  %2403 = vmatpush1.msra.mxu0 0.0
  %2404 = vmatprep.subr.mxu0 0.0
  %2405 = vmatpush1.msra.mxu0 0.0
  %2406 = vmatprep.subr.mxu0 0.0
  %2407 = vmatpush1.msra.mxu0 0.0
  %2408 = vmatprep.subr.mxu0 0.0
  %2409 = vmatpush1.msra.mxu0 0.0
  %2410 = vmatprep.subr.mxu0 0.0
  %2411 = vmatpush1.msra.mxu0 0.0
  %2412 = vmatprep.subr.mxu0 0.0
  %2413 = vmatpush1.msra.mxu0 0.0
  %2414 = vmatprep.subr.mxu0 0.0
  %2415 = vmatpush1.msra.mxu0 0.0
  %2416 = vmatprep.subr.mxu0 0.0
  %2417 = vmatpush1.msra.mxu0 0.0
  %2418 = vmatprep.subr.mxu0 0.0
  %2419 = vmatpush1.msra.mxu0 0.0
  %2420 = vmatprep.subr.mxu0 0.0
  %2421 = vmatpush1.msra.mxu0 0.0
  %2422 = vmatprep.subr.mxu0 0.0
  %2423 = vmatpush1.msra.mxu0 0.0
  %2424 = vmatprep.subr.mxu0 0.0
  %2425 = vmatpush1.msra.mxu0 0.0
  %2426 = vmatprep.subr.mxu0 0.0
  %2427 = vmatpush1.msra.mxu0 0.0
  %2428 = vmatprep.subr.mxu0 0.0
  %2429 = vmatpush1.msra.mxu0 0.0
  %2430 = vmatprep.subr.mxu0 0.0
  %2431 = vmatpush1.msra.mxu0 0.0
  %2432 = vmatprep.subr.mxu0 0.0
  %2433 = vmatpush1.msra.mxu0 0.0
  %2434 = vmatprep.subr.mxu0 0.0
  %2435 = vmatpush1.msra.mxu0 0.0
  %2436 = vmatprep.subr.mxu0 0.0
  %2437 = vmatpush1.msra.mxu0 0.0
  %2438 = vmatprep.subr.mxu0 0.0
  %2439 = vmatpush1.msra.mxu0 0.0
  %2440 = vmatprep.subr.mxu0 0.0
  %2441 = vmatpush1.msra.mxu0 0.0
  %2442 = vmatprep.subr.mxu0 0.0
  %2443 = vmatpush1.msra.mxu0 0.0
  %2444 = vmatprep.subr.mxu0 0.0
  %2445 = vmatpush1.msra.mxu0 0.0
  %2446 = vmatprep.mubr.f32.mxu0 0.0
  %2447 = vmatmul.mubr.f32.gmra.mrb[0].mxu0 %v2380
  %v2448 = vpop.f32.mrb[0].mxu0
  %v2449 = vadd.f32 0.0, %v2448
  %v2450 = vpop.f32.mrb[0].mxu0
  %2451 = vdwg.mxu0
  %2453 = vrot.lane.b32.xlu0 %v2449, 80
  %v2454 = vpop.permute.xlu0 %2453
  %v2456 = vadd.f32 %v2449, %v2454
  %v2457 = vmul.f32 %v2456, 0.5
  %v2458 = vsub.f32 %v2449, %v2454
  %v2459 = vmul.f32 %v2458, 0.5
  %v2460 = vmul.f32 %v2459, %v2459
  %2461 = vrot.lane.b32.xlu0 %v2449, 112
  %v2462 = vpop.permute.xlu0 %2461
  %v2464 = vmul.f32 %v2449, %v2462
  %2466 = vrot.lane.b32.xlu0 %v2464, 112
  %v2467 = vpop.permute.xlu0 %2466
  %v2469 = vadd.f32 %v2460, %v2467
  %v2470 = vmax.f32 %v2469, 0.0
  %v2471 = vrsqrt.pop %v2470
  %v2472 = vmul.f32 %v2470, %v2471
  %vm2473 = vcmp.eq.f32.partialorder %v2470, inf
  %v2474 = vsel %vm2473, %v2470, %v2472
  %vm2475 = vcmp.eq.f32.partialorder %v2470, 0.0
  %v2476 = vand.u32 %v2470, 2147483648
  %v2477 = vsel %vm2475, %v2476, %v2474
  %v2478 = vmul.f32 %v2477, 1.442695
  %v2479 = vpow.pop %v2478
  %v2480 = vsub.f32 0.0, %v2477
  %v2481 = vmul.f32 %v2480, 1.442695
  %v2482 = vpow.pop %v2481
  %v2483 = vadd.f32 %v2479, %v2482
  %v2484 = vmul.f32 %v2483, 0.5
  %vm2485 = vcmp.gt.f32.partialorder %v2477, 0.001
  %v2486 = vsub.f32 %v2479, %v2482
  %v2487 = vmul.f32 %v2486, 0.5
  %v2488 = vmax.f32 %v2477, 1e-12
  %v2489 = vrcp.pop %v2488
  %v2490 = vmul.f32 %v2487, %v2489
  %v2491 = vmul.f32 %v2469, %v655
  %v2492 = vadd.f32 %v2491, 1.0
  %v2493 = vsel %vm2485, %v2490, %v2492
  %v2494 = vmul.f32 %v2457, 1.442695
  %v2495 = vpow.pop %v2494
  %v2496 = vmul.f32 %v2495, %v2484
  %v2497 = vmul.f32 %v2495, %v2493
  %v2498 = vmul.f32 %v2497, %v2459
  %v2499 = vadd.f32 %v2496, %v2498
  %v2500 = vsub.f32 %v2496, %v2498
  %v2501 = vmul.f32 %v2497, %v2462
  %2502 = vrot.lane.b32.xlu0 %v2449, 96
  %v2503 = vpop.permute.xlu0 %2502
  %v2505 = vmul.f32 %v2497, %v2503
  %v2506 = vmul.f32 %v2499, %v2256
  %2507 = vrot.lane.b32.xlu0 %v2256, 112
  %v2508 = vpop.permute.xlu0 %2507
  %v2510 = vmul.f32 %v2501, %v2508
  %v2511 = vadd.f32 %v2506, %v2510
  %v2512 = vmul.f32 %v2505, %v2256
  %v2513 = vmul.f32 %v2500, %v2508
  %v2514 = vadd.f32 %v2512, %v2513
  %v2515 = vmul.f32 %v2499, %v2499
  %2516 = vrot.lane.b32.xlu0 %v2256, 96
  %v2517 = vpop.permute.xlu0 %2516
  %v2519 = vmul.f32 %v2515, %v2517
  %v2520 = vmul.f32 %v2499, 2.0
  %v2521 = vmul.f32 %v2520, %v2501
  %2522 = vrot.lane.b32.xlu0 %v2256, 64
  %v2523 = vpop.permute.xlu0 %2522
  %v2525 = vmul.f32 %v2521, %v2523
  %v2526 = vadd.f32 %v2519, %v2525
  %v2527 = vmul.f32 %v2501, %v2501
  %2528 = vrot.lane.b32.xlu0 %v2256, 80
  %v2529 = vpop.permute.xlu0 %2528
  %v2531 = vmul.f32 %v2527, %v2529
  %v2532 = vadd.f32 %v2526, %v2531
  %v2533 = vmul.f32 %v440, %v2376
  %v2534 = vadd.f32 %v2532, %v2533
  %v2535 = vmul.f32 %v2505, %v2505
  %v2536 = vmul.f32 %v2535, %v2517
  %v2537 = vmul.f32 %v2505, 2.0
  %v2538 = vmul.f32 %v2537, %v2500
  %v2539 = vmul.f32 %v2538, %v2523
  %v2540 = vadd.f32 %v2536, %v2539
  %v2541 = vmul.f32 %v2500, %v2500
  %v2542 = vmul.f32 %v2541, %v2529
  %v2543 = vadd.f32 %v2540, %v2542
  %2545 = vrot.lane.b32.xlu0 %v2533, 112
  %v2546 = vpop.permute.xlu0 %2545
  %v2548 = vadd.f32 %v2543, %v2546
  %v2549 = vmul.f32 %v2499, %v2505
  %v2550 = vmul.f32 %v2549, %v2517
  %v2551 = vmul.f32 %v2499, %v2500
  %v2552 = vmul.f32 %v2501, %v2505
  %v2553 = vadd.f32 %v2551, %v2552
  %v2554 = vmul.f32 %v2553, %v2523
  %v2555 = vadd.f32 %v2550, %v2554
  %v2556 = vmul.f32 %v2501, %v2500
  %v2557 = vmul.f32 %v2556, %v2529
  %v2558 = vadd.f32 %v2555, %v2557
  %2560 = vrot.lane.b32.xlu0 %v2514, 16
  %v2561 = vpop.permute.xlu0 %2560
  %2564 = vrot.lane.b32.xlu0 %v2534, 32
  %v2565 = vpop.permute.xlu0 %2564
  %2568 = vrot.lane.b32.xlu0 %v2548, 48
  %v2569 = vpop.permute.xlu0 %2568
  %2572 = vrot.lane.b32.xlu0 %v2558, 64
  %v2573 = vpop.permute.xlu0 %2572
  %v2575 = vsel %vm740, %v2511, %v2561
  %v2576 = vsel %vm184, %v2575, %v2565
  %v2577 = vsel %vm743, %v2576, %v2569
  %v2578 = vsel %vm745, %v2577, %v2573
  %2580 = vrot.lane.b32.xlu0 %v2286, 112
  %v2581 = vpop.permute.xlu0 %2580
  %v2583 = vadd.f32 %v2534, %v2581
  %v2584 = vrcp.pop %v2583
  %v2585 = vmul.f32 %v2534, %v2584
  %v2586 = vmul.f32 %v2558, %v2584
  %v2587 = vsub.f32 %v2285, %v2511
  %v2588 = vsub.f32 1.0, %v2585
  %v2589 = vmul.f32 %v2585, %v2587
  %v2590 = vadd.f32 %v2511, %v2589
  %v2591 = vmul.f32 %v2586, %v2587
  %v2592 = vadd.f32 %v2514, %v2591
  %v2593 = vmul.f32 %v2588, %v2534
  %v2594 = vmul.f32 %v2586, %v2558
  %v2595 = vsub.f32 %v2548, %v2594
  %v2596 = vmul.f32 %v2588, %v2558
  %2598 = vrot.lane.b32.xlu0 %v2592, 16
  %v2599 = vpop.permute.xlu0 %2598
  %2602 = vrot.lane.b32.xlu0 %v2593, 32
  %v2603 = vpop.permute.xlu0 %2602
  %2606 = vrot.lane.b32.xlu0 %v2595, 48
  %v2607 = vpop.permute.xlu0 %2606
  %2610 = vrot.lane.b32.xlu0 %v2596, 64
  %v2611 = vpop.permute.xlu0 %2610
  %v2613 = vsel %vm740, %v2590, %v2599
  %v2614 = vsel %vm184, %v2613, %v2603
  %v2615 = vsel %vm743, %v2614, %v2607
  %v2616 = vsel %vm745, %v2615, %v2611
  %v2617 = vsel %vm2288, 1, 0
  %2618 = vset.pattern.permute.xlu0 9
  %2619 = vperm.xlu0 %2618, %v2617
  %v2620 = vpop.permute.xlu0 %2619
  %vm2621 = vcmp.eq.s32.totalorder %v2620, 1
  %v2622 = vsel %vm2621, %v2616, %v2578
  %2624 = vrot.lane.b32.xlu0 %v2586, 16
  %v2625 = vpop.permute.xlu0 %2624
  %v2627 = vsel %vm740, %v2585, %v2625
  %v2628 = vsel %vm2621, %v2627, 0.0
  %2630 = vrot.lane.b32.xlu0 %v2578, 80
  %v2631 = vpop.permute.xlu0 %2630
  %2634 = vrot.lane.b32.xlu0 %v2628, 32
  %v2635 = vpop.permute.xlu0 %2634
  %2638 = vrot.lane.b32.xlu0 %v2285, 64
  %v2639 = vpop.permute.xlu0 %2638
  %2641 = vrot.lane.b32.xlu0 %v2286, 64
  %v2642 = vpop.permute.xlu0 %2641
  %v2644 = vsel %vm812, %v2622, %v2631
  %v2645 = vsel %vm184, %v2631, %v2635
  %v2646 = vsel %vm745, %v2645, %v2639
  %v2647 = vsel %vm812, %v2646, %v2642
  %v2648 = vsel %vm817, %v2647, 0.0
  %2649 = vst [vmem:[%s2 + $0x50] sm:$0xff] %v2644
  %2650 = vst [vmem:[%s2 + $0x58] sm:$0xff] %v2648
  %v2651 = vld [vmem:[#allocation2 + $0x30] sm:$0xff]
  %v2652 = vmul.f32 %v2651, %v2651
  %v2653 = vld [vmem:[%s0 + $0x30] sm:$0xff]
  %vm2654 = vcmp.gt.f32.partialorder %v2653, 0.5
  %v2656 = vsel %vm184, %v2622, 0
  %2658 = vmatprep.subr.mxu0 0.0
  %2659 = vmatpush1.msra.mxu0 %v20
  %2660 = vmatprep.subr.mxu0 0.0
  %2661 = vmatpush1.msra.mxu0 %v21
  %2662 = vmatprep.subr.mxu0 0.0
  %2663 = vmatpush1.msra.mxu0 %v22
  %2664 = vmatprep.subr.mxu0 0.0
  %2665 = vmatpush1.msra.mxu0 %v23
  %2666 = vmatprep.subr.mxu0 0.0
  %2667 = vmatpush1.msra.mxu0 0.0
  %2668 = vmatprep.subr.mxu0 0.0
  %2669 = vmatpush1.msra.mxu0 0.0
  %2670 = vmatprep.subr.mxu0 0.0
  %2671 = vmatpush1.msra.mxu0 0.0
  %2672 = vmatprep.subr.mxu0 0.0
  %2673 = vmatpush1.msra.mxu0 0.0
  %2674 = vmatprep.subr.mxu0 0.0
  %2675 = vmatpush1.msra.mxu0 0.0
  %2676 = vmatprep.subr.mxu0 0.0
  %2677 = vmatpush1.msra.mxu0 0.0
  %2678 = vmatprep.subr.mxu0 0.0
  %2679 = vmatpush1.msra.mxu0 0.0
  %2680 = vmatprep.subr.mxu0 0.0
  %2681 = vmatpush1.msra.mxu0 0.0
  %2682 = vmatprep.subr.mxu0 0.0
  %2683 = vmatpush1.msra.mxu0 0.0
  %2684 = vmatprep.subr.mxu0 0.0
  %2685 = vmatpush1.msra.mxu0 0.0
  %2686 = vmatprep.subr.mxu0 0.0
  %2687 = vmatpush1.msra.mxu0 0.0
  %2688 = vmatprep.subr.mxu0 0.0
  %2689 = vmatpush1.msra.mxu0 0.0
  %2690 = vmatprep.subr.mxu0 0.0
  %2691 = vmatpush1.msra.mxu0 0.0
  %2692 = vmatprep.subr.mxu0 0.0
  %2693 = vmatpush1.msra.mxu0 0.0
  %2694 = vmatprep.subr.mxu0 0.0
  %2695 = vmatpush1.msra.mxu0 0.0
  %2696 = vmatprep.subr.mxu0 0.0
  %2697 = vmatpush1.msra.mxu0 0.0
  %2698 = vmatprep.subr.mxu0 0.0
  %2699 = vmatpush1.msra.mxu0 0.0
  %2700 = vmatprep.subr.mxu0 0.0
  %2701 = vmatpush1.msra.mxu0 0.0
  %2702 = vmatprep.subr.mxu0 0.0
  %2703 = vmatpush1.msra.mxu0 0.0
  %2704 = vmatprep.subr.mxu0 0.0
  %2705 = vmatpush1.msra.mxu0 0.0
  %2706 = vmatprep.subr.mxu0 0.0
  %2707 = vmatpush1.msra.mxu0 0.0
  %2708 = vmatprep.subr.mxu0 0.0
  %2709 = vmatpush1.msra.mxu0 0.0
  %2710 = vmatprep.subr.mxu0 0.0
  %2711 = vmatpush1.msra.mxu0 0.0
  %2712 = vmatprep.subr.mxu0 0.0
  %2713 = vmatpush1.msra.mxu0 0.0
  %2714 = vmatprep.subr.mxu0 0.0
  %2715 = vmatpush1.msra.mxu0 0.0
  %2716 = vmatprep.subr.mxu0 0.0
  %2717 = vmatpush1.msra.mxu0 0.0
  %2718 = vmatprep.subr.mxu0 0.0
  %2719 = vmatpush1.msra.mxu0 0.0
  %2720 = vmatprep.subr.mxu0 0.0
  %2721 = vmatpush1.msra.mxu0 0.0
  %2722 = vmatprep.mubr.f32.mxu0 0.0
  %2723 = vmatmul.mubr.f32.gmra.mrb[0].mxu0 %v2656
  %v2724 = vpop.f32.mrb[0].mxu0
  %v2725 = vadd.f32 %v452, %v2724
  %v2726 = vpop.f32.mrb[0].mxu0
  %2727 = vdwg.mxu0
  %v2728 = vsel %vm38, %v2725, -inf
  %2729 = vmax.xlane.f32.xlu0 %v2728
  %v2730 = vpop.xlane.xlu0 %2729
  %v2731 = vsub.f32 %v2725, %v2730
  %v2732 = vmul.f32 %v2731, 1.442695
  %v2733 = vpow.pop %v2732
  %v2734 = vsel %vm38, %v2733, 0.0
  %2735 = vadd.xlane.f32.xlu0 %v2734
  %v2736 = vpop.xlane.xlu0 %2735
  %v2737 = vrcp.pop %v2736
  %v2738 = vmul.f32 %v2733, %v2737
  %2740 = vset.pattern.permute.xlu0 8
  %2741 = vperm.xlu0 %2740, %v2653
  %v2742 = vpop.permute.xlu0 %2741
  %v2744 = vmul.f32 %v2738, %v2742
  %v2746 = vsel %vm38, %v2744, 0
  %2748 = vmatprep.subr.mxu0 0.0
  %2749 = vmatpush1.msra.mxu0 %v25
  %2750 = vmatprep.subr.mxu0 0.0
  %2751 = vmatpush1.msra.mxu0 0.0
  %2752 = vmatprep.subr.mxu0 0.0
  %2753 = vmatpush1.msra.mxu0 0.0
  %2754 = vmatprep.subr.mxu0 0.0
  %2755 = vmatpush1.msra.mxu0 0.0
  %2756 = vmatprep.subr.mxu0 0.0
  %2757 = vmatpush1.msra.mxu0 0.0
  %2758 = vmatprep.subr.mxu0 0.0
  %2759 = vmatpush1.msra.mxu0 0.0
  %2760 = vmatprep.subr.mxu0 0.0
  %2761 = vmatpush1.msra.mxu0 0.0
  %2762 = vmatprep.subr.mxu0 0.0
  %2763 = vmatpush1.msra.mxu0 0.0
  %2764 = vmatprep.subr.mxu0 0.0
  %2765 = vmatpush1.msra.mxu0 0.0
  %2766 = vmatprep.subr.mxu0 0.0
  %2767 = vmatpush1.msra.mxu0 0.0
  %2768 = vmatprep.subr.mxu0 0.0
  %2769 = vmatpush1.msra.mxu0 0.0
  %2770 = vmatprep.subr.mxu0 0.0
  %2771 = vmatpush1.msra.mxu0 0.0
  %2772 = vmatprep.subr.mxu0 0.0
  %2773 = vmatpush1.msra.mxu0 0.0
  %2774 = vmatprep.subr.mxu0 0.0
  %2775 = vmatpush1.msra.mxu0 0.0
  %2776 = vmatprep.subr.mxu0 0.0
  %2777 = vmatpush1.msra.mxu0 0.0
  %2778 = vmatprep.subr.mxu0 0.0
  %2779 = vmatpush1.msra.mxu0 0.0
  %2780 = vmatprep.subr.mxu0 0.0
  %2781 = vmatpush1.msra.mxu0 0.0
  %2782 = vmatprep.subr.mxu0 0.0
  %2783 = vmatpush1.msra.mxu0 0.0
  %2784 = vmatprep.subr.mxu0 0.0
  %2785 = vmatpush1.msra.mxu0 0.0
  %2786 = vmatprep.subr.mxu0 0.0
  %2787 = vmatpush1.msra.mxu0 0.0
  %2788 = vmatprep.subr.mxu0 0.0
  %2789 = vmatpush1.msra.mxu0 0.0
  %2790 = vmatprep.subr.mxu0 0.0
  %2791 = vmatpush1.msra.mxu0 0.0
  %2792 = vmatprep.subr.mxu0 0.0
  %2793 = vmatpush1.msra.mxu0 0.0
  %2794 = vmatprep.subr.mxu0 0.0
  %2795 = vmatpush1.msra.mxu0 0.0
  %2796 = vmatprep.subr.mxu0 0.0
  %2797 = vmatpush1.msra.mxu0 0.0
  %2798 = vmatprep.subr.mxu0 0.0
  %2799 = vmatpush1.msra.mxu0 0.0
  %2800 = vmatprep.subr.mxu0 0.0
  %2801 = vmatpush1.msra.mxu0 0.0
  %2802 = vmatprep.subr.mxu0 0.0
  %2803 = vmatpush1.msra.mxu0 0.0
  %2804 = vmatprep.subr.mxu0 0.0
  %2805 = vmatpush1.msra.mxu0 0.0
  %2806 = vmatprep.subr.mxu0 0.0
  %2807 = vmatpush1.msra.mxu0 0.0
  %2808 = vmatprep.subr.mxu0 0.0
  %2809 = vmatpush1.msra.mxu0 0.0
  %2810 = vmatprep.subr.mxu0 0.0
  %2811 = vmatpush1.msra.mxu0 0.0
  %2812 = vmatprep.mubr.f32.mxu0 0.0
  %2813 = vmatmul.mubr.f32.gmra.mrb[0].mxu0 %v2746
  %v2814 = vpop.f32.mrb[0].mxu0
  %v2815 = vadd.f32 0.0, %v2814
  %v2816 = vpop.f32.mrb[0].mxu0
  %2817 = vdwg.mxu0
  %2819 = vrot.lane.b32.xlu0 %v2815, 80
  %v2820 = vpop.permute.xlu0 %2819
  %v2822 = vadd.f32 %v2815, %v2820
  %v2823 = vmul.f32 %v2822, 0.5
  %v2824 = vsub.f32 %v2815, %v2820
  %v2825 = vmul.f32 %v2824, 0.5
  %v2826 = vmul.f32 %v2825, %v2825
  %2827 = vrot.lane.b32.xlu0 %v2815, 112
  %v2828 = vpop.permute.xlu0 %2827
  %v2830 = vmul.f32 %v2815, %v2828
  %2832 = vrot.lane.b32.xlu0 %v2830, 112
  %v2833 = vpop.permute.xlu0 %2832
  %v2835 = vadd.f32 %v2826, %v2833
  %v2836 = vmax.f32 %v2835, 0.0
  %v2837 = vrsqrt.pop %v2836
  %v2838 = vmul.f32 %v2836, %v2837
  %vm2839 = vcmp.eq.f32.partialorder %v2836, inf
  %v2840 = vsel %vm2839, %v2836, %v2838
  %vm2841 = vcmp.eq.f32.partialorder %v2836, 0.0
  %v2842 = vand.u32 %v2836, 2147483648
  %v2843 = vsel %vm2841, %v2842, %v2840
  %v2844 = vmul.f32 %v2843, 1.442695
  %v2845 = vpow.pop %v2844
  %v2846 = vsub.f32 0.0, %v2843
  %v2847 = vmul.f32 %v2846, 1.442695
  %v2848 = vpow.pop %v2847
  %v2849 = vadd.f32 %v2845, %v2848
  %v2850 = vmul.f32 %v2849, 0.5
  %vm2851 = vcmp.gt.f32.partialorder %v2843, 0.001
  %v2852 = vsub.f32 %v2845, %v2848
  %v2853 = vmul.f32 %v2852, 0.5
  %v2854 = vmax.f32 %v2843, 1e-12
  %v2855 = vrcp.pop %v2854
  %v2856 = vmul.f32 %v2853, %v2855
  %v2857 = vmul.f32 %v2835, %v655
  %v2858 = vadd.f32 %v2857, 1.0
  %v2859 = vsel %vm2851, %v2856, %v2858
  %v2860 = vmul.f32 %v2823, 1.442695
  %v2861 = vpow.pop %v2860
  %v2862 = vmul.f32 %v2861, %v2850
  %v2863 = vmul.f32 %v2861, %v2859
  %v2864 = vmul.f32 %v2863, %v2825
  %v2865 = vadd.f32 %v2862, %v2864
  %v2866 = vsub.f32 %v2862, %v2864
  %v2867 = vmul.f32 %v2863, %v2828
  %2868 = vrot.lane.b32.xlu0 %v2815, 96
  %v2869 = vpop.permute.xlu0 %2868
  %v2871 = vmul.f32 %v2863, %v2869
  %v2872 = vmul.f32 %v2865, %v2622
  %2873 = vrot.lane.b32.xlu0 %v2622, 112
  %v2874 = vpop.permute.xlu0 %2873
  %v2876 = vmul.f32 %v2867, %v2874
  %v2877 = vadd.f32 %v2872, %v2876
  %v2878 = vmul.f32 %v2871, %v2622
  %v2879 = vmul.f32 %v2866, %v2874
  %v2880 = vadd.f32 %v2878, %v2879
  %v2881 = vmul.f32 %v2865, %v2865
  %2882 = vrot.lane.b32.xlu0 %v2622, 96
  %v2883 = vpop.permute.xlu0 %2882
  %v2885 = vmul.f32 %v2881, %v2883
  %v2886 = vmul.f32 %v2865, 2.0
  %v2887 = vmul.f32 %v2886, %v2867
  %2888 = vrot.lane.b32.xlu0 %v2622, 64
  %v2889 = vpop.permute.xlu0 %2888
  %v2891 = vmul.f32 %v2887, %v2889
  %v2892 = vadd.f32 %v2885, %v2891
  %v2893 = vmul.f32 %v2867, %v2867
  %2894 = vrot.lane.b32.xlu0 %v2622, 80
  %v2895 = vpop.permute.xlu0 %2894
  %v2897 = vmul.f32 %v2893, %v2895
  %v2898 = vadd.f32 %v2892, %v2897
  %v2899 = vmul.f32 %v440, %v2742
  %v2900 = vadd.f32 %v2898, %v2899
  %v2901 = vmul.f32 %v2871, %v2871
  %v2902 = vmul.f32 %v2901, %v2883
  %v2903 = vmul.f32 %v2871, 2.0
  %v2904 = vmul.f32 %v2903, %v2866
  %v2905 = vmul.f32 %v2904, %v2889
  %v2906 = vadd.f32 %v2902, %v2905
  %v2907 = vmul.f32 %v2866, %v2866
  %v2908 = vmul.f32 %v2907, %v2895
  %v2909 = vadd.f32 %v2906, %v2908
  %2911 = vrot.lane.b32.xlu0 %v2899, 112
  %v2912 = vpop.permute.xlu0 %2911
  %v2914 = vadd.f32 %v2909, %v2912
  %v2915 = vmul.f32 %v2865, %v2871
  %v2916 = vmul.f32 %v2915, %v2883
  %v2917 = vmul.f32 %v2865, %v2866
  %v2918 = vmul.f32 %v2867, %v2871
  %v2919 = vadd.f32 %v2917, %v2918
  %v2920 = vmul.f32 %v2919, %v2889
  %v2921 = vadd.f32 %v2916, %v2920
  %v2922 = vmul.f32 %v2867, %v2866
  %v2923 = vmul.f32 %v2922, %v2895
  %v2924 = vadd.f32 %v2921, %v2923
  %2926 = vrot.lane.b32.xlu0 %v2880, 16
  %v2927 = vpop.permute.xlu0 %2926
  %2930 = vrot.lane.b32.xlu0 %v2900, 32
  %v2931 = vpop.permute.xlu0 %2930
  %2934 = vrot.lane.b32.xlu0 %v2914, 48
  %v2935 = vpop.permute.xlu0 %2934
  %2938 = vrot.lane.b32.xlu0 %v2924, 64
  %v2939 = vpop.permute.xlu0 %2938
  %v2941 = vsel %vm740, %v2877, %v2927
  %v2942 = vsel %vm184, %v2941, %v2931
  %v2943 = vsel %vm743, %v2942, %v2935
  %v2944 = vsel %vm745, %v2943, %v2939
  %2946 = vrot.lane.b32.xlu0 %v2652, 112
  %v2947 = vpop.permute.xlu0 %2946
  %v2949 = vadd.f32 %v2900, %v2947
  %v2950 = vrcp.pop %v2949
  %v2951 = vmul.f32 %v2900, %v2950
  %v2952 = vmul.f32 %v2924, %v2950
  %v2953 = vsub.f32 %v2651, %v2877
  %v2954 = vsub.f32 1.0, %v2951
  %v2955 = vmul.f32 %v2951, %v2953
  %v2956 = vadd.f32 %v2877, %v2955
  %v2957 = vmul.f32 %v2952, %v2953
  %v2958 = vadd.f32 %v2880, %v2957
  %v2959 = vmul.f32 %v2954, %v2900
  %v2960 = vmul.f32 %v2952, %v2924
  %v2961 = vsub.f32 %v2914, %v2960
  %v2962 = vmul.f32 %v2954, %v2924
  %2964 = vrot.lane.b32.xlu0 %v2958, 16
  %v2965 = vpop.permute.xlu0 %2964
  %2968 = vrot.lane.b32.xlu0 %v2959, 32
  %v2969 = vpop.permute.xlu0 %2968
  %2972 = vrot.lane.b32.xlu0 %v2961, 48
  %v2973 = vpop.permute.xlu0 %2972
  %2976 = vrot.lane.b32.xlu0 %v2962, 64
  %v2977 = vpop.permute.xlu0 %2976
  %v2979 = vsel %vm740, %v2956, %v2965
  %v2980 = vsel %vm184, %v2979, %v2969
  %v2981 = vsel %vm743, %v2980, %v2973
  %v2982 = vsel %vm745, %v2981, %v2977
  %v2983 = vsel %vm2654, 1, 0
  %2984 = vset.pattern.permute.xlu0 9
  %2985 = vperm.xlu0 %2984, %v2983
  %v2986 = vpop.permute.xlu0 %2985
  %vm2987 = vcmp.eq.s32.totalorder %v2986, 1
  %v2988 = vsel %vm2987, %v2982, %v2944
  %2990 = vrot.lane.b32.xlu0 %v2952, 16
  %v2991 = vpop.permute.xlu0 %2990
  %v2993 = vsel %vm740, %v2951, %v2991
  %v2994 = vsel %vm2987, %v2993, 0.0
  %2996 = vrot.lane.b32.xlu0 %v2944, 80
  %v2997 = vpop.permute.xlu0 %2996
  %3000 = vrot.lane.b32.xlu0 %v2994, 32
  %v3001 = vpop.permute.xlu0 %3000
  %3004 = vrot.lane.b32.xlu0 %v2651, 64
  %v3005 = vpop.permute.xlu0 %3004
  %3007 = vrot.lane.b32.xlu0 %v2652, 64
  %v3008 = vpop.permute.xlu0 %3007
  %v3010 = vsel %vm812, %v2988, %v2997
  %v3011 = vsel %vm184, %v2997, %v3001
  %v3012 = vsel %vm745, %v3011, %v3005
  %v3013 = vsel %vm812, %v3012, %v3008
  %v3014 = vsel %vm817, %v3013, 0.0
  %3015 = vst [vmem:[%s2 + $0x60] sm:$0xff] %v3010
  %3016 = vst [vmem:[%s2 + $0x68] sm:$0xff] %v3014
  %v3017 = vld [vmem:[#allocation2 + $0x38] sm:$0xff]
  %v3018 = vmul.f32 %v3017, %v3017
  %v3019 = vld [vmem:[%s0 + $0x38] sm:$0xff]
  %vm3020 = vcmp.gt.f32.partialorder %v3019, 0.5
  %v3022 = vsel %vm184, %v2988, 0
  %3024 = vmatprep.subr.mxu0 0.0
  %3025 = vmatpush1.msra.mxu0 %v20
  %3026 = vmatprep.subr.mxu0 0.0
  %3027 = vmatpush1.msra.mxu0 %v21
  %3028 = vmatprep.subr.mxu0 0.0
  %3029 = vmatpush1.msra.mxu0 %v22
  %3030 = vmatprep.subr.mxu0 0.0
  %3031 = vmatpush1.msra.mxu0 %v23
  %3032 = vmatprep.subr.mxu0 0.0
  %3033 = vmatpush1.msra.mxu0 0.0
  %3034 = vmatprep.subr.mxu0 0.0
  %3035 = vmatpush1.msra.mxu0 0.0
  %3036 = vmatprep.subr.mxu0 0.0
  %3037 = vmatpush1.msra.mxu0 0.0
  %3038 = vmatprep.subr.mxu0 0.0
  %3039 = vmatpush1.msra.mxu0 0.0
  %3040 = vmatprep.subr.mxu0 0.0
  %3041 = vmatpush1.msra.mxu0 0.0
  %3042 = vmatprep.subr.mxu0 0.0
  %3043 = vmatpush1.msra.mxu0 0.0
  %3044 = vmatprep.subr.mxu0 0.0
  %3045 = vmatpush1.msra.mxu0 0.0
  %3046 = vmatprep.subr.mxu0 0.0
  %3047 = vmatpush1.msra.mxu0 0.0
  %3048 = vmatprep.subr.mxu0 0.0
  %3049 = vmatpush1.msra.mxu0 0.0
  %3050 = vmatprep.subr.mxu0 0.0
  %3051 = vmatpush1.msra.mxu0 0.0
  %3052 = vmatprep.subr.mxu0 0.0
  %3053 = vmatpush1.msra.mxu0 0.0
  %3054 = vmatprep.subr.mxu0 0.0
  %3055 = vmatpush1.msra.mxu0 0.0
  %3056 = vmatprep.subr.mxu0 0.0
  %3057 = vmatpush1.msra.mxu0 0.0
  %3058 = vmatprep.subr.mxu0 0.0
  %3059 = vmatpush1.msra.mxu0 0.0
  %3060 = vmatprep.subr.mxu0 0.0
  %3061 = vmatpush1.msra.mxu0 0.0
  %3062 = vmatprep.subr.mxu0 0.0
  %3063 = vmatpush1.msra.mxu0 0.0
  %3064 = vmatprep.subr.mxu0 0.0
  %3065 = vmatpush1.msra.mxu0 0.0
  %3066 = vmatprep.subr.mxu0 0.0
  %3067 = vmatpush1.msra.mxu0 0.0
  %3068 = vmatprep.subr.mxu0 0.0
  %3069 = vmatpush1.msra.mxu0 0.0
  %3070 = vmatprep.subr.mxu0 0.0
  %3071 = vmatpush1.msra.mxu0 0.0
  %3072 = vmatprep.subr.mxu0 0.0
  %3073 = vmatpush1.msra.mxu0 0.0
  %3074 = vmatprep.subr.mxu0 0.0
  %3075 = vmatpush1.msra.mxu0 0.0
  %3076 = vmatprep.subr.mxu0 0.0
  %3077 = vmatpush1.msra.mxu0 0.0
  %3078 = vmatprep.subr.mxu0 0.0
  %3079 = vmatpush1.msra.mxu0 0.0
  %3080 = vmatprep.subr.mxu0 0.0
  %3081 = vmatpush1.msra.mxu0 0.0
  %3082 = vmatprep.subr.mxu0 0.0
  %3083 = vmatpush1.msra.mxu0 0.0
  %3084 = vmatprep.subr.mxu0 0.0
  %3085 = vmatpush1.msra.mxu0 0.0
  %3086 = vmatprep.subr.mxu0 0.0
  %3087 = vmatpush1.msra.mxu0 0.0
  %3088 = vmatprep.mubr.f32.mxu0 0.0
  %3089 = vmatmul.mubr.f32.gmra.mrb[0].mxu0 %v3022
  %v3090 = vpop.f32.mrb[0].mxu0
  %v3091 = vadd.f32 %v452, %v3090
  %v3092 = vpop.f32.mrb[0].mxu0
  %3093 = vdwg.mxu0
  %v3094 = vsel %vm38, %v3091, -inf
  %3095 = vmax.xlane.f32.xlu0 %v3094
  %v3096 = vpop.xlane.xlu0 %3095
  %v3097 = vsub.f32 %v3091, %v3096
  %v3098 = vmul.f32 %v3097, 1.442695
  %v3099 = vpow.pop %v3098
  %v3100 = vsel %vm38, %v3099, 0.0
  %3101 = vadd.xlane.f32.xlu0 %v3100
  %v3102 = vpop.xlane.xlu0 %3101
  %v3103 = vrcp.pop %v3102
  %v3104 = vmul.f32 %v3099, %v3103
  %3106 = vset.pattern.permute.xlu0 8
  %3107 = vperm.xlu0 %3106, %v3019
  %v3108 = vpop.permute.xlu0 %3107
  %v3110 = vmul.f32 %v3104, %v3108
  %v3112 = vsel %vm38, %v3110, 0
  %3114 = vmatprep.subr.mxu0 0.0
  %3115 = vmatpush1.msra.mxu0 %v25
  %3116 = vmatprep.subr.mxu0 0.0
  %3117 = vmatpush1.msra.mxu0 0.0
  %3118 = vmatprep.subr.mxu0 0.0
  %3119 = vmatpush1.msra.mxu0 0.0
  %3120 = vmatprep.subr.mxu0 0.0
  %3121 = vmatpush1.msra.mxu0 0.0
  %3122 = vmatprep.subr.mxu0 0.0
  %3123 = vmatpush1.msra.mxu0 0.0
  %3124 = vmatprep.subr.mxu0 0.0
  %3125 = vmatpush1.msra.mxu0 0.0
  %3126 = vmatprep.subr.mxu0 0.0
  %3127 = vmatpush1.msra.mxu0 0.0
  %3128 = vmatprep.subr.mxu0 0.0
  %3129 = vmatpush1.msra.mxu0 0.0
  %3130 = vmatprep.subr.mxu0 0.0
  %3131 = vmatpush1.msra.mxu0 0.0
  %3132 = vmatprep.subr.mxu0 0.0
  %3133 = vmatpush1.msra.mxu0 0.0
  %3134 = vmatprep.subr.mxu0 0.0
  %3135 = vmatpush1.msra.mxu0 0.0
  %3136 = vmatprep.subr.mxu0 0.0
  %3137 = vmatpush1.msra.mxu0 0.0
  %3138 = vmatprep.subr.mxu0 0.0
  %3139 = vmatpush1.msra.mxu0 0.0
  %3140 = vmatprep.subr.mxu0 0.0
  %3141 = vmatpush1.msra.mxu0 0.0
  %3142 = vmatprep.subr.mxu0 0.0
  %3143 = vmatpush1.msra.mxu0 0.0
  %3144 = vmatprep.subr.mxu0 0.0
  %3145 = vmatpush1.msra.mxu0 0.0
  %3146 = vmatprep.subr.mxu0 0.0
  %3147 = vmatpush1.msra.mxu0 0.0
  %3148 = vmatprep.subr.mxu0 0.0
  %3149 = vmatpush1.msra.mxu0 0.0
  %3150 = vmatprep.subr.mxu0 0.0
  %3151 = vmatpush1.msra.mxu0 0.0
  %3152 = vmatprep.subr.mxu0 0.0
  %3153 = vmatpush1.msra.mxu0 0.0
  %3154 = vmatprep.subr.mxu0 0.0
  %3155 = vmatpush1.msra.mxu0 0.0
  %3156 = vmatprep.subr.mxu0 0.0
  %3157 = vmatpush1.msra.mxu0 0.0
  %3158 = vmatprep.subr.mxu0 0.0
  %3159 = vmatpush1.msra.mxu0 0.0
  %3160 = vmatprep.subr.mxu0 0.0
  %3161 = vmatpush1.msra.mxu0 0.0
  %3162 = vmatprep.subr.mxu0 0.0
  %3163 = vmatpush1.msra.mxu0 0.0
  %3164 = vmatprep.subr.mxu0 0.0
  %3165 = vmatpush1.msra.mxu0 0.0
  %3166 = vmatprep.subr.mxu0 0.0
  %3167 = vmatpush1.msra.mxu0 0.0
  %3168 = vmatprep.subr.mxu0 0.0
  %3169 = vmatpush1.msra.mxu0 0.0
  %3170 = vmatprep.subr.mxu0 0.0
  %3171 = vmatpush1.msra.mxu0 0.0
  %3172 = vmatprep.subr.mxu0 0.0
  %3173 = vmatpush1.msra.mxu0 0.0
  %3174 = vmatprep.subr.mxu0 0.0
  %3175 = vmatpush1.msra.mxu0 0.0
  %3176 = vmatprep.subr.mxu0 0.0
  %3177 = vmatpush1.msra.mxu0 0.0
  %3178 = vmatprep.mubr.f32.mxu0 0.0
  %3179 = vmatmul.mubr.f32.gmra.mrb[0].mxu0 %v3112
  %v3180 = vpop.f32.mrb[0].mxu0
  %v3181 = vadd.f32 0.0, %v3180
  %v3182 = vpop.f32.mrb[0].mxu0
  %3183 = vdwg.mxu0
  %3185 = vrot.lane.b32.xlu0 %v3181, 80
  %v3186 = vpop.permute.xlu0 %3185
  %v3188 = vadd.f32 %v3181, %v3186
  %v3189 = vmul.f32 %v3188, 0.5
  %v3190 = vsub.f32 %v3181, %v3186
  %v3191 = vmul.f32 %v3190, 0.5
  %v3192 = vmul.f32 %v3191, %v3191
  %3193 = vrot.lane.b32.xlu0 %v3181, 112
  %v3194 = vpop.permute.xlu0 %3193
  %v3196 = vmul.f32 %v3181, %v3194
  %3198 = vrot.lane.b32.xlu0 %v3196, 112
  %v3199 = vpop.permute.xlu0 %3198
  %v3201 = vadd.f32 %v3192, %v3199
  %v3202 = vmax.f32 %v3201, 0.0
  %v3203 = vrsqrt.pop %v3202
  %v3204 = vmul.f32 %v3202, %v3203
  %vm3205 = vcmp.eq.f32.partialorder %v3202, inf
  %v3206 = vsel %vm3205, %v3202, %v3204
  %vm3207 = vcmp.eq.f32.partialorder %v3202, 0.0
  %v3208 = vand.u32 %v3202, 2147483648
  %v3209 = vsel %vm3207, %v3208, %v3206
  %v3210 = vmul.f32 %v3209, 1.442695
  %v3211 = vpow.pop %v3210
  %v3212 = vsub.f32 0.0, %v3209
  %v3213 = vmul.f32 %v3212, 1.442695
  %v3214 = vpow.pop %v3213
  %v3215 = vadd.f32 %v3211, %v3214
  %v3216 = vmul.f32 %v3215, 0.5
  %vm3217 = vcmp.gt.f32.partialorder %v3209, 0.001
  %v3218 = vsub.f32 %v3211, %v3214
  %v3219 = vmul.f32 %v3218, 0.5
  %v3220 = vmax.f32 %v3209, 1e-12
  %v3221 = vrcp.pop %v3220
  %v3222 = vmul.f32 %v3219, %v3221
  %v3223 = vmul.f32 %v3201, %v655
  %v3224 = vadd.f32 %v3223, 1.0
  %v3225 = vsel %vm3217, %v3222, %v3224
  %v3226 = vmul.f32 %v3189, 1.442695
  %v3227 = vpow.pop %v3226
  %v3228 = vmul.f32 %v3227, %v3216
  %v3229 = vmul.f32 %v3227, %v3225
  %v3230 = vmul.f32 %v3229, %v3191
  %v3231 = vadd.f32 %v3228, %v3230
  %v3232 = vsub.f32 %v3228, %v3230
  %v3233 = vmul.f32 %v3229, %v3194
  %3234 = vrot.lane.b32.xlu0 %v3181, 96
  %v3235 = vpop.permute.xlu0 %3234
  %v3237 = vmul.f32 %v3229, %v3235
  %v3238 = vmul.f32 %v3231, %v2988
  %3239 = vrot.lane.b32.xlu0 %v2988, 112
  %v3240 = vpop.permute.xlu0 %3239
  %v3242 = vmul.f32 %v3233, %v3240
  %v3243 = vadd.f32 %v3238, %v3242
  %v3244 = vmul.f32 %v3237, %v2988
  %v3245 = vmul.f32 %v3232, %v3240
  %v3246 = vadd.f32 %v3244, %v3245
  %v3247 = vmul.f32 %v3231, %v3231
  %3248 = vrot.lane.b32.xlu0 %v2988, 96
  %v3249 = vpop.permute.xlu0 %3248
  %v3251 = vmul.f32 %v3247, %v3249
  %v3252 = vmul.f32 %v3231, 2.0
  %v3253 = vmul.f32 %v3252, %v3233
  %3254 = vrot.lane.b32.xlu0 %v2988, 64
  %v3255 = vpop.permute.xlu0 %3254
  %v3257 = vmul.f32 %v3253, %v3255
  %v3258 = vadd.f32 %v3251, %v3257
  %v3259 = vmul.f32 %v3233, %v3233
  %3260 = vrot.lane.b32.xlu0 %v2988, 80
  %v3261 = vpop.permute.xlu0 %3260
  %v3263 = vmul.f32 %v3259, %v3261
  %v3264 = vadd.f32 %v3258, %v3263
  %v3265 = vmul.f32 %v440, %v3108
  %v3266 = vadd.f32 %v3264, %v3265
  %v3267 = vmul.f32 %v3237, %v3237
  %v3268 = vmul.f32 %v3267, %v3249
  %v3269 = vmul.f32 %v3237, 2.0
  %v3270 = vmul.f32 %v3269, %v3232
  %v3271 = vmul.f32 %v3270, %v3255
  %v3272 = vadd.f32 %v3268, %v3271
  %v3273 = vmul.f32 %v3232, %v3232
  %v3274 = vmul.f32 %v3273, %v3261
  %v3275 = vadd.f32 %v3272, %v3274
  %3277 = vrot.lane.b32.xlu0 %v3265, 112
  %v3278 = vpop.permute.xlu0 %3277
  %v3280 = vadd.f32 %v3275, %v3278
  %v3281 = vmul.f32 %v3231, %v3237
  %v3282 = vmul.f32 %v3281, %v3249
  %v3283 = vmul.f32 %v3231, %v3232
  %v3284 = vmul.f32 %v3233, %v3237
  %v3285 = vadd.f32 %v3283, %v3284
  %v3286 = vmul.f32 %v3285, %v3255
  %v3287 = vadd.f32 %v3282, %v3286
  %v3288 = vmul.f32 %v3233, %v3232
  %v3289 = vmul.f32 %v3288, %v3261
  %v3290 = vadd.f32 %v3287, %v3289
  %3292 = vrot.lane.b32.xlu0 %v3246, 16
  %v3293 = vpop.permute.xlu0 %3292
  %3296 = vrot.lane.b32.xlu0 %v3266, 32
  %v3297 = vpop.permute.xlu0 %3296
  %3300 = vrot.lane.b32.xlu0 %v3280, 48
  %v3301 = vpop.permute.xlu0 %3300
  %3304 = vrot.lane.b32.xlu0 %v3290, 64
  %v3305 = vpop.permute.xlu0 %3304
  %v3307 = vsel %vm740, %v3243, %v3293
  %v3308 = vsel %vm184, %v3307, %v3297
  %v3309 = vsel %vm743, %v3308, %v3301
  %v3310 = vsel %vm745, %v3309, %v3305
  %3312 = vrot.lane.b32.xlu0 %v3018, 112
  %v3313 = vpop.permute.xlu0 %3312
  %v3315 = vadd.f32 %v3266, %v3313
  %v3316 = vrcp.pop %v3315
  %v3317 = vmul.f32 %v3266, %v3316
  %v3318 = vmul.f32 %v3290, %v3316
  %v3319 = vsub.f32 %v3017, %v3243
  %v3320 = vsub.f32 1.0, %v3317
  %v3321 = vmul.f32 %v3317, %v3319
  %v3322 = vadd.f32 %v3243, %v3321
  %v3323 = vmul.f32 %v3318, %v3319
  %v3324 = vadd.f32 %v3246, %v3323
  %v3325 = vmul.f32 %v3320, %v3266
  %v3326 = vmul.f32 %v3318, %v3290
  %v3327 = vsub.f32 %v3280, %v3326
  %v3328 = vmul.f32 %v3320, %v3290
  %3330 = vrot.lane.b32.xlu0 %v3324, 16
  %v3331 = vpop.permute.xlu0 %3330
  %3334 = vrot.lane.b32.xlu0 %v3325, 32
  %v3335 = vpop.permute.xlu0 %3334
  %3338 = vrot.lane.b32.xlu0 %v3327, 48
  %v3339 = vpop.permute.xlu0 %3338
  %3342 = vrot.lane.b32.xlu0 %v3328, 64
  %v3343 = vpop.permute.xlu0 %3342
  %v3345 = vsel %vm740, %v3322, %v3331
  %v3346 = vsel %vm184, %v3345, %v3335
  %v3347 = vsel %vm743, %v3346, %v3339
  %v3348 = vsel %vm745, %v3347, %v3343
  %v3349 = vsel %vm3020, 1, 0
  %3350 = vset.pattern.permute.xlu0 9
  %3351 = vperm.xlu0 %3350, %v3349
  %v3352 = vpop.permute.xlu0 %3351
  %vm3353 = vcmp.eq.s32.totalorder %v3352, 1
  %v3354 = vsel %vm3353, %v3348, %v3310
  %3356 = vrot.lane.b32.xlu0 %v3318, 16
  %v3357 = vpop.permute.xlu0 %3356
  %v3359 = vsel %vm740, %v3317, %v3357
  %v3360 = vsel %vm3353, %v3359, 0.0
  %3362 = vrot.lane.b32.xlu0 %v3310, 80
  %v3363 = vpop.permute.xlu0 %3362
  %3366 = vrot.lane.b32.xlu0 %v3360, 32
  %v3367 = vpop.permute.xlu0 %3366
  %3370 = vrot.lane.b32.xlu0 %v3017, 64
  %v3371 = vpop.permute.xlu0 %3370
  %3373 = vrot.lane.b32.xlu0 %v3018, 64
  %v3374 = vpop.permute.xlu0 %3373
  %v3376 = vsel %vm812, %v3354, %v3363
  %v3377 = vsel %vm184, %v3363, %v3367
  %v3378 = vsel %vm745, %v3377, %v3371
  %v3379 = vsel %vm812, %v3378, %v3374
  %v3380 = vsel %vm817, %v3379, 0.0
  %3381 = vst [vmem:[%s2 + $0x70] sm:$0xff] %v3376
  %3382 = vst [vmem:[%s2 + $0x78] sm:$0xff] %v3380
  %v3383 = vld [vmem:[%s2] sm:$0xff]
  %v3384 = vld [vmem:[%s2 + $0x10] sm:$0xff]
  %v3385 = vld [vmem:[%s2 + $0x20] sm:$0xff]
  %v3386 = vld [vmem:[%s2 + $0x30] sm:$0xff]
  %v3387 = vld [vmem:[%s2 + $0x40] sm:$0xff]
  %v3388 = vld [vmem:[%s2 + $0x50] sm:$0xff]
  %v3389 = vld [vmem:[%s2 + $0x60] sm:$0xff]
  %v3390 = vld [vmem:[%s2 + $0x70] sm:$0xff]
  %v3391 = vld [vmem:[%s1 + $0x50] sm:$0xff]
  %v3392 = vld [vmem:[%s1 + $0x58] sm:$0xff]
  %v3393 = vld [vmem:[%s1 + $0x60] sm:$0xff]
  %v3394 = vld [vmem:[%s1 + $0x68] sm:$0xff]
  %v3395 = vld [vmem:[%s1 + $0x70] sm:$0xff]
  %v3396 = vld [vmem:[%s1 + $0x78] sm:$0xff]
  %v3397 = vld [vmem:[%s1 + $0x80] sm:$0xff]
  %v3398 = vld [vmem:[%s1 + $0x88] sm:$0xff]
  %v3399 = vld [vmem:[%s1 + $0x90] sm:$0xff]
  %v3400 = vld [vmem:[%s1 + $0x98] sm:$0xff]
  %v3401 = vld [vmem:[%s1 + $0xe3] sm:$0x1]
  %v3402 = vld [vmem:[%s1 + $0xa0] sm:$0xff]
  %v3403 = vld [vmem:[%s1 + $0xa8] sm:$0xff]
  %v3404 = vld [vmem:[%s1 + $0xb0] sm:$0xff]
  %v3405 = vld [vmem:[%s1 + $0xb8] sm:$0xff]
  %v3406 = vld [vmem:[%s1 + $0xc0] sm:$0xff]
  %v3407 = vld [vmem:[%s1 + $0xc8] sm:$0xff]
  %v3408 = vld [vmem:[%s1 + $0xd0] sm:$0xff]
  %v3409 = vld [vmem:[%s1 + $0xd8] sm:$0xff]
  %v3410 = vld [vmem:[%s1 + $0xe4] sm:$0x1]
  %v3411 = vlaneseq
  %v3412 = vshrl.u32 %v3411, 7
  %v3413 = vsub.s32 0, %v3412
  %v3414 = vrot.slane %v3401, %v3413
  %v3416 = vsel %vm812, %v3383, 0
  %v3419 = vsel %vm812, %v3384, 0
  %v3422 = vsel %vm812, %v3385, 0
  %v3425 = vsel %vm812, %v3386, 0
  %v3428 = vsel %vm812, %v3387, 0
  %v3431 = vsel %vm812, %v3388, 0
  %v3434 = vsel %vm812, %v3389, 0
  %v3437 = vsel %vm812, %v3390, 0
  %3439 = vmatprep.subr.mxu0 0.0
  %3440 = vmatpush1.msra.mxu0 %v3391
  %3441 = vmatprep.subr.mxu0 0.0
  %3442 = vmatpush1.msra.mxu0 %v3392
  %3443 = vmatprep.subr.mxu0 0.0
  %3444 = vmatpush1.msra.mxu0 %v3393
  %3445 = vmatprep.subr.mxu0 0.0
  %3446 = vmatpush1.msra.mxu0 %v3394
  %3447 = vmatprep.subr.mxu0 0.0
  %3448 = vmatpush1.msra.mxu0 %v3395
  %3449 = vmatprep.subr.mxu0 0.0
  %3450 = vmatpush1.msra.mxu0 %v3396
  %3451 = vmatprep.subr.mxu0 0.0
  %3452 = vmatpush1.msra.mxu0 %v3397
  %3453 = vmatprep.subr.mxu0 0.0
  %3454 = vmatpush1.msra.mxu0 %v3398
  %3455 = vmatprep.subr.mxu0 0.0
  %3456 = vmatpush1.msra.mxu0 %v3399
  %3457 = vmatprep.subr.mxu0 0.0
  %3458 = vmatpush1.msra.mxu0 %v3400
  %3459 = vmatprep.subr.mxu0 0.0
  %3460 = vmatpush1.msra.mxu0 0.0
  %3461 = vmatprep.subr.mxu0 0.0
  %3462 = vmatpush1.msra.mxu0 0.0
  %3463 = vmatprep.subr.mxu0 0.0
  %3464 = vmatpush1.msra.mxu0 0.0
  %3465 = vmatprep.subr.mxu0 0.0
  %3466 = vmatpush1.msra.mxu0 0.0
  %3467 = vmatprep.subr.mxu0 0.0
  %3468 = vmatpush1.msra.mxu0 0.0
  %3469 = vmatprep.subr.mxu0 0.0
  %3470 = vmatpush1.msra.mxu0 0.0
  %3471 = vmatprep.subr.mxu0 0.0
  %3472 = vmatpush1.msra.mxu0 0.0
  %3473 = vmatprep.subr.mxu0 0.0
  %3474 = vmatpush1.msra.mxu0 0.0
  %3475 = vmatprep.subr.mxu0 0.0
  %3476 = vmatpush1.msra.mxu0 0.0
  %3477 = vmatprep.subr.mxu0 0.0
  %3478 = vmatpush1.msra.mxu0 0.0
  %3479 = vmatprep.subr.mxu0 0.0
  %3480 = vmatpush1.msra.mxu0 0.0
  %3481 = vmatprep.subr.mxu0 0.0
  %3482 = vmatpush1.msra.mxu0 0.0
  %3483 = vmatprep.subr.mxu0 0.0
  %3484 = vmatpush1.msra.mxu0 0.0
  %3485 = vmatprep.subr.mxu0 0.0
  %3486 = vmatpush1.msra.mxu0 0.0
  %3487 = vmatprep.subr.mxu0 0.0
  %3488 = vmatpush1.msra.mxu0 0.0
  %3489 = vmatprep.subr.mxu0 0.0
  %3490 = vmatpush1.msra.mxu0 0.0
  %3491 = vmatprep.subr.mxu0 0.0
  %3492 = vmatpush1.msra.mxu0 0.0
  %3493 = vmatprep.subr.mxu0 0.0
  %3494 = vmatpush1.msra.mxu0 0.0
  %3495 = vmatprep.subr.mxu0 0.0
  %3496 = vmatpush1.msra.mxu0 0.0
  %3497 = vmatprep.subr.mxu0 0.0
  %3498 = vmatpush1.msra.mxu0 0.0
  %3499 = vmatprep.subr.mxu0 0.0
  %3500 = vmatpush1.msra.mxu0 0.0
  %3501 = vmatprep.subr.mxu0 0.0
  %3502 = vmatpush1.msra.mxu0 0.0
  %3503 = vmatprep.mubr.f32.mxu0 0.0
  %3504 = vmatmul.mubr.f32.gmra.mrb[0].mxu0 %v3416
  %v3505 = vpop.f32.mrb[0].mxu0
  %v3506 = vadd.f32 %v3414, %v3505
  %v3507 = vpop.f32.mrb[0].mxu0
  %3508 = vmatprep.mubr.f32.mxu0 0.0
  %3509 = vmatmul.mubr.f32.gmra.mrb[0].mxu0 %v3419
  %v3510 = vpop.f32.mrb[0].mxu0
  %v3511 = vadd.f32 %v3414, %v3510
  %v3512 = vpop.f32.mrb[0].mxu0
  %3513 = vmatprep.mubr.f32.mxu0 0.0
  %3514 = vmatmul.mubr.f32.gmra.mrb[0].mxu0 %v3422
  %v3515 = vpop.f32.mrb[0].mxu0
  %v3516 = vadd.f32 %v3414, %v3515
  %v3517 = vpop.f32.mrb[0].mxu0
  %3518 = vmatprep.mubr.f32.mxu0 0.0
  %3519 = vmatmul.mubr.f32.gmra.mrb[0].mxu0 %v3425
  %v3520 = vpop.f32.mrb[0].mxu0
  %v3521 = vadd.f32 %v3414, %v3520
  %v3522 = vpop.f32.mrb[0].mxu0
  %3523 = vmatprep.mubr.f32.mxu0 0.0
  %3524 = vmatmul.mubr.f32.gmra.mrb[0].mxu0 %v3428
  %v3525 = vpop.f32.mrb[0].mxu0
  %v3526 = vadd.f32 %v3414, %v3525
  %v3527 = vpop.f32.mrb[0].mxu0
  %3528 = vmatprep.mubr.f32.mxu0 0.0
  %3529 = vmatmul.mubr.f32.gmra.mrb[0].mxu0 %v3431
  %v3530 = vpop.f32.mrb[0].mxu0
  %v3531 = vadd.f32 %v3414, %v3530
  %v3532 = vpop.f32.mrb[0].mxu0
  %3533 = vmatprep.mubr.f32.mxu0 0.0
  %3534 = vmatmul.mubr.f32.gmra.mrb[0].mxu0 %v3434
  %v3535 = vpop.f32.mrb[0].mxu0
  %v3536 = vadd.f32 %v3414, %v3535
  %v3537 = vpop.f32.mrb[0].mxu0
  %3538 = vmatprep.mubr.f32.mxu0 0.0
  %3539 = vmatmul.mubr.f32.gmra.mrb[0].mxu0 %v3437
  %v3540 = vpop.f32.mrb[0].mxu0
  %v3541 = vadd.f32 %v3414, %v3540
  %v3542 = vpop.f32.mrb[0].mxu0
  %3543 = vdwg.mxu0
  %v3544 = vmax.f32 %v3506, 0.0
  %v3545 = vmax.f32 %v3511, 0.0
  %v3546 = vmax.f32 %v3516, 0.0
  %v3547 = vmax.f32 %v3521, 0.0
  %v3548 = vmax.f32 %v3526, 0.0
  %v3549 = vmax.f32 %v3531, 0.0
  %v3550 = vmax.f32 %v3536, 0.0
  %v3551 = vmax.f32 %v3541, 0.0
  %v3552 = vlaneseq
  %v3553 = vshrl.u32 %v3552, 7
  %v3554 = vsub.s32 0, %v3553
  %v3555 = vrot.slane %v3410, %v3554
  %v3557 = vsel %vm745, %v3544, 0
  %v3560 = vsel %vm745, %v3545, 0
  %v3563 = vsel %vm745, %v3546, 0
  %v3566 = vsel %vm745, %v3547, 0
  %v3569 = vsel %vm745, %v3548, 0
  %v3572 = vsel %vm745, %v3549, 0
  %v3575 = vsel %vm745, %v3550, 0
  %v3578 = vsel %vm745, %v3551, 0
  %3580 = vmatprep.subr.mxu0 0.0
  %3581 = vmatpush1.msra.mxu0 %v3402
  %3582 = vmatprep.subr.mxu0 0.0
  %3583 = vmatpush1.msra.mxu0 %v3403
  %3584 = vmatprep.subr.mxu0 0.0
  %3585 = vmatpush1.msra.mxu0 %v3404
  %3586 = vmatprep.subr.mxu0 0.0
  %3587 = vmatpush1.msra.mxu0 %v3405
  %3588 = vmatprep.subr.mxu0 0.0
  %3589 = vmatpush1.msra.mxu0 %v3406
  %3590 = vmatprep.subr.mxu0 0.0
  %3591 = vmatpush1.msra.mxu0 %v3407
  %3592 = vmatprep.subr.mxu0 0.0
  %3593 = vmatpush1.msra.mxu0 %v3408
  %3594 = vmatprep.subr.mxu0 0.0
  %3595 = vmatpush1.msra.mxu0 %v3409
  %3596 = vmatprep.subr.mxu0 0.0
  %3597 = vmatpush1.msra.mxu0 0.0
  %3598 = vmatprep.subr.mxu0 0.0
  %3599 = vmatpush1.msra.mxu0 0.0
  %3600 = vmatprep.subr.mxu0 0.0
  %3601 = vmatpush1.msra.mxu0 0.0
  %3602 = vmatprep.subr.mxu0 0.0
  %3603 = vmatpush1.msra.mxu0 0.0
  %3604 = vmatprep.subr.mxu0 0.0
  %3605 = vmatpush1.msra.mxu0 0.0
  %3606 = vmatprep.subr.mxu0 0.0
  %3607 = vmatpush1.msra.mxu0 0.0
  %3608 = vmatprep.subr.mxu0 0.0
  %3609 = vmatpush1.msra.mxu0 0.0
  %3610 = vmatprep.subr.mxu0 0.0
  %3611 = vmatpush1.msra.mxu0 0.0
  %3612 = vmatprep.subr.mxu0 0.0
  %3613 = vmatpush1.msra.mxu0 0.0
  %3614 = vmatprep.subr.mxu0 0.0
  %3615 = vmatpush1.msra.mxu0 0.0
  %3616 = vmatprep.subr.mxu0 0.0
  %3617 = vmatpush1.msra.mxu0 0.0
  %3618 = vmatprep.subr.mxu0 0.0
  %3619 = vmatpush1.msra.mxu0 0.0
  %3620 = vmatprep.subr.mxu0 0.0
  %3621 = vmatpush1.msra.mxu0 0.0
  %3622 = vmatprep.subr.mxu0 0.0
  %3623 = vmatpush1.msra.mxu0 0.0
  %3624 = vmatprep.subr.mxu0 0.0
  %3625 = vmatpush1.msra.mxu0 0.0
  %3626 = vmatprep.subr.mxu0 0.0
  %3627 = vmatpush1.msra.mxu0 0.0
  %3628 = vmatprep.subr.mxu0 0.0
  %3629 = vmatpush1.msra.mxu0 0.0
  %3630 = vmatprep.subr.mxu0 0.0
  %3631 = vmatpush1.msra.mxu0 0.0
  %3632 = vmatprep.subr.mxu0 0.0
  %3633 = vmatpush1.msra.mxu0 0.0
  %3634 = vmatprep.subr.mxu0 0.0
  %3635 = vmatpush1.msra.mxu0 0.0
  %3636 = vmatprep.subr.mxu0 0.0
  %3637 = vmatpush1.msra.mxu0 0.0
  %3638 = vmatprep.subr.mxu0 0.0
  %3639 = vmatpush1.msra.mxu0 0.0
  %3640 = vmatprep.subr.mxu0 0.0
  %3641 = vmatpush1.msra.mxu0 0.0
  %3642 = vmatprep.subr.mxu0 0.0
  %3643 = vmatpush1.msra.mxu0 0.0
  %3644 = vmatprep.mubr.f32.mxu0 0.0
  %3645 = vmatmul.mubr.f32.gmra.mrb[0].mxu0 %v3557
  %v3646 = vpop.f32.mrb[0].mxu0
  %v3647 = vadd.f32 %v3555, %v3646
  %v3648 = vpop.f32.mrb[0].mxu0
  %3649 = vmatprep.mubr.f32.mxu0 0.0
  %3650 = vmatmul.mubr.f32.gmra.mrb[0].mxu0 %v3560
  %v3651 = vpop.f32.mrb[0].mxu0
  %v3652 = vadd.f32 %v3555, %v3651
  %v3653 = vpop.f32.mrb[0].mxu0
  %3654 = vmatprep.mubr.f32.mxu0 0.0
  %3655 = vmatmul.mubr.f32.gmra.mrb[0].mxu0 %v3563
  %v3656 = vpop.f32.mrb[0].mxu0
  %v3657 = vadd.f32 %v3555, %v3656
  %v3658 = vpop.f32.mrb[0].mxu0
  %3659 = vmatprep.mubr.f32.mxu0 0.0
  %3660 = vmatmul.mubr.f32.gmra.mrb[0].mxu0 %v3566
  %v3661 = vpop.f32.mrb[0].mxu0
  %v3662 = vadd.f32 %v3555, %v3661
  %v3663 = vpop.f32.mrb[0].mxu0
  %3664 = vmatprep.mubr.f32.mxu0 0.0
  %3665 = vmatmul.mubr.f32.gmra.mrb[0].mxu0 %v3569
  %v3666 = vpop.f32.mrb[0].mxu0
  %v3667 = vadd.f32 %v3555, %v3666
  %v3668 = vpop.f32.mrb[0].mxu0
  %3669 = vmatprep.mubr.f32.mxu0 0.0
  %3670 = vmatmul.mubr.f32.gmra.mrb[0].mxu0 %v3572
  %v3671 = vpop.f32.mrb[0].mxu0
  %v3672 = vadd.f32 %v3555, %v3671
  %v3673 = vpop.f32.mrb[0].mxu0
  %3674 = vmatprep.mubr.f32.mxu0 0.0
  %3675 = vmatmul.mubr.f32.gmra.mrb[0].mxu0 %v3575
  %v3676 = vpop.f32.mrb[0].mxu0
  %v3677 = vadd.f32 %v3555, %v3676
  %v3678 = vpop.f32.mrb[0].mxu0
  %3679 = vmatprep.mubr.f32.mxu0 0.0
  %3680 = vmatmul.mubr.f32.gmra.mrb[0].mxu0 %v3578
  %v3681 = vpop.f32.mrb[0].mxu0
  %v3682 = vadd.f32 %v3555, %v3681
  %v3683 = vpop.f32.mrb[0].mxu0
  %3684 = vdwg.mxu0
  %v3685 = vmul.f32 %v3647, 1.442695
  %v3686 = vpow.pop %v3685
  %v3687 = vmul.f32 %v3652, 1.442695
  %v3688 = vpow.pop %v3687
  %v3689 = vmul.f32 %v3657, 1.442695
  %v3690 = vpow.pop %v3689
  %v3691 = vmul.f32 %v3662, 1.442695
  %v3692 = vpow.pop %v3691
  %v3693 = vmul.f32 %v3667, 1.442695
  %v3694 = vpow.pop %v3693
  %v3695 = vmul.f32 %v3672, 1.442695
  %v3696 = vpow.pop %v3695
  %v3697 = vmul.f32 %v3677, 1.442695
  %v3698 = vpow.pop %v3697
  %v3699 = vmul.f32 %v3682, 1.442695
  %v3700 = vpow.pop %v3699
  %v3701 = vsel %vm38, %v3647, %v3686
  %v3702 = vsel %vm38, %v3652, %v3688
  %v3703 = vsel %vm38, %v3657, %v3690
  %v3704 = vsel %vm38, %v3662, %v3692
  %v3705 = vsel %vm38, %v3667, %v3694
  %v3706 = vsel %vm38, %v3672, %v3696
  %v3707 = vsel %vm38, %v3677, %v3698
  %v3708 = vsel %vm38, %v3682, %v3700
  %3709 = vst.msk [vmem:[%s3] sm:$0xff] %vm740, %v3701
  %3710 = vst.msk [vmem:[%s3 + $0x8] sm:$0xff] %vm740, %v3702
  %3711 = vst.msk [vmem:[%s3 + $0x10] sm:$0xff] %vm740, %v3703
  %3712 = vst.msk [vmem:[%s3 + $0x18] sm:$0xff] %vm740, %v3704
  %3713 = vst.msk [vmem:[%s3 + $0x20] sm:$0xff] %vm740, %v3705
  %3714 = vst.msk [vmem:[%s3 + $0x28] sm:$0xff] %vm740, %v3706
  %3715 = vst.msk [vmem:[%s3 + $0x30] sm:$0xff] %vm740, %v3707
  %3716 = vst.msk [vmem:[%s3 + $0x38] sm:$0xff] %vm740, %v3708
  // Predicated region
  $region10: #{cru_forward.1} parent=0 // pred_check
    _
  $region11: #{cru_forward.1} parent=0 // pred_check_branch
    %3718 = sbr.rel (0) target = $region13
  $region12: #{cru_forward.1} parent=0 // pred_region
    _
  $region13: #{cru_forward.1} parent=0 // pred_fallthru
    _
  // Predicated region
  $region14: #{cru_forward.1} parent=0 // pred_check
    _
  $region15: #{cru_forward.1} parent=0 // pred_check_branch
    %3720 = sbr.rel (0) target = $region17
  $region16: #{cru_forward.1} parent=0 // pred_region
    _
  $region17: #{cru_forward.1} parent=0 // pred_fallthru
    _
  // Predicated region
  $region18: #{cru_forward.1} parent=0 // pred_check
    _
  $region19: #{cru_forward.1} parent=0 // pred_check_branch
    %3722 = sbr.rel (0) target = $region21
  $region20: #{cru_forward.1} parent=0 // pred_region
    _
  $region21: #{cru_forward.1} parent=0 // pred_fallthru
    _
  // Predicated region
  $region22: #{cru_forward.1} parent=0 // pred_check
    _
  $region23: #{cru_forward.1} parent=0 // pred_check_branch
    %3724 = sbr.rel (0) target = $region25
  $region24: #{cru_forward.1} parent=0 // pred_region
    _
  $region25: #{cru_forward.1} parent=0 // pred_fallthru
    _

</llo_original>
